<compile_context>
chip_gen: v6e
topology: v6e:2x2x1
jax: 0.10.0
libtpu: 0.0.40
codegen_flags: <defaults>
</compile_context>

<pallas_src>
import jax
import jax.numpy as jnp
import numpy as np
from jax.experimental import pallas as pl
from jax.experimental.pallas import tpu as pltpu


def _silu(x):
    # x * sigmoid(x); exact reciprocal (approx vrcp not needed here, and exact
    # 1/inf -> 0 keeps SiLU(-large) -> 0 on all generations).
    return x * pl.reciprocal(1.0 + jnp.exp(-x))


def _sppf_kernel(x_ref, w1_ref, b1_ref, w2_ref, b2_ref, o_ref, pad_ref):
    H, W, C1 = x_ref.shape[1], x_ref.shape[2], x_ref.shape[3]
    c_ = w1_ref.shape[1]
    C2 = w2_ref.shape[1]
    HW = H * W
    pool_dt = pad_ref.dtype
    # Every stride-1/pad-2 window contains its center element, so the pad value
    # never surfaces in the output.
    neg = float(jnp.finfo(pool_dt).min)

    # ---- cv1: 1x1 conv == channel matmul. x arrives as bf16, the BN scale is
    #      already folded into w1 on the host, so the epilogue is bias + SiLU.
    x = x_ref[0].reshape(HW, C1)                                        # bf16
    t = jnp.dot(x, w1_ref[...], preferred_element_type=jnp.float32)    # (HW, c_)
    t = _silu(t + b1_ref[...])                                          # f32

    # ---- three chained 5x5 / stride-1 / pad-2 max pools on a -inf padded VMEM
    #      scratch.  The border is never written (only the interior is), so all
    #      taps are select-free offset loads.  The full re-fill each grid step
    #      is ~50K elements (trivial) and stays correct if the N axis is later
    #      split across cores (a pl.when(pid == 0)-only init would not be).
    pad_ref[...] = jnp.full(pad_ref.shape, neg, dtype=pool_dt)

    def pool5():
        # W (sublane) axis: 5 taps as plain static-offset loads from the
        # padded scratch -> vld slots + 4 maxes, no masks / selects.
        mw = pad_ref[:, 0:W, :]
        for dw in range(1, 5):
            mw = jnp.maximum(mw, pad_ref[:, dw:dw + W, :])
        # H axis is the untiled outer dim: slicing is cheap vreg selection.
        y = mw[0:H]
        for dh in range(1, 5):
            y = jnp.maximum(y, mw[dh:dh + H])
        return y                                                        # (H, W, c_)

    cur = t.astype(pool_dt).reshape(H, W, c_)
    ys = []
    for _ in range(3):
        pad_ref[2:2 + H, 2:2 + W, :] = cur      # interior only; border stays -inf
        cur = pool5()
        ys.append(cur)
    y1, y2, y3 = ys

    # ---- cv2 on concat([t, y1, y2, y3], C): one fused K = 4*c_ bf16 matmul
    #      over a lane-axis concat of four lane-dense (HW, c_) blocks.
    cat = jnp.concatenate(
        [t.astype(jnp.bfloat16),
         y1.reshape(HW, c_).astype(jnp.bfloat16),
         y2.reshape(HW, c_).astype(jnp.bfloat16),
         y3.reshape(HW, c_).astype(jnp.bfloat16)], axis=-1)             # (HW, 4c_)
    z = jnp.dot(cat, w2_ref[...], preferred_element_type=jnp.float32)   # (HW, C2)
    z = _silu(z + b2_ref[...])
    o_ref[0] = z.reshape(H, W, C2).astype(o_ref.dtype)


def sppf_pallas(x_nhwc, params, *, pool_dtype=jnp.float32):
    """SPPF forward. x_nhwc: (N, H, W, C1), channels-last (TPU-native layout).

    pool_dtype: dtype of the pooling scratch.  f32 (default) is exact; bf16 is
    bit-identical for the final output (max commutes with round-to-nearest) and
    faster on bf16-capable VALUs (v6e/v7x) — see TODO in the module header.
    """
    w1, s1, b1, w2, s2, b2 = params
    N, H, W, C1 = x_nhwc.shape
    c_ = w1.shape[1]
    C2 = w2.shape[1]
    out_dtype = x_nhwc.dtype

    # Fold the BN scale into the conv weights in f32, then cast once to bf16
    # for the MXU (no accuracy change vs scaling in the kernel epilogue).
    w1b = (w1.astype(jnp.float32) * s1.reshape(1, -1)).astype(jnp.bfloat16)
    w2b = (w2.astype(jnp.float32) * s2.reshape(1, -1)).astype(jnp.bfloat16)
    b1f = b1.reshape(1, -1).astype(jnp.float32)
    b2f = b2.reshape(1, -1).astype(jnp.float32)

    # bf16 activations at the kernel boundary (in a real network the producer
    # layer would already emit bf16; this cast is the XLA-boundary fallback).
    x_bf = x_nhwc.astype(jnp.bfloat16)

    # TODO(synk): at real feature-map sizes on v7x (64 MiB VMEM, 2 TensorCores)
    # add an H-tile grid axis (tile_h + 12 halo rows for the 3 chained radius-2
    # pools) marked "parallel" so both cores stay busy when N is 1 or odd; on
    # 128 MiB parts (v5e/v6e) raise vmem_limit_bytes (64-100 MiB) to keep
    # whole-image / large-H blocks before falling back to H-tiling.  At the
    # sizes used here whole-image blocks are the right call everywhere.
    return pl.pallas_call(
        _sppf_kernel,
        out_shape=jax.ShapeDtypeStruct((N, H, W, C2), out_dtype),
        grid=(N,),
        in_specs=[
            pl.BlockSpec((1, H, W, C1), lambda n: (n, 0, 0, 0)),
            pl.BlockSpec((C1, c_), lambda n: (0, 0)),
            pl.BlockSpec((1, c_), lambda n: (0, 0)),
            pl.BlockSpec((4 * c_, C2), lambda n: (0, 0)),
            pl.BlockSpec((1, C2), lambda n: (0, 0)),
        ],
        out_specs=pl.BlockSpec((1, H, W, C2), lambda n: (n, 0, 0, 0)),
        scratch_shapes=[pltpu.VMEM((H + 4, W + 4, c_), pool_dtype)],
        compiler_params=pltpu.CompilerParams(
            dimension_semantics=("parallel",),
            vmem_limit_bytes=32 * 1024 * 1024,
        ),
    )(x_bf, w1b, b1f, w2b, b2f)


def sppf_pallas_nchw(x_nchw, params):
    """PyTorch-layout (NCHW) adaptor. Prefer sppf_pallas (NHWC) inside a real
    network to avoid the two full-tensor HBM transposes."""
    y = sppf_pallas(jnp.transpose(x_nchw, (0, 2, 3, 1)), params)
    return jnp.transpose(y, (0, 3, 1, 2))


def init_sppf_params(key, c1, c2):
    """Deterministic synthetic params. 1x1 conv weights stored as (c_in, c_out);
    BatchNorm folded to per-channel scale/bias (eval-mode running stats)."""
    c_ = c1 // 2
    eps = 1e-5
    ks = jax.random.split(key, 10)
    w1 = 0.1 * jax.random.normal(ks[0], (c1, c_), jnp.float32)
    g1 = 1.0 + 0.1 * jax.random.normal(ks[1], (c_,), jnp.float32)
    be1 = 0.1 * jax.random.normal(ks[2], (c_,), jnp.float32)
    m1 = 0.1 * jax.random.normal(ks[3], (c_,), jnp.float32)
    v1 = jax.random.uniform(ks[4], (c_,), jnp.float32, minval=0.5, maxval=1.5)
    w2 = 0.1 * jax.random.normal(ks[5], (4 * c_, c2), jnp.float32)
    g2 = 1.0 + 0.1 * jax.random.normal(ks[6], (c2,), jnp.float32)
    be2 = 0.1 * jax.random.normal(ks[7], (c2,), jnp.float32)
    m2 = 0.1 * jax.random.normal(ks[8], (c2,), jnp.float32)
    v2 = jax.random.uniform(ks[9], (c2,), jnp.float32, minval=0.5, maxval=1.5)
    s1 = g1 / jnp.sqrt(v1 + eps)
    b1 = be1 - m1 * s1
    s2 = g2 / jnp.sqrt(v2 + eps)
    b2 = be2 - m2 * s2
    return (w1, s1.reshape(1, -1), b1.reshape(1, -1),
            w2, s2.reshape(1, -1), b2.reshape(1, -1))


def sppf_reference(x_nhwc, params):
    """Pure-JAX f32 reference with the module's exact semantics (NHWC)."""
    w1, s1, b1, w2, s2, b2 = params
    t = jax.nn.silu(jnp.einsum('nhwc,cd->nhwd', x_nhwc, w1) * s1[0] + b1[0])

    def mp(a):
        return jax.lax.reduce_window(a, -jnp.inf, jax.lax.max,
                                     (1, 5, 5, 1), (1, 1, 1, 1),
                                     [(0, 0), (2, 2), (2, 2), (0, 0)])

    y1 = mp(t)
    y2 = mp(y1)
    y3 = mp(y2)
    cat = jnp.concatenate([t, y1, y2, y3], axis=-1)
    return jax.nn.silu(jnp.einsum('nhwc,cd->nhwd', cat, w2) * s2[0] + b2[0])


if __name__ == "__main__":
    key = jax.random.PRNGKey(0)
    k_x, k_p = jax.random.split(key)

    # Production-like SPPF width so the VALU-bound pool is lane-dense
    # (c_ = C1//2 = 128) and cv2 is a K=512 x N=256 MXU matmul; spatial size is
    # kept small for the demo.
    N, C1, H, W = 2, 256, 16, 16
    C2 = 256
    x_nhwc = jax.random.normal(k_x, (N, H, W, C1), jnp.float32)
    params = init_sppf_params(k_p, C1, C2)

    out = jax.block_until_ready(sppf_pallas(x_nhwc, params))
    ref = jax.block_until_ready(sppf_reference(x_nhwc, params))
    # bf16 MXU operands (x, BN-folded weights, cv2 concat) vs the exact f32
    # reference; pooling and both epilogues inside the kernel are exact f32.
    np.testing.assert_allclose(np.asarray(out), np.asarray(ref),
                               rtol=5e-2, atol=5e-2)
    assert out.shape == (N, H, W, C2)

    # PyTorch-layout (NCHW) parity through the adaptor.
    x_nchw = jnp.transpose(x_nhwc, (0, 3, 1, 2))
    out_nchw = jax.block_until_ready(sppf_pallas_nchw(x_nchw, params))
    np.testing.assert_allclose(np.asarray(out_nchw),
                               np.asarray(jnp.transpose(ref, (0, 3, 1, 2))),
                               rtol=5e-2, atol=5e-2)

    print("KERNEL_OK")
</pallas_src>

<mosaic_0001>
module attributes {stable_mosaic.version = 11 : i64} {
  func.func @_sppf_kernel(%arg0: i32, %arg1: memref<1x16x16x256xbf16, #tpu.memory_space<vmem>>, %arg2: memref<256x128xbf16, #tpu.memory_space<vmem>>, %arg3: memref<1x128xf32, #tpu.memory_space<vmem>>, %arg4: memref<512x256xbf16, #tpu.memory_space<vmem>>, %arg5: memref<1x256xf32, #tpu.memory_space<vmem>>, %arg6: memref<1x16x16x256xf32, #tpu.memory_space<vmem>>, %arg7: memref<20x20x128xf32, #tpu.memory_space<vmem>>) attributes {dimension_semantics = [#tpu.dimension_semantics<parallel>], iteration_bounds = array<i64: 2>, scalar_prefetch = 0 : i64, scratch_operands = 1 : i64, tpu.core_type = #tpu.core_type<tc>, window_params = [{transform_indices = @transform_0, window_bounds = array<i64: 1, 16, 16, 256>}, {pipeline_mode = #tpu.pipeline_mode<synchronous>, transform_indices = @transform_1, window_bounds = array<i64: 256, 128>}, {pipeline_mode = #tpu.pipeline_mode<synchronous>, transform_indices = @transform_2, window_bounds = array<i64: 1, 128>}, {pipeline_mode = #tpu.pipeline_mode<synchronous>, transform_indices = @transform_3, window_bounds = array<i64: 512, 256>}, {pipeline_mode = #tpu.pipeline_mode<synchronous>, transform_indices = @transform_4, window_bounds = array<i64: 1, 256>}, {transform_indices = @transform_5, window_bounds = array<i64: 1, 16, 16, 256>}]} {
    %c0 = arith.constant 0 : index
    %c0_0 = arith.constant 0 : index
    %c0_1 = arith.constant 0 : index
    %c0_2 = arith.constant 0 : index
    %0 = vector.load %arg1[%c0, %c0_0, %c0_1, %c0_2] : memref<1x16x16x256xbf16, #tpu.memory_space<vmem>>, vector<1x16x16x256xbf16>
    %1 = vector.shape_cast %0 : vector<1x16x16x256xbf16> to vector<16x16x256xbf16>
    %2 = vector.shape_cast %1 : vector<16x16x256xbf16> to vector<256x256xbf16>
    %c0_3 = arith.constant 0 : index
    %c0_4 = arith.constant 0 : index
    %3 = vector.load %arg2[%c0_3, %c0_4] : memref<256x128xbf16, #tpu.memory_space<vmem>>, vector<256x128xbf16>
    %cst = arith.constant dense<0.000000e+00> : vector<256x128xf32>
    %4 = tpu.matmul %2, %3, %cst {dimension_numbers = #tpu.dot_dimension_numbers<[1], [0], [0], [1], [0, 0, 1, 1], [], []>} : vector<256x256xbf16>, vector<256x128xbf16>, vector<256x128xf32> -> vector<256x128xf32>
    %c0_5 = arith.constant 0 : index
    %c0_6 = arith.constant 0 : index
    %5 = vector.load %arg3[%c0_5, %c0_6] : memref<1x128xf32, #tpu.memory_space<vmem>>, vector<1x128xf32>
    %6 = vector.broadcast %5 : vector<1x128xf32> to vector<256x128xf32>
    %7 = arith.addf %4, %6 : vector<256x128xf32>
    %cst_7 = arith.constant 0.000000e+00 : f32
    %8 = vector.broadcast %cst_7 : f32 to vector<256x128xf32>
    %9 = arith.subf %8, %7 : vector<256x128xf32>
    %10 = math.exp %9 : vector<256x128xf32>
    %cst_8 = arith.constant 1.000000e+00 : f32
    %11 = vector.broadcast %cst_8 : f32 to vector<256x128xf32>
    %12 = arith.addf %11, %10 : vector<256x128xf32>
    %13 = tpu.reciprocal %12 : vector<256x128xf32> -> vector<256x128xf32>
    %14 = arith.mulf %7, %13 : vector<256x128xf32>
    %cst_9 = arith.constant -3.40282347E+38 : f32
    %15 = vector.broadcast %cst_9 : f32 to vector<20x20x128xf32>
    %c0_10 = arith.constant 0 : index
    %c0_11 = arith.constant 0 : index
    %c0_12 = arith.constant 0 : index
    %16 = vector.load %arg7[%c0_10, %c0_11, %c0_12] : memref<20x20x128xf32, #tpu.memory_space<vmem>>, vector<20x20x128xf32>
    tpu.vector_store %arg7[%c0_10, %c0_11, %c0_12], %15 {strides = array<i32>} : memref<20x20x128xf32, #tpu.memory_space<vmem>>, vector<20x20x128xf32>,
    %17 = vector.shape_cast %14 : vector<256x128xf32> to vector<16x16x128xf32>
    %c2 = arith.constant 2 : index
    %c2_13 = arith.constant 2 : index
    %c0_14 = arith.constant 0 : index
    %18 = vector.load %arg7[%c2, %c2_13, %c0_14] : memref<20x20x128xf32, #tpu.memory_space<vmem>>, vector<16x16x128xf32>
    tpu.vector_store %arg7[%c2, %c2_13, %c0_14], %17 {strides = array<i32>} : memref<20x20x128xf32, #tpu.memory_space<vmem>>, vector<16x16x128xf32>,
    %c0_15 = arith.constant 0 : index
    %c0_16 = arith.constant 0 : index
    %c0_17 = arith.constant 0 : index
    %19 = vector.load %arg7[%c0_15, %c0_16, %c0_17] : memref<20x20x128xf32, #tpu.memory_space<vmem>>, vector<20x16x128xf32>
    %c0_18 = arith.constant 0 : index
    %c1 = arith.constant 1 : index
    %c0_19 = arith.constant 0 : index
    %20 = vector.load %arg7[%c0_18, %c1, %c0_19] : memref<20x20x128xf32, #tpu.memory_space<vmem>>, vector<20x16x128xf32>
    %21 = arith.maximumf %19, %20 : vector<20x16x128xf32>
    %c0_20 = arith.constant 0 : index
    %c2_21 = arith.constant 2 : index
    %c0_22 = arith.constant 0 : index
    %22 = vector.load %arg7[%c0_20, %c2_21, %c0_22] : memref<20x20x128xf32, #tpu.memory_space<vmem>>, vector<20x16x128xf32>
    %23 = arith.maximumf %21, %22 : vector<20x16x128xf32>
    %c0_23 = arith.constant 0 : index
    %c3 = arith.constant 3 : index
    %c0_24 = arith.constant 0 : index
    %24 = vector.load %arg7[%c0_23, %c3, %c0_24] : memref<20x20x128xf32, #tpu.memory_space<vmem>>, vector<20x16x128xf32>
    %25 = arith.maximumf %23, %24 : vector<20x16x128xf32>
    %c0_25 = arith.constant 0 : index
    %c4 = arith.constant 4 : index
    %c0_26 = arith.constant 0 : index
    %26 = vector.load %arg7[%c0_25, %c4, %c0_26] : memref<20x20x128xf32, #tpu.memory_space<vmem>>, vector<20x16x128xf32>
    %27 = arith.maximumf %25, %26 : vector<20x16x128xf32>
    %28 = vector.extract_strided_slice %27 {offsets = [0, 0, 0], sizes = [16, 16, 128], strides = [1, 1, 1]} : vector<20x16x128xf32> to vector<16x16x128xf32>
    %29 = vector.extract_strided_slice %27 {offsets = [1, 0, 0], sizes = [16, 16, 128], strides = [1, 1, 1]} : vector<20x16x128xf32> to vector<16x16x128xf32>
    %30 = arith.maximumf %28, %29 : vector<16x16x128xf32>
    %31 = vector.extract_strided_slice %27 {offsets = [2, 0, 0], sizes = [16, 16, 128], strides = [1, 1, 1]} : vector<20x16x128xf32> to vector<16x16x128xf32>
    %32 = arith.maximumf %30, %31 : vector<16x16x128xf32>
    %33 = vector.extract_strided_slice %27 {offsets = [3, 0, 0], sizes = [16, 16, 128], strides = [1, 1, 1]} : vector<20x16x128xf32> to vector<16x16x128xf32>
    %34 = arith.maximumf %32, %33 : vector<16x16x128xf32>
    %35 = vector.extract_strided_slice %27 {offsets = [4, 0, 0], sizes = [16, 16, 128], strides = [1, 1, 1]} : vector<20x16x128xf32> to vector<16x16x128xf32>
    %36 = arith.maximumf %34, %35 : vector<16x16x128xf32>
    %c2_27 = arith.constant 2 : index
    %c2_28 = arith.constant 2 : index
    %c0_29 = arith.constant 0 : index
    %37 = vector.load %arg7[%c2_27, %c2_28, %c0_29] : memref<20x20x128xf32, #tpu.memory_space<vmem>>, vector<16x16x128xf32>
    tpu.vector_store %arg7[%c2_27, %c2_28, %c0_29], %36 {strides = array<i32>} : memref<20x20x128xf32, #tpu.memory_space<vmem>>, vector<16x16x128xf32>,
    %c0_30 = arith.constant 0 : index
    %c0_31 = arith.constant 0 : index
    %c0_32 = arith.constant 0 : index
    %38 = vector.load %arg7[%c0_30, %c0_31, %c0_32] : memref<20x20x128xf32, #tpu.memory_space<vmem>>, vector<20x16x128xf32>
    %c0_33 = arith.constant 0 : index
    %c1_34 = arith.constant 1 : index
    %c0_35 = arith.constant 0 : index
    %39 = vector.load %arg7[%c0_33, %c1_34, %c0_35] : memref<20x20x128xf32, #tpu.memory_space<vmem>>, vector<20x16x128xf32>
    %40 = arith.maximumf %38, %39 : vector<20x16x128xf32>
    %c0_36 = arith.constant 0 : index
    %c2_37 = arith.constant 2 : index
    %c0_38 = arith.constant 0 : index
    %41 = vector.load %arg7[%c0_36, %c2_37, %c0_38] : memref<20x20x128xf32, #tpu.memory_space<vmem>>, vector<20x16x128xf32>
    %42 = arith.maximumf %40, %41 : vector<20x16x128xf32>
    %c0_39 = arith.constant 0 : index
    %c3_40 = arith.constant 3 : index
    %c0_41 = arith.constant 0 : index
    %43 = vector.load %arg7[%c0_39, %c3_40, %c0_41] : memref<20x20x128xf32, #tpu.memory_space<vmem>>, vector<20x16x128xf32>
    %44 = arith.maximumf %42, %43 : vector<20x16x128xf32>
    %c0_42 = arith.constant 0 : index
    %c4_43 = arith.constant 4 : index
    %c0_44 = arith.constant 0 : index
    %45 = vector.load %arg7[%c0_42, %c4_43, %c0_44] : memref<20x20x128xf32, #tpu.memory_space<vmem>>, vector<20x16x128xf32>
    %46 = arith.maximumf %44, %45 : vector<20x16x128xf32>
    %47 = vector.extract_strided_slice %46 {offsets = [0, 0, 0], sizes = [16, 16, 128], strides = [1, 1, 1]} : vector<20x16x128xf32> to vector<16x16x128xf32>
    %48 = vector.extract_strided_slice %46 {offsets = [1, 0, 0], sizes = [16, 16, 128], strides = [1, 1, 1]} : vector<20x16x128xf32> to vector<16x16x128xf32>
    %49 = arith.maximumf %47, %48 : vector<16x16x128xf32>
    %50 = vector.extract_strided_slice %46 {offsets = [2, 0, 0], sizes = [16, 16, 128], strides = [1, 1, 1]} : vector<20x16x128xf32> to vector<16x16x128xf32>
    %51 = arith.maximumf %49, %50 : vector<16x16x128xf32>
    %52 = vector.extract_strided_slice %46 {offsets = [3, 0, 0], sizes = [16, 16, 128], strides = [1, 1, 1]} : vector<20x16x128xf32> to vector<16x16x128xf32>
    %53 = arith.maximumf %51, %52 : vector<16x16x128xf32>
    %54 = vector.extract_strided_slice %46 {offsets = [4, 0, 0], sizes = [16, 16, 128], strides = [1, 1, 1]} : vector<20x16x128xf32> to vector<16x16x128xf32>
    %55 = arith.maximumf %53, %54 : vector<16x16x128xf32>
    %c2_45 = arith.constant 2 : index
    %c2_46 = arith.constant 2 : index
    %c0_47 = arith.constant 0 : index
    %56 = vector.load %arg7[%c2_45, %c2_46, %c0_47] : memref<20x20x128xf32, #tpu.memory_space<vmem>>, vector<16x16x128xf32>
    tpu.vector_store %arg7[%c2_45, %c2_46, %c0_47], %55 {strides = array<i32>} : memref<20x20x128xf32, #tpu.memory_space<vmem>>, vector<16x16x128xf32>,
    %c0_48 = arith.constant 0 : index
    %c0_49 = arith.constant 0 : index
    %c0_50 = arith.constant 0 : index
    %57 = vector.load %arg7[%c0_48, %c0_49, %c0_50] : memref<20x20x128xf32, #tpu.memory_space<vmem>>, vector<20x16x128xf32>
    %c0_51 = arith.constant 0 : index
    %c1_52 = arith.constant 1 : index
    %c0_53 = arith.constant 0 : index
    %58 = vector.load %arg7[%c0_51, %c1_52, %c0_53] : memref<20x20x128xf32, #tpu.memory_space<vmem>>, vector<20x16x128xf32>
    %59 = arith.maximumf %57, %58 : vector<20x16x128xf32>
    %c0_54 = arith.constant 0 : index
    %c2_55 = arith.constant 2 : index
    %c0_56 = arith.constant 0 : index
    %60 = vector.load %arg7[%c0_54, %c2_55, %c0_56] : memref<20x20x128xf32, #tpu.memory_space<vmem>>, vector<20x16x128xf32>
    %61 = arith.maximumf %59, %60 : vector<20x16x128xf32>
    %c0_57 = arith.constant 0 : index
    %c3_58 = arith.constant 3 : index
    %c0_59 = arith.constant 0 : index
    %62 = vector.load %arg7[%c0_57, %c3_58, %c0_59] : memref<20x20x128xf32, #tpu.memory_space<vmem>>, vector<20x16x128xf32>
    %63 = arith.maximumf %61, %62 : vector<20x16x128xf32>
    %c0_60 = arith.constant 0 : index
    %c4_61 = arith.constant 4 : index
    %c0_62 = arith.constant 0 : index
    %64 = vector.load %arg7[%c0_60, %c4_61, %c0_62] : memref<20x20x128xf32, #tpu.memory_space<vmem>>, vector<20x16x128xf32>
    %65 = arith.maximumf %63, %64 : vector<20x16x128xf32>
    %66 = vector.extract_strided_slice %65 {offsets = [0, 0, 0], sizes = [16, 16, 128], strides = [1, 1, 1]} : vector<20x16x128xf32> to vector<16x16x128xf32>
    %67 = vector.extract_strided_slice %65 {offsets = [1, 0, 0], sizes = [16, 16, 128], strides = [1, 1, 1]} : vector<20x16x128xf32> to vector<16x16x128xf32>
    %68 = arith.maximumf %66, %67 : vector<16x16x128xf32>
    %69 = vector.extract_strided_slice %65 {offsets = [2, 0, 0], sizes = [16, 16, 128], strides = [1, 1, 1]} : vector<20x16x128xf32> to vector<16x16x128xf32>
    %70 = arith.maximumf %68, %69 : vector<16x16x128xf32>
    %71 = vector.extract_strided_slice %65 {offsets = [3, 0, 0], sizes = [16, 16, 128], strides = [1, 1, 1]} : vector<20x16x128xf32> to vector<16x16x128xf32>
    %72 = arith.maximumf %70, %71 : vector<16x16x128xf32>
    %73 = vector.extract_strided_slice %65 {offsets = [4, 0, 0], sizes = [16, 16, 128], strides = [1, 1, 1]} : vector<20x16x128xf32> to vector<16x16x128xf32>
    %74 = arith.maximumf %72, %73 : vector<16x16x128xf32>
    %75 = arith.truncf %14 : vector<256x128xf32> to vector<256x128xbf16>
    %76 = vector.shape_cast %36 : vector<16x16x128xf32> to vector<256x128xf32>
    %77 = arith.truncf %76 : vector<256x128xf32> to vector<256x128xbf16>
    %78 = vector.shape_cast %55 : vector<16x16x128xf32> to vector<256x128xf32>
    %79 = arith.truncf %78 : vector<256x128xf32> to vector<256x128xbf16>
    %80 = vector.shape_cast %74 : vector<16x16x128xf32> to vector<256x128xf32>
    %81 = arith.truncf %80 : vector<256x128xf32> to vector<256x128xbf16>
    %82 = tpu.concatenate %75, %77, %79, %81 in 1 : vector<256x128xbf16>, vector<256x128xbf16>, vector<256x128xbf16>, vector<256x128xbf16> -> vector<256x512xbf16>
    %c0_63 = arith.constant 0 : index
    %c0_64 = arith.constant 0 : index
    %83 = vector.load %arg4[%c0_63, %c0_64] : memref<512x256xbf16, #tpu.memory_space<vmem>>, vector<512x256xbf16>
    %cst_65 = arith.constant dense<0.000000e+00> : vector<256x256xf32>
    %84 = tpu.matmul %82, %83, %cst_65 {dimension_numbers = #tpu.dot_dimension_numbers<[1], [0], [0], [1], [0, 0, 1, 1], [], []>} : vector<256x512xbf16>, vector<512x256xbf16>, vector<256x256xf32> -> vector<256x256xf32>
    %c0_66 = arith.constant 0 : index
    %c0_67 = arith.constant 0 : index
    %85 = vector.load %arg5[%c0_66, %c0_67] : memref<1x256xf32, #tpu.memory_space<vmem>>, vector<1x256xf32>
    %86 = vector.broadcast %85 : vector<1x256xf32> to vector<256x256xf32>
    %87 = arith.addf %84, %86 : vector<256x256xf32>
    %cst_68 = arith.constant 0.000000e+00 : f32
    %88 = vector.broadcast %cst_68 : f32 to vector<256x256xf32>
    %89 = arith.subf %88, %87 : vector<256x256xf32>
    %90 = math.exp %89 : vector<256x256xf32>
    %cst_69 = arith.constant 1.000000e+00 : f32
    %91 = vector.broadcast %cst_69 : f32 to vector<256x256xf32>
    %92 = arith.addf %91, %90 : vector<256x256xf32>
    %93 = tpu.reciprocal %92 : vector<256x256xf32> -> vector<256x256xf32>
    %94 = arith.mulf %87, %93 : vector<256x256xf32>
    %95 = vector.shape_cast %94 : vector<256x256xf32> to vector<16x16x256xf32>
    %c0_70 = arith.constant 0 : index
    %c0_71 = arith.constant 0 : index
    %c0_72 = arith.constant 0 : index
    %c0_73 = arith.constant 0 : index
    %96 = vector.load %arg6[%c0_70, %c0_71, %c0_72, %c0_73] : memref<1x16x16x256xf32, #tpu.memory_space<vmem>>, vector<1x16x16x256xf32>
    %97 = vector.shape_cast %96 : vector<1x16x16x256xf32> to vector<16x16x256xf32>
    %98 = vector.shape_cast %95 : vector<16x16x256xf32> to vector<1x16x16x256xf32>
    tpu.vector_store %arg6[%c0_70, %c0_71, %c0_72, %c0_73], %98 {strides = array<i32>} : memref<1x16x16x256xf32, #tpu.memory_space<vmem>>, vector<1x16x16x256xf32>,
    return
  }
  func.func @transform_0(%arg0: i32) -> (i32, i32, i32, i32) {
    %c0_i32 = arith.constant 0 : i32
    %c0_i32_0 = arith.constant 0 : i32
    %c0_i32_1 = arith.constant 0 : i32
    %c0_i32_2 = arith.constant 0 : i32
    return %arg0, %c0_i32, %c0_i32_0, %c0_i32_1 : i32, i32, i32, i32
  }
  func.func @transform_1(%arg0: i32) -> (i32, i32) {
    %c0_i32 = arith.constant 0 : i32
    %c0_i32_0 = arith.constant 0 : i32
    %c0_i32_1 = arith.constant 0 : i32
    return %c0_i32, %c0_i32_0 : i32, i32
  }
  func.func @transform_2(%arg0: i32) -> (i32, i32) {
    %c0_i32 = arith.constant 0 : i32
    %c0_i32_0 = arith.constant 0 : i32
    %c0_i32_1 = arith.constant 0 : i32
    return %c0_i32, %c0_i32_0 : i32, i32
  }
  func.func @transform_3(%arg0: i32) -> (i32, i32) {
    %c0_i32 = arith.constant 0 : i32
    %c0_i32_0 = arith.constant 0 : i32
    %c0_i32_1 = arith.constant 0 : i32
    return %c0_i32, %c0_i32_0 : i32, i32
  }
  func.func @transform_4(%arg0: i32) -> (i32, i32) {
    %c0_i32 = arith.constant 0 : i32
    %c0_i32_0 = arith.constant 0 : i32
    %c0_i32_1 = arith.constant 0 : i32
    return %c0_i32, %c0_i32_0 : i32, i32
  }
  func.func @transform_5(%arg0: i32) -> (i32, i32, i32, i32) {
    %c0_i32 = arith.constant 0 : i32
    %c0_i32_0 = arith.constant 0 : i32
    %c0_i32_1 = arith.constant 0 : i32
    %c0_i32_2 = arith.constant 0 : i32
    return %arg0, %c0_i32, %c0_i32_0, %c0_i32_1 : i32, i32, i32, i32
  }
}

</mosaic_0001>

<llo_original>
// kernel: tpu_custom_call.1
$region0: #{tpu_custom_call.1}
  #allocation0 [shape = 'u32[]', space=smem, size = 0x4, offset = 0x4, fixed_abs, tag = 'smem constant byte address 0x4 - core index']
  #allocation1 [shape = 'u32[144,128]{1,0:T(1,128)}', space=vmem, size = 0x12000, scoped, tag = 'internal scratch']
  #allocation2 [shape = 'f32[20,20,128]{2,1,0:T(8,128)}', space=vmem, size = 0x3c000, scoped, tag = 'scratch operand']
  %s0 = inlined_call_operand.hbm [shape: bf16[2,16,16,256], index: 0, kind: input, shape index: {}]
  %s1 = inlined_call_operand.hbm [shape: bf16[256,128], index: 1, kind: input, shape index: {}]
  %s2 = inlined_call_operand.vmem [shape: f32[1,128], index: 2, kind: input, shape index: {}]
  %s3 = inlined_call_operand.hbm [shape: bf16[512,256], index: 3, kind: input, shape index: {}]
  %s4 = inlined_call_operand.vmem [shape: f32[1,256], index: 4, kind: input, shape index: {}]
  %s5 = inlined_call_operand.hbm [shape: f32[2,16,16,256], index: 5, kind: output, shape index: {}]
  %s6 = sld [smem:[#allocation0]]
  $region65: #{tpu_custom_call.1} parent=0
    _
  %s8 = ssub.s32 1, %s6
  %s9 = scalar_select 0, %s8, %s6
  $region1: #{tpu_custom_call.1} parent=0
    #allocation3 [shape = 'u8[262144]{0}', space=vmem, size = 0x40000, scoped, tag = 'input window, operand 0']
    #allocation4 [shape = 's32[2]{0}', space=sflag, size = 0x8, scoped, tag = 'scoped memory for tpu_custom_call.1']
    #allocation5 [shape = 's32[2]{0}', space=sflag, size = 0x8, scoped, tag = 'scoped memory for tpu_custom_call.1']
    #allocation6 [shape = 'u8[65536]{0}', space=vmem, size = 0x10000, scoped, tag = 'input window, operand 1, single buffered']
    #allocation7 [shape = 's32[1]{0}', space=sflag, size = 0x4, scoped, tag = 'scoped memory for tpu_custom_call.1']
    #allocation8 [shape = 'u8[262144]{0}', space=vmem, size = 0x40000, scoped, tag = 'input window, operand 3, single buffered']
    #allocation9 [shape = 'u8[524288]{0}', space=vmem, size = 0x80000, scoped, tag = 'output window, operand 0']
    %10 = vsyncpa [#allocation4], 0
    %s11 = scalar_lea.sflag [#allocation4], 1
    %12 = vsyncpa %s11, 0
    %13 = vsyncpa [#allocation7], 0
    %14 = vsyncpa [#allocation5], 0
    %s15 = scalar_lea.sflag [#allocation5], 1
    %16 = vsyncpa %s15, 0
    loop: start=0, step=1, limit=4
    $region2: #{tpu_custom_call.1} parent=1 // loop_pre_header
      _
    $region3: #{tpu_custom_call.1} parent=1 // loop_header
      %s18 = sphi 0, %s22
      %p19 = scmp.ge.s32.totalorder %s18, 4
      %s28 = sphi 0, %s30
      %s31 = sphi 0, %s28
      %s32 = sphi 0, %s31
      %s48 = sphi 0, %s32
      %s52 = sphi 0, %s52
      %s54 = sphi 0, %s52
      %s55 = sphi 0, %s54
      %s69 = sphi 0, %s55
      %s73 = sphi 0, %s73
      %s75 = sphi 0, %s73
      %s76 = sphi 0, %s75
      %s90 = sphi 0, %s76
      %s94 = sphi 0, %s94
      %s96 = sphi 0, %s94
      %s97 = sphi 0, %s96
      %s111 = sphi 0, %s97
      %s115 = sphi 0, %s115
      %s117 = sphi 0, %s115
      %s118 = sphi 0, %s117
      %s132 = sphi 0, %s118
      %s138 = sphi 0, %s140
      %s141 = sphi 0, %s138
      %s142 = sphi 0, %s141
      %s158 = sphi 0, %s142
    $region4: #{tpu_custom_call.1} parent=1 // loop_header_branch
      %21 = sbr.rel (%p19) target = $region8
    $region5: #{tpu_custom_call.1} parent=1 // loop_body
      %s23 = ssub.s32 %s18, 1
      %s24 = ssub.s32 %s18, 2
      %s25 = sadd.s32 %s18, 1
      %s26 = ssub.s32 %s18, %s25
      %p27 = scmp.eq.s32.totalorder %s26, 0
      %s29 = sadd.s32 %s28, 1
      %s30 = scalar_select %p27, %s28, %s29
      %p33 = pneg %p27
      %p34 = scmp.eq.s32.totalorder %s18, 1
      %p35 = por %p33, %p34
      %p36 = scmp.ne.s32.totalorder %s28, %s31
      %p37 = scmp.eq.s32.totalorder %s18, 0
      %p38 = por %p36, %p37
      %p39 = scmp.ne.s32.totalorder %s28, %s31
      %p40 = scmp.eq.s32.totalorder %s23, 1
      %p41 = por %p39, %p40
      %p42 = scmp.ne.s32.totalorder %s31, %s32
      %p43 = scmp.eq.s32.totalorder %s23, 0
      %p44 = por %p42, %p43
      %p45 = scmp.ne.s32.totalorder %s31, %s32
      %p46 = scmp.eq.s32.totalorder %s24, 1
      %p47 = por %p45, %p46
      %p49 = scmp.ne.s32.totalorder %s32, %s48
      %p50 = scmp.eq.s32.totalorder %s24, 0
      %p51 = por %p49, %p50
      %s53 = sadd.s32 %s52, 1
      %p56 = scmp.eq.s32.totalorder %s18, 1
      %p57 = scmp.ne.s32.totalorder %s52, %s54
      %p58 = scmp.eq.s32.totalorder %s18, 0
      %p59 = por %p57, %p58
      %p60 = scmp.ne.s32.totalorder %s52, %s54
      %p61 = scmp.eq.s32.totalorder %s23, 1
      %p62 = por %p60, %p61
      %p63 = scmp.ne.s32.totalorder %s54, %s55
      %p64 = scmp.eq.s32.totalorder %s23, 0
      %p65 = por %p63, %p64
      %p66 = scmp.ne.s32.totalorder %s54, %s55
      %p67 = scmp.eq.s32.totalorder %s24, 1
      %p68 = por %p66, %p67
      %p70 = scmp.ne.s32.totalorder %s55, %s69
      %p71 = scmp.eq.s32.totalorder %s24, 0
      %p72 = por %p70, %p71
      %s74 = sadd.s32 %s73, 1
      %p77 = scmp.eq.s32.totalorder %s18, 1
      %p78 = scmp.ne.s32.totalorder %s73, %s75
      %p79 = scmp.eq.s32.totalorder %s18, 0
      %p80 = por %p78, %p79
      %p81 = scmp.ne.s32.totalorder %s73, %s75
      %p82 = scmp.eq.s32.totalorder %s23, 1
      %p83 = por %p81, %p82
      %p84 = scmp.ne.s32.totalorder %s75, %s76
      %p85 = scmp.eq.s32.totalorder %s23, 0
      %p86 = por %p84, %p85
      %p87 = scmp.ne.s32.totalorder %s75, %s76
      %p88 = scmp.eq.s32.totalorder %s24, 1
      %p89 = por %p87, %p88
      %p91 = scmp.ne.s32.totalorder %s76, %s90
      %p92 = scmp.eq.s32.totalorder %s24, 0
      %p93 = por %p91, %p92
      %s95 = sadd.s32 %s94, 1
      %p98 = scmp.eq.s32.totalorder %s18, 1
      %p99 = scmp.ne.s32.totalorder %s94, %s96
      %p100 = scmp.eq.s32.totalorder %s18, 0
      %p101 = por %p99, %p100
      %p102 = scmp.ne.s32.totalorder %s94, %s96
      %p103 = scmp.eq.s32.totalorder %s23, 1
      %p104 = por %p102, %p103
      %p105 = scmp.ne.s32.totalorder %s96, %s97
      %p106 = scmp.eq.s32.totalorder %s23, 0
      %p107 = por %p105, %p106
      %p108 = scmp.ne.s32.totalorder %s96, %s97
      %p109 = scmp.eq.s32.totalorder %s24, 1
      %p110 = por %p108, %p109
      %p112 = scmp.ne.s32.totalorder %s97, %s111
      %p113 = scmp.eq.s32.totalorder %s24, 0
      %p114 = por %p112, %p113
      %s116 = sadd.s32 %s115, 1
      %p119 = scmp.eq.s32.totalorder %s18, 1
      %p120 = scmp.ne.s32.totalorder %s115, %s117
      %p121 = scmp.eq.s32.totalorder %s18, 0
      %p122 = por %p120, %p121
      %p123 = scmp.ne.s32.totalorder %s115, %s117
      %p124 = scmp.eq.s32.totalorder %s23, 1
      %p125 = por %p123, %p124
      %p126 = scmp.ne.s32.totalorder %s117, %s118
      %p127 = scmp.eq.s32.totalorder %s23, 0
      %p128 = por %p126, %p127
      %p129 = scmp.ne.s32.totalorder %s117, %s118
      %p130 = scmp.eq.s32.totalorder %s24, 1
      %p131 = por %p129, %p130
      %p133 = scmp.ne.s32.totalorder %s118, %s132
      %p134 = scmp.eq.s32.totalorder %s24, 0
      %p135 = por %p133, %p134
      %s136 = ssub.s32 %s18, %s25
      %p137 = scmp.eq.s32.totalorder %s136, 0
      %s139 = sadd.s32 %s138, 1
      %s140 = scalar_select %p137, %s138, %s139
      %p143 = pneg %p137
      %p144 = scmp.eq.s32.totalorder %s18, 1
      %p145 = por %p143, %p144
      %p146 = scmp.ne.s32.totalorder %s138, %s141
      %p147 = scmp.eq.s32.totalorder %s18, 0
      %p148 = por %p146, %p147
      %p149 = scmp.ne.s32.totalorder %s138, %s141
      %p150 = scmp.eq.s32.totalorder %s23, 1
      %p151 = por %p149, %p150
      %p152 = scmp.ne.s32.totalorder %s141, %s142
      %p153 = scmp.eq.s32.totalorder %s23, 0
      %p154 = por %p152, %p153
      %p155 = scmp.ne.s32.totalorder %s141, %s142
      %p156 = scmp.eq.s32.totalorder %s24, 1
      %p157 = por %p155, %p156
      %p159 = scmp.ne.s32.totalorder %s142, %s158
      %p160 = scmp.eq.s32.totalorder %s24, 0
      %p161 = por %p159, %p160
      %p162 = scmp.le.s32.totalorder 1, %s18
      %p163 = scmp.lt.s32.totalorder %s18, 3
      %p164 = pnand %p162, %p163
      %p165 = pneg %p164
      // Predicated region
      $region9: #{tpu_custom_call.1} parent=5 // pred_check
        _
      $region10: #{tpu_custom_call.1} parent=5 // pred_check_branch
        %167 = sbr.rel (%p164) target = $region12
      $region11: #{tpu_custom_call.1} parent=5 // pred_region
        %s168 = ssub.s32 %s18, 1
        // Predicated region
        $region13: #{tpu_custom_call.1} parent=11 // pred_check
          %p169 = pneg %p65
        $region14: #{tpu_custom_call.1} parent=11 // pred_check_branch
          %171 = sbr.rel (%p169) target = $region16
        $region15: #{tpu_custom_call.1} parent=11 // pred_region
          %s173 = ssub.s32 2048, 2048
          %174 = vsyncadd [#allocation7], %s173
          %s175 = sshll.u32 [#allocation6], 4
          %s176 = int_to_ptr.vmem [resolvable:$true] %s175
          %181 = dma.hbm_to_vmem [thread:$0]  %s1, 2048, %s176, [#allocation7], 64, 64, 4
        $region16: #{tpu_custom_call.1} parent=11 // pred_fallthru
          _
        // Predicated region
        $region17: #{tpu_custom_call.1} parent=11 // pred_check
          %p182 = pneg %p86
        $region18: #{tpu_custom_call.1} parent=11 // pred_check_branch
          %184 = sbr.rel (%p182) target = $region20
        $region19: #{tpu_custom_call.1} parent=11 // pred_region
          _
        $region20: #{tpu_custom_call.1} parent=11 // pred_fallthru
          _
        // Predicated region
        $region21: #{tpu_custom_call.1} parent=11 // pred_check
          %p185 = pneg %p107
        $region22: #{tpu_custom_call.1} parent=11 // pred_check_branch
          %187 = sbr.rel (%p185) target = $region24
        $region23: #{tpu_custom_call.1} parent=11 // pred_region
          %s189 = ssub.s32 8192, 8192
          %190 = vsyncadd [#allocation7], %s189
          %s191 = sshll.u32 [#allocation8], 4
          %s192 = int_to_ptr.vmem [resolvable:$true] %s191
          %197 = dma.hbm_to_vmem [thread:$0]  %s3, 8192, %s192, [#allocation7], 128, 128, 8
        $region24: #{tpu_custom_call.1} parent=11 // pred_fallthru
          _
        // Predicated region
        $region25: #{tpu_custom_call.1} parent=11 // pred_check
          %p198 = pneg %p128
        $region26: #{tpu_custom_call.1} parent=11 // pred_check_branch
          %200 = sbr.rel (%p198) target = $region28
        $region27: #{tpu_custom_call.1} parent=11 // pred_region
          _
        $region28: #{tpu_custom_call.1} parent=11 // pred_fallthru
          _
      $region12: #{tpu_custom_call.1} parent=5 // pred_fallthru
        _
      %p201 = scmp.lt.s32.totalorder %s18, 2
      // Predicated region
      $region29: #{tpu_custom_call.1} parent=5 // pred_check
        %p202 = pneg %p201
      $region30: #{tpu_custom_call.1} parent=5 // pred_check_branch
        %204 = sbr.rel (%p202) target = $region32
      $region31: #{tpu_custom_call.1} parent=5 // pred_region
        // Predicated region
        $region33: #{tpu_custom_call.1} parent=31 // pred_check
          %p205 = pneg %p38
        $region34: #{tpu_custom_call.1} parent=31 // pred_check_branch
          %207 = sbr.rel (%p205) target = $region36
        $region35: #{tpu_custom_call.1} parent=31 // pred_region
          %s208 = sand.u32 %s28, 1
          %s209 = scalar_lea.sflag [#allocation4], %s208
          %s210 = sand.u32 %s28, 1
          %s211 = smul.addr %s210, 256
          %s212 = scalar_lea.vmem [#allocation3], %s211
          %s214 = ssub.s32 4096, 4096
          %215 = vsyncadd %s209, %s214
          %s216 = smul.addr %s18, 64
          %s217 = smul.addr %s216, 64
          %s218 = scalar_lea.hbm %s0, %s217
          %s219 = sshll.u32 %s212, 4
          %s220 = int_to_ptr.vmem [resolvable:$true] %s219
          %225 = dma.hbm_to_vmem [thread:$0]  %s218, 4096, %s220, %s209, 128, 128, 8
        $region36: #{tpu_custom_call.1} parent=31 // pred_fallthru
          _
      $region32: #{tpu_custom_call.1} parent=5 // pred_fallthru
        _
      %p226 = scmp.le.s32.totalorder 1, %s18
      %p227 = scmp.lt.s32.totalorder %s18, 3
      %p228 = pnand %p226, %p227
      %p229 = pneg %p228
      // Predicated region
      $region37: #{tpu_custom_call.1} parent=5 // pred_check
        _
      $region38: #{tpu_custom_call.1} parent=5 // pred_check_branch
        %231 = sbr.rel (%p228) target = $region40
      $region39: #{tpu_custom_call.1} parent=5 // pred_region
        %s232 = ssub.s32 %s18, 1
        %s233 = sand.u32 %s31, 1
        %s234 = scalar_lea.sflag [#allocation4], %s233
        %s235 = sand.u32 %s31, 1
        %s236 = smul.addr %s235, 256
        %s237 = scalar_lea.vmem [#allocation3], %s236
        // Predicated region
        $region41: #{tpu_custom_call.1} parent=39 // pred_check
          %p238 = pneg %p44
        $region42: #{tpu_custom_call.1} parent=39 // pred_check_branch
          %240 = sbr.rel (%p238) target = $region44
        $region43: #{tpu_custom_call.1} parent=39 // pred_region
          %241 = dma.done %s234, 4096
        $region44: #{tpu_custom_call.1} parent=39 // pred_fallthru
          _
        // Predicated region
        $region45: #{tpu_custom_call.1} parent=39 // pred_check
          %p242 = pneg %p65
        $region46: #{tpu_custom_call.1} parent=39 // pred_check_branch
          %244 = sbr.rel (%p242) target = $region48
        $region47: #{tpu_custom_call.1} parent=39 // pred_region
          %245 = dma.done [#allocation7], 2048
        $region48: #{tpu_custom_call.1} parent=39 // pred_fallthru
          _
        // Predicated region
        $region49: #{tpu_custom_call.1} parent=39 // pred_check
          %p246 = pneg %p107
        $region50: #{tpu_custom_call.1} parent=39 // pred_check_branch
          %248 = sbr.rel (%p246) target = $region52
        $region51: #{tpu_custom_call.1} parent=39 // pred_region
          %249 = dma.done [#allocation7], 8192
        $region52: #{tpu_custom_call.1} parent=39 // pred_fallthru
          _
        %s250 = sand.u32 %s31, 1
        %s251 = scalar_lea.sflag [#allocation4], %s250
        %s252 = sand.u32 %s31, 1
        %s253 = smul.addr %s252, 256
        %s254 = scalar_lea.vmem [#allocation3], %s253
        %p255 = pneg %p44
        %p256 = pneg %p41
        %p257 = pneg %p65
        %p258 = pneg %p62
        %p259 = pneg %p86
        %p260 = pneg %p83
        %p261 = pneg %p107
        %p262 = pneg %p104
        %p263 = pneg %p128
        %p264 = pneg %p125
        %p265 = pneg %p154
        %p266 = pneg %p151
        %s267 = sand.u32 %s141, 1
        %s268 = scalar_lea.sflag [#allocation5], %s267
        %s269 = sand.u32 %s141, 1
        %s270 = smul.addr %s269, 512
        %s271 = scalar_lea.vmem [#allocation9], %s270
        %v273 = vld [vmem:[%s237] sm:$0xff]
        %v274 = vld [vmem:[%s237 + $0x8] sm:$0xff]
        %v275 = vld [vmem:[%s237 + $0x10] sm:$0xff]
        %v276 = vld [vmem:[%s237 + $0x18] sm:$0xff]
        %v277 = vld [vmem:[%s237 + $0x20] sm:$0xff]
        %v278 = vld [vmem:[%s237 + $0x28] sm:$0xff]
        %v279 = vld [vmem:[%s237 + $0x30] sm:$0xff]
        %v280 = vld [vmem:[%s237 + $0x38] sm:$0xff]
        %v281 = vld [vmem:[%s237 + $0x40] sm:$0xff]
        %v282 = vld [vmem:[%s237 + $0x48] sm:$0xff]
        %v283 = vld [vmem:[%s237 + $0x50] sm:$0xff]
        %v284 = vld [vmem:[%s237 + $0x58] sm:$0xff]
        %v285 = vld [vmem:[%s237 + $0x60] sm:$0xff]
        %v286 = vld [vmem:[%s237 + $0x68] sm:$0xff]
        %v287 = vld [vmem:[%s237 + $0x70] sm:$0xff]
        %v288 = vld [vmem:[%s237 + $0x78] sm:$0xff]
        %v289 = vld [vmem:[%s237 + $0x80] sm:$0xff]
        %v290 = vld [vmem:[%s237 + $0x88] sm:$0xff]
        %v291 = vld [vmem:[%s237 + $0x90] sm:$0xff]
        %v292 = vld [vmem:[%s237 + $0x98] sm:$0xff]
        %v293 = vld [vmem:[%s237 + $0xa0] sm:$0xff]
        %v294 = vld [vmem:[%s237 + $0xa8] sm:$0xff]
        %v295 = vld [vmem:[%s237 + $0xb0] sm:$0xff]
        %v296 = vld [vmem:[%s237 + $0xb8] sm:$0xff]
        %v297 = vld [vmem:[%s237 + $0xc0] sm:$0xff]
        %v298 = vld [vmem:[%s237 + $0xc8] sm:$0xff]
        %v299 = vld [vmem:[%s237 + $0xd0] sm:$0xff]
        %v300 = vld [vmem:[%s237 + $0xd8] sm:$0xff]
        %v301 = vld [vmem:[%s237 + $0xe0] sm:$0xff]
        %v302 = vld [vmem:[%s237 + $0xe8] sm:$0xff]
        %v303 = vld [vmem:[%s237 + $0xf0] sm:$0xff]
        %v304 = vld [vmem:[%s237 + $0xf8] sm:$0xff]
        %v305 = vld [vmem:[#allocation6] sm:$0xf]
        %v306 = vld [vmem:[#allocation6 + $0x4] sm:$0xf]
        %v307 = vld [vmem:[#allocation6 + $0x8] sm:$0xf]
        %v308 = vld [vmem:[#allocation6 + $0xc] sm:$0xf]
        %v309 = vld [vmem:[#allocation6 + $0x10] sm:$0xf]
        %v310 = vld [vmem:[#allocation6 + $0x14] sm:$0xf]
        %v311 = vld [vmem:[#allocation6 + $0x18] sm:$0xf]
        %v312 = vld [vmem:[#allocation6 + $0x1c] sm:$0xf]
        %v313 = vld [vmem:[#allocation6 + $0x20] sm:$0xf]
        %v314 = vld [vmem:[#allocation6 + $0x24] sm:$0xf]
        %v315 = vld [vmem:[#allocation6 + $0x28] sm:$0xf]
        %v316 = vld [vmem:[#allocation6 + $0x2c] sm:$0xf]
        %v317 = vld [vmem:[#allocation6 + $0x30] sm:$0xf]
        %v318 = vld [vmem:[#allocation6 + $0x34] sm:$0xf]
        %v319 = vld [vmem:[#allocation6 + $0x38] sm:$0xf]
        %v320 = vld [vmem:[#allocation6 + $0x3c] sm:$0xf]
        %v321 = vld [vmem:[#allocation6 + $0x40] sm:$0xf]
        %v322 = vld [vmem:[#allocation6 + $0x44] sm:$0xf]
        %v323 = vld [vmem:[#allocation6 + $0x48] sm:$0xf]
        %v324 = vld [vmem:[#allocation6 + $0x4c] sm:$0xf]
        %v325 = vld [vmem:[#allocation6 + $0x50] sm:$0xf]
        %v326 = vld [vmem:[#allocation6 + $0x54] sm:$0xf]
        %v327 = vld [vmem:[#allocation6 + $0x58] sm:$0xf]
        %v328 = vld [vmem:[#allocation6 + $0x5c] sm:$0xf]
        %v329 = vld [vmem:[#allocation6 + $0x60] sm:$0xf]
        %v330 = vld [vmem:[#allocation6 + $0x64] sm:$0xf]
        %v331 = vld [vmem:[#allocation6 + $0x68] sm:$0xf]
        %v332 = vld [vmem:[#allocation6 + $0x6c] sm:$0xf]
        %v333 = vld [vmem:[#allocation6 + $0x70] sm:$0xf]
        %v334 = vld [vmem:[#allocation6 + $0x74] sm:$0xf]
        %v335 = vld [vmem:[#allocation6 + $0x78] sm:$0xf]
        %v336 = vld [vmem:[#allocation6 + $0x7c] sm:$0xf]
        %v337 = vld [vmem:[%s2] sm:$0x1]
        %v339 = vlaneseq
        %v340 = vshrl.u32 %v339, 7
        %v341 = vsub.s32 0, %v340
        %v342 = vrot.slane %v337, %v341
        %v376 = vunpack.c.l.b16 %v273
        %v377 = vunpack.c.h.b16 %v273
        %v378 = vunpack.c.l.b16 %v274
        %v379 = vunpack.c.h.b16 %v274
        %v380 = vunpack.c.l.b16 %v275
        %v381 = vunpack.c.h.b16 %v275
        %v382 = vunpack.c.l.b16 %v276
        %v383 = vunpack.c.h.b16 %v276
        %v384 = vunpack.c.l.b16 %v277
        %v385 = vunpack.c.h.b16 %v277
        %v386 = vunpack.c.l.b16 %v278
        %v387 = vunpack.c.h.b16 %v278
        %v388 = vunpack.c.l.b16 %v279
        %v389 = vunpack.c.h.b16 %v279
        %v390 = vunpack.c.l.b16 %v280
        %v391 = vunpack.c.h.b16 %v280
        %v392 = vunpack.c.l.b16 %v281
        %v393 = vunpack.c.h.b16 %v281
        %v394 = vunpack.c.l.b16 %v282
        %v395 = vunpack.c.h.b16 %v282
        %v396 = vunpack.c.l.b16 %v283
        %v397 = vunpack.c.h.b16 %v283
        %v398 = vunpack.c.l.b16 %v284
        %v399 = vunpack.c.h.b16 %v284
        %v400 = vunpack.c.l.b16 %v285
        %v401 = vunpack.c.h.b16 %v285
        %v402 = vunpack.c.l.b16 %v286
        %v403 = vunpack.c.h.b16 %v286
        %v404 = vunpack.c.l.b16 %v287
        %v405 = vunpack.c.h.b16 %v287
        %v406 = vunpack.c.l.b16 %v288
        %v407 = vunpack.c.h.b16 %v288
        %v408 = vunpack.c.l.b16 %v289
        %v409 = vunpack.c.h.b16 %v289
        %v410 = vunpack.c.l.b16 %v290
        %v411 = vunpack.c.h.b16 %v290
        %v412 = vunpack.c.l.b16 %v291
        %v413 = vunpack.c.h.b16 %v291
        %v414 = vunpack.c.l.b16 %v292
        %v415 = vunpack.c.h.b16 %v292
        %v416 = vunpack.c.l.b16 %v293
        %v417 = vunpack.c.h.b16 %v293
        %v418 = vunpack.c.l.b16 %v294
        %v419 = vunpack.c.h.b16 %v294
        %v420 = vunpack.c.l.b16 %v295
        %v421 = vunpack.c.h.b16 %v295
        %v422 = vunpack.c.l.b16 %v296
        %v423 = vunpack.c.h.b16 %v296
        %v424 = vunpack.c.l.b16 %v297
        %v425 = vunpack.c.h.b16 %v297
        %v426 = vunpack.c.l.b16 %v298
        %v427 = vunpack.c.h.b16 %v298
        %v428 = vunpack.c.l.b16 %v299
        %v429 = vunpack.c.h.b16 %v299
        %v430 = vunpack.c.l.b16 %v300
        %v431 = vunpack.c.h.b16 %v300
        %v432 = vunpack.c.l.b16 %v301
        %v433 = vunpack.c.h.b16 %v301
        %v434 = vunpack.c.l.b16 %v302
        %v435 = vunpack.c.h.b16 %v302
        %v436 = vunpack.c.l.b16 %v303
        %v437 = vunpack.c.h.b16 %v303
        %v438 = vunpack.c.l.b16 %v304
        %v439 = vunpack.c.h.b16 %v304
        %v440 = vpack.c.b16 %v378, %v376
        %v441 = vpack.c.b16 %v379, %v377
        %v442 = vpack.c.b16 %v382, %v380
        %v443 = vpack.c.b16 %v383, %v381
        %v444 = vpack.c.b16 %v386, %v384
        %v445 = vpack.c.b16 %v387, %v385
        %v446 = vpack.c.b16 %v390, %v388
        %v447 = vpack.c.b16 %v391, %v389
        %v448 = vpack.c.b16 %v394, %v392
        %v449 = vpack.c.b16 %v395, %v393
        %v450 = vpack.c.b16 %v398, %v396
        %v451 = vpack.c.b16 %v399, %v397
        %v452 = vpack.c.b16 %v402, %v400
        %v453 = vpack.c.b16 %v403, %v401
        %v454 = vpack.c.b16 %v406, %v404
        %v455 = vpack.c.b16 %v407, %v405
        %v456 = vpack.c.b16 %v410, %v408
        %v457 = vpack.c.b16 %v411, %v409
        %v458 = vpack.c.b16 %v414, %v412
        %v459 = vpack.c.b16 %v415, %v413
        %v460 = vpack.c.b16 %v418, %v416
        %v461 = vpack.c.b16 %v419, %v417
        %v462 = vpack.c.b16 %v422, %v420
        %v463 = vpack.c.b16 %v423, %v421
        %v464 = vpack.c.b16 %v426, %v424
        %v465 = vpack.c.b16 %v427, %v425
        %v466 = vpack.c.b16 %v430, %v428
        %v467 = vpack.c.b16 %v431, %v429
        %v468 = vpack.c.b16 %v434, %v432
        %v469 = vpack.c.b16 %v435, %v433
        %v470 = vpack.c.b16 %v438, %v436
        %v471 = vpack.c.b16 %v439, %v437
        %v536 = vunpack.c.l.b16 %v305
        %v537 = vunpack.c.l.b16 %v306
        %v538 = vunpack.c.l.b16 %v307
        %v539 = vunpack.c.l.b16 %v308
        %v540 = vunpack.c.l.b16 %v309
        %v541 = vunpack.c.l.b16 %v310
        %v542 = vunpack.c.l.b16 %v311
        %v543 = vunpack.c.l.b16 %v312
        %v544 = vunpack.c.l.b16 %v313
        %v545 = vunpack.c.l.b16 %v314
        %v546 = vunpack.c.l.b16 %v315
        %v547 = vunpack.c.l.b16 %v316
        %v548 = vunpack.c.l.b16 %v317
        %v549 = vunpack.c.l.b16 %v318
        %v550 = vunpack.c.l.b16 %v319
        %v551 = vunpack.c.l.b16 %v320
        %v552 = vunpack.c.l.b16 %v321
        %v553 = vunpack.c.l.b16 %v322
        %v554 = vunpack.c.l.b16 %v323
        %v555 = vunpack.c.l.b16 %v324
        %v556 = vunpack.c.l.b16 %v325
        %v557 = vunpack.c.l.b16 %v326
        %v558 = vunpack.c.l.b16 %v327
        %v559 = vunpack.c.l.b16 %v328
        %v560 = vunpack.c.l.b16 %v329
        %v561 = vunpack.c.l.b16 %v330
        %v562 = vunpack.c.l.b16 %v331
        %v563 = vunpack.c.l.b16 %v332
        %v564 = vunpack.c.l.b16 %v333
        %v565 = vunpack.c.l.b16 %v334
        %v566 = vunpack.c.l.b16 %v335
        %v567 = vunpack.c.l.b16 %v336
        %v568 = vpack.c.b16 %v537, %v536
        %v569 = vpack.c.b16 %v539, %v538
        %v570 = vpack.c.b16 %v541, %v540
        %v571 = vpack.c.b16 %v543, %v542
        %v572 = vpack.c.b16 %v545, %v544
        %v573 = vpack.c.b16 %v547, %v546
        %v574 = vpack.c.b16 %v549, %v548
        %v575 = vpack.c.b16 %v551, %v550
        %v576 = vpack.c.b16 %v553, %v552
        %v577 = vpack.c.b16 %v555, %v554
        %v578 = vpack.c.b16 %v557, %v556
        %v579 = vpack.c.b16 %v559, %v558
        %v580 = vpack.c.b16 %v561, %v560
        %v581 = vpack.c.b16 %v563, %v562
        %v582 = vpack.c.b16 %v565, %v564
        %v583 = vpack.c.b16 %v567, %v566
        %600 = vmatprep.subr.bf16.mxu0 0
        %601 = vmatpush1.bf16.msra.mxu0 %v575
        %602 = vmatprep.subr.bf16.mxu0 0
        %603 = vmatpush1.bf16.msra.mxu0 %v574
        %604 = vmatprep.subr.bf16.mxu0 0
        %605 = vmatpush1.bf16.msra.mxu0 %v573
        %606 = vmatprep.subr.bf16.mxu0 0
        %607 = vmatpush1.bf16.msra.mxu0 %v572
        %608 = vmatprep.subr.bf16.mxu0 0
        %609 = vmatpush1.bf16.msra.mxu0 %v571
        %610 = vmatprep.subr.bf16.mxu0 0
        %611 = vmatpush1.bf16.msra.mxu0 %v570
        %612 = vmatprep.subr.bf16.mxu0 0
        %613 = vmatpush1.bf16.msra.mxu0 %v569
        %614 = vmatprep.subr.bf16.mxu0 0
        %615 = vmatpush1.bf16.msra.mxu0 %v568
        %616 = vmatprep.subr.bf16.mxu0 0
        %617 = vmatpush2.bf16.msra.mxu0 %v583
        %618 = vmatprep.subr.bf16.mxu0 0
        %619 = vmatpush2.bf16.msra.mxu0 %v582
        %620 = vmatprep.subr.bf16.mxu0 0
        %621 = vmatpush2.bf16.msra.mxu0 %v581
        %622 = vmatprep.subr.bf16.mxu0 0
        %623 = vmatpush2.bf16.msra.mxu0 %v580
        %624 = vmatprep.subr.bf16.mxu0 0
        %625 = vmatpush2.bf16.msra.mxu0 %v579
        %626 = vmatprep.subr.bf16.mxu0 0
        %627 = vmatpush2.bf16.msra.mxu0 %v578
        %628 = vmatprep.subr.bf16.mxu0 0
        %629 = vmatpush2.bf16.msra.mxu0 %v577
        %630 = vmatprep.subr.bf16.mxu0 0
        %631 = vmatpush2.bf16.msra.mxu0 %v576
        %632 = vmatprep.mubr.bf16.mxu0 %v441
        %633 = vmatmul.mubr.bf16.gmra.mxu0 %v440
        %v634 = vpop.f32.mrf.mxu0
        %v635 = vadd.f32 %v342, %v634
        %v636 = vpop.f32.mrf.mxu0
        %v637 = vpop.f32.mrf.mxu0
        %v638 = vadd.f32 %v342, %v637
        %v639 = vpop.f32.mrf.mxu0
        %640 = vmatprep.mubr.bf16.mxu0 %v443
        %641 = vmatmul.mubr.bf16.gmra.mxu0 %v442
        %v642 = vpop.f32.mrf.mxu0
        %v643 = vadd.f32 %v342, %v642
        %v644 = vpop.f32.mrf.mxu0
        %v645 = vpop.f32.mrf.mxu0
        %v646 = vadd.f32 %v342, %v645
        %v647 = vpop.f32.mrf.mxu0
        %648 = vmatprep.mubr.bf16.mxu0 %v445
        %649 = vmatmul.mubr.bf16.gmra.mxu0 %v444
        %v650 = vpop.f32.mrf.mxu0
        %v651 = vadd.f32 %v342, %v650
        %v652 = vpop.f32.mrf.mxu0
        %v653 = vpop.f32.mrf.mxu0
        %v654 = vadd.f32 %v342, %v653
        %v655 = vpop.f32.mrf.mxu0
        %656 = vmatprep.mubr.bf16.mxu0 %v447
        %657 = vmatmul.mubr.bf16.gmra.mxu0 %v446
        %v658 = vpop.f32.mrf.mxu0
        %v659 = vadd.f32 %v342, %v658
        %v660 = vpop.f32.mrf.mxu0
        %v661 = vpop.f32.mrf.mxu0
        %v662 = vadd.f32 %v342, %v661
        %v663 = vpop.f32.mrf.mxu0
        %664 = vmatprep.mubr.bf16.mxu0 %v449
        %665 = vmatmul.mubr.bf16.gmra.mxu0 %v448
        %v666 = vpop.f32.mrf.mxu0
        %v667 = vadd.f32 %v342, %v666
        %v668 = vpop.f32.mrf.mxu0
        %v669 = vpop.f32.mrf.mxu0
        %v670 = vadd.f32 %v342, %v669
        %v671 = vpop.f32.mrf.mxu0
        %672 = vmatprep.mubr.bf16.mxu0 %v451
        %673 = vmatmul.mubr.bf16.gmra.mxu0 %v450
        %v674 = vpop.f32.mrf.mxu0
        %v675 = vadd.f32 %v342, %v674
        %v676 = vpop.f32.mrf.mxu0
        %v677 = vpop.f32.mrf.mxu0
        %v678 = vadd.f32 %v342, %v677
        %v679 = vpop.f32.mrf.mxu0
        %680 = vmatprep.mubr.bf16.mxu0 %v453
        %681 = vmatmul.mubr.bf16.gmra.mxu0 %v452
        %v682 = vpop.f32.mrf.mxu0
        %v683 = vadd.f32 %v342, %v682
        %v684 = vpop.f32.mrf.mxu0
        %v685 = vpop.f32.mrf.mxu0
        %v686 = vadd.f32 %v342, %v685
        %v687 = vpop.f32.mrf.mxu0
        %688 = vmatprep.mubr.bf16.mxu0 %v455
        %689 = vmatmul.mubr.bf16.gmra.mxu0 %v454
        %v690 = vpop.f32.mrf.mxu0
        %v691 = vadd.f32 %v342, %v690
        %v692 = vpop.f32.mrf.mxu0
        %v693 = vpop.f32.mrf.mxu0
        %v694 = vadd.f32 %v342, %v693
        %v695 = vpop.f32.mrf.mxu0
        %696 = vmatprep.mubr.bf16.mxu0 %v457
        %697 = vmatmul.mubr.bf16.gmra.mxu0 %v456
        %v698 = vpop.f32.mrf.mxu0
        %v699 = vadd.f32 %v342, %v698
        %v700 = vpop.f32.mrf.mxu0
        %v701 = vpop.f32.mrf.mxu0
        %v702 = vadd.f32 %v342, %v701
        %v703 = vpop.f32.mrf.mxu0
        %704 = vmatprep.mubr.bf16.mxu0 %v459
        %705 = vmatmul.mubr.bf16.gmra.mxu0 %v458
        %v706 = vpop.f32.mrf.mxu0
        %v707 = vadd.f32 %v342, %v706
        %v708 = vpop.f32.mrf.mxu0
        %v709 = vpop.f32.mrf.mxu0
        %v710 = vadd.f32 %v342, %v709
        %v711 = vpop.f32.mrf.mxu0
        %712 = vmatprep.mubr.bf16.mxu0 %v461
        %713 = vmatmul.mubr.bf16.gmra.mxu0 %v460
        %v714 = vpop.f32.mrf.mxu0
        %v715 = vadd.f32 %v342, %v714
        %v716 = vpop.f32.mrf.mxu0
        %v717 = vpop.f32.mrf.mxu0
        %v718 = vadd.f32 %v342, %v717
        %v719 = vpop.f32.mrf.mxu0
        %720 = vmatprep.mubr.bf16.mxu0 %v463
        %721 = vmatmul.mubr.bf16.gmra.mxu0 %v462
        %v722 = vpop.f32.mrf.mxu0
        %v723 = vadd.f32 %v342, %v722
        %v724 = vpop.f32.mrf.mxu0
        %v725 = vpop.f32.mrf.mxu0
        %v726 = vadd.f32 %v342, %v725
        %v727 = vpop.f32.mrf.mxu0
        %728 = vmatprep.mubr.bf16.mxu0 %v465
        %729 = vmatmul.mubr.bf16.gmra.mxu0 %v464
        %v730 = vpop.f32.mrf.mxu0
        %v731 = vadd.f32 %v342, %v730
        %v732 = vpop.f32.mrf.mxu0
        %v733 = vpop.f32.mrf.mxu0
        %v734 = vadd.f32 %v342, %v733
        %v735 = vpop.f32.mrf.mxu0
        %736 = vmatprep.mubr.bf16.mxu0 %v467
        %737 = vmatmul.mubr.bf16.gmra.mxu0 %v466
        %v738 = vpop.f32.mrf.mxu0
        %v739 = vadd.f32 %v342, %v738
        %v740 = vpop.f32.mrf.mxu0
        %v741 = vpop.f32.mrf.mxu0
        %v742 = vadd.f32 %v342, %v741
        %v743 = vpop.f32.mrf.mxu0
        %744 = vmatprep.mubr.bf16.mxu0 %v469
        %745 = vmatmul.mubr.bf16.gmra.mxu0 %v468
        %v746 = vpop.f32.mrf.mxu0
        %v747 = vadd.f32 %v342, %v746
        %v748 = vpop.f32.mrf.mxu0
        %v749 = vpop.f32.mrf.mxu0
        %v750 = vadd.f32 %v342, %v749
        %v751 = vpop.f32.mrf.mxu0
        %752 = vmatprep.mubr.bf16.mxu0 %v471
        %753 = vmatmul.mubr.bf16.gmra.mxu0 %v470
        %v754 = vpop.f32.mrf.mxu0
        %v755 = vadd.f32 %v342, %v754
        %v756 = vpop.f32.mrf.mxu0
        %v757 = vpop.f32.mrf.mxu0
        %v758 = vadd.f32 %v342, %v757
        %v759 = vpop.f32.mrf.mxu0
        %760 = vdwg.mxu0
        %v761 = vsub.f32 0.0, %v635
        %v762 = vsub.f32 0.0, %v638
        %v763 = vsub.f32 0.0, %v643
        %v764 = vsub.f32 0.0, %v646
        %v765 = vsub.f32 0.0, %v651
        %v766 = vsub.f32 0.0, %v654
        %v767 = vsub.f32 0.0, %v659
        %v768 = vsub.f32 0.0, %v662
        %v769 = vsub.f32 0.0, %v667
        %v770 = vsub.f32 0.0, %v670
        %v771 = vsub.f32 0.0, %v675
        %v772 = vsub.f32 0.0, %v678
        %v773 = vsub.f32 0.0, %v683
        %v774 = vsub.f32 0.0, %v686
        %v775 = vsub.f32 0.0, %v691
        %v776 = vsub.f32 0.0, %v694
        %v777 = vsub.f32 0.0, %v699
        %v778 = vsub.f32 0.0, %v702
        %v779 = vsub.f32 0.0, %v707
        %v780 = vsub.f32 0.0, %v710
        %v781 = vsub.f32 0.0, %v715
        %v782 = vsub.f32 0.0, %v718
        %v783 = vsub.f32 0.0, %v723
        %v784 = vsub.f32 0.0, %v726
        %v785 = vsub.f32 0.0, %v731
        %v786 = vsub.f32 0.0, %v734
        %v787 = vsub.f32 0.0, %v739
        %v788 = vsub.f32 0.0, %v742
        %v789 = vsub.f32 0.0, %v747
        %v790 = vsub.f32 0.0, %v750
        %v791 = vsub.f32 0.0, %v755
        %v792 = vsub.f32 0.0, %v758
        %v793 = vmul.f32 %v761, 1.442695
        %v794 = vpow.pop %v793
        %v795 = vmul.f32 %v762, 1.442695
        %v796 = vpow.pop %v795
        %v797 = vmul.f32 %v763, 1.442695
        %v798 = vpow.pop %v797
        %v799 = vmul.f32 %v764, 1.442695
        %v800 = vpow.pop %v799
        %v801 = vmul.f32 %v765, 1.442695
        %v802 = vpow.pop %v801
        %v803 = vmul.f32 %v766, 1.442695
        %v804 = vpow.pop %v803
        %v805 = vmul.f32 %v767, 1.442695
        %v806 = vpow.pop %v805
        %v807 = vmul.f32 %v768, 1.442695
        %v808 = vpow.pop %v807
        %v809 = vmul.f32 %v769, 1.442695
        %v810 = vpow.pop %v809
        %v811 = vmul.f32 %v770, 1.442695
        %v812 = vpow.pop %v811
        %v813 = vmul.f32 %v771, 1.442695
        %v814 = vpow.pop %v813
        %v815 = vmul.f32 %v772, 1.442695
        %v816 = vpow.pop %v815
        %v817 = vmul.f32 %v773, 1.442695
        %v818 = vpow.pop %v817
        %v819 = vmul.f32 %v774, 1.442695
        %v820 = vpow.pop %v819
        %v821 = vmul.f32 %v775, 1.442695
        %v822 = vpow.pop %v821
        %v823 = vmul.f32 %v776, 1.442695
        %v824 = vpow.pop %v823
        %v825 = vmul.f32 %v777, 1.442695
        %v826 = vpow.pop %v825
        %v827 = vmul.f32 %v778, 1.442695
        %v828 = vpow.pop %v827
        %v829 = vmul.f32 %v779, 1.442695
        %v830 = vpow.pop %v829
        %v831 = vmul.f32 %v780, 1.442695
        %v832 = vpow.pop %v831
        %v833 = vmul.f32 %v781, 1.442695
        %v834 = vpow.pop %v833
        %v835 = vmul.f32 %v782, 1.442695
        %v836 = vpow.pop %v835
        %v837 = vmul.f32 %v783, 1.442695
        %v838 = vpow.pop %v837
        %v839 = vmul.f32 %v784, 1.442695
        %v840 = vpow.pop %v839
        %v841 = vmul.f32 %v785, 1.442695
        %v842 = vpow.pop %v841
        %v843 = vmul.f32 %v786, 1.442695
        %v844 = vpow.pop %v843
        %v845 = vmul.f32 %v787, 1.442695
        %v846 = vpow.pop %v845
        %v847 = vmul.f32 %v788, 1.442695
        %v848 = vpow.pop %v847
        %v849 = vmul.f32 %v789, 1.442695
        %v850 = vpow.pop %v849
        %v851 = vmul.f32 %v790, 1.442695
        %v852 = vpow.pop %v851
        %v853 = vmul.f32 %v791, 1.442695
        %v854 = vpow.pop %v853
        %v855 = vmul.f32 %v792, 1.442695
        %v856 = vpow.pop %v855
        %v857 = vadd.f32 %v794, 1.0
        %v858 = vadd.f32 %v796, 1.0
        %v859 = vadd.f32 %v798, 1.0
        %v860 = vadd.f32 %v800, 1.0
        %v861 = vadd.f32 %v802, 1.0
        %v862 = vadd.f32 %v804, 1.0
        %v863 = vadd.f32 %v806, 1.0
        %v864 = vadd.f32 %v808, 1.0
        %v865 = vadd.f32 %v810, 1.0
        %v866 = vadd.f32 %v812, 1.0
        %v867 = vadd.f32 %v814, 1.0
        %v868 = vadd.f32 %v816, 1.0
        %v869 = vadd.f32 %v818, 1.0
        %v870 = vadd.f32 %v820, 1.0
        %v871 = vadd.f32 %v822, 1.0
        %v872 = vadd.f32 %v824, 1.0
        %v873 = vadd.f32 %v826, 1.0
        %v874 = vadd.f32 %v828, 1.0
        %v875 = vadd.f32 %v830, 1.0
        %v876 = vadd.f32 %v832, 1.0
        %v877 = vadd.f32 %v834, 1.0
        %v878 = vadd.f32 %v836, 1.0
        %v879 = vadd.f32 %v838, 1.0
        %v880 = vadd.f32 %v840, 1.0
        %v881 = vadd.f32 %v842, 1.0
        %v882 = vadd.f32 %v844, 1.0
        %v883 = vadd.f32 %v846, 1.0
        %v884 = vadd.f32 %v848, 1.0
        %v885 = vadd.f32 %v850, 1.0
        %v886 = vadd.f32 %v852, 1.0
        %v887 = vadd.f32 %v854, 1.0
        %v888 = vadd.f32 %v856, 1.0
        %v889 = vrcp.pop %v857
        %v890 = vrcp.pop %v858
        %v891 = vrcp.pop %v859
        %v892 = vrcp.pop %v860
        %v893 = vrcp.pop %v861
        %v894 = vrcp.pop %v862
        %v895 = vrcp.pop %v863
        %v896 = vrcp.pop %v864
        %v897 = vrcp.pop %v865
        %v898 = vrcp.pop %v866
        %v899 = vrcp.pop %v867
        %v900 = vrcp.pop %v868
        %v901 = vrcp.pop %v869
        %v902 = vrcp.pop %v870
        %v903 = vrcp.pop %v871
        %v904 = vrcp.pop %v872
        %v905 = vrcp.pop %v873
        %v906 = vrcp.pop %v874
        %v907 = vrcp.pop %v875
        %v908 = vrcp.pop %v876
        %v909 = vrcp.pop %v877
        %v910 = vrcp.pop %v878
        %v911 = vrcp.pop %v879
        %v912 = vrcp.pop %v880
        %v913 = vrcp.pop %v881
        %v914 = vrcp.pop %v882
        %v915 = vrcp.pop %v883
        %v916 = vrcp.pop %v884
        %v917 = vrcp.pop %v885
        %v918 = vrcp.pop %v886
        %v919 = vrcp.pop %v887
        %v920 = vrcp.pop %v888
        %v921 = vmul.f32 %v635, %v889
        %v922 = vmul.f32 %v638, %v890
        %v923 = vmul.f32 %v643, %v891
        %v924 = vmul.f32 %v646, %v892
        %v925 = vmul.f32 %v651, %v893
        %v926 = vmul.f32 %v654, %v894
        %v927 = vmul.f32 %v659, %v895
        %v928 = vmul.f32 %v662, %v896
        %v929 = vmul.f32 %v667, %v897
        %v930 = vmul.f32 %v670, %v898
        %v931 = vmul.f32 %v675, %v899
        %v932 = vmul.f32 %v678, %v900
        %v933 = vmul.f32 %v683, %v901
        %v934 = vmul.f32 %v686, %v902
        %v935 = vmul.f32 %v691, %v903
        %v936 = vmul.f32 %v694, %v904
        %v937 = vmul.f32 %v699, %v905
        %v938 = vmul.f32 %v702, %v906
        %v939 = vmul.f32 %v707, %v907
        %v940 = vmul.f32 %v710, %v908
        %v941 = vmul.f32 %v715, %v909
        %v942 = vmul.f32 %v718, %v910
        %v943 = vmul.f32 %v723, %v911
        %v944 = vmul.f32 %v726, %v912
        %v945 = vmul.f32 %v731, %v913
        %v946 = vmul.f32 %v734, %v914
        %v947 = vmul.f32 %v739, %v915
        %v948 = vmul.f32 %v742, %v916
        %v949 = vmul.f32 %v747, %v917
        %v950 = vmul.f32 %v750, %v918
        %v951 = vmul.f32 %v755, %v919
        %v952 = vmul.f32 %v758, %v920
        %953 = vst [vmem:[#allocation2] sm:$0xff] -3.4028235e+38
        %954 = vst [vmem:[#allocation2 + $0x8] sm:$0xff] -3.4028235e+38
        %955 = vst [vmem:[#allocation2 + $0x10] sm:$0xf] -3.4028235e+38
        %956 = vst [vmem:[#allocation2 + $0x18] sm:$0xff] -3.4028235e+38
        %957 = vst [vmem:[#allocation2 + $0x20] sm:$0xff] -3.4028235e+38
        %958 = vst [vmem:[#allocation2 + $0x28] sm:$0xf] -3.4028235e+38
        %959 = vst [vmem:[#allocation2 + $0x30] sm:$0xff] -3.4028235e+38
        %960 = vst [vmem:[#allocation2 + $0x38] sm:$0xff] -3.4028235e+38
        %961 = vst [vmem:[#allocation2 + $0x40] sm:$0xf] -3.4028235e+38
        %962 = vst [vmem:[#allocation2 + $0x48] sm:$0xff] -3.4028235e+38
        %963 = vst [vmem:[#allocation2 + $0x50] sm:$0xff] -3.4028235e+38
        %964 = vst [vmem:[#allocation2 + $0x58] sm:$0xf] -3.4028235e+38
        %965 = vst [vmem:[#allocation2 + $0x60] sm:$0xff] -3.4028235e+38
        %966 = vst [vmem:[#allocation2 + $0x68] sm:$0xff] -3.4028235e+38
        %967 = vst [vmem:[#allocation2 + $0x70] sm:$0xf] -3.4028235e+38
        %968 = vst [vmem:[#allocation2 + $0x78] sm:$0xff] -3.4028235e+38
        %969 = vst [vmem:[#allocation2 + $0x80] sm:$0xff] -3.4028235e+38
        %970 = vst [vmem:[#allocation2 + $0x88] sm:$0xf] -3.4028235e+38
        %971 = vst [vmem:[#allocation2 + $0x90] sm:$0xff] -3.4028235e+38
        %972 = vst [vmem:[#allocation2 + $0x98] sm:$0xff] -3.4028235e+38
        %973 = vst [vmem:[#allocation2 + $0xa0] sm:$0xf] -3.4028235e+38
        %974 = vst [vmem:[#allocation2 + $0xa8] sm:$0xff] -3.4028235e+38
        %975 = vst [vmem:[#allocation2 + $0xb0] sm:$0xff] -3.4028235e+38
        %976 = vst [vmem:[#allocation2 + $0xb8] sm:$0xf] -3.4028235e+38
        %977 = vst [vmem:[#allocation2 + $0xc0] sm:$0xff] -3.4028235e+38
        %978 = vst [vmem:[#allocation2 + $0xc8] sm:$0xff] -3.4028235e+38
        %979 = vst [vmem:[#allocation2 + $0xd0] sm:$0xf] -3.4028235e+38
        %980 = vst [vmem:[#allocation2 + $0xd8] sm:$0xff] -3.4028235e+38
        %981 = vst [vmem:[#allocation2 + $0xe0] sm:$0xff] -3.4028235e+38
        %982 = vst [vmem:[#allocation2 + $0xe8] sm:$0xf] -3.4028235e+38
        %983 = vst [vmem:[#allocation2 + $0xf0] sm:$0xff] -3.4028235e+38
        %984 = vst [vmem:[#allocation2 + $0xf8] sm:$0xff] -3.4028235e+38
        %985 = vst [vmem:[#allocation2 + $0x100] sm:$0xf] -3.4028235e+38
        %986 = vst [vmem:[#allocation2 + $0x108] sm:$0xff] -3.4028235e+38
        %987 = vst [vmem:[#allocation2 + $0x110] sm:$0xff] -3.4028235e+38
        %988 = vst [vmem:[#allocation2 + $0x118] sm:$0xf] -3.4028235e+38
        %989 = vst [vmem:[#allocation2 + $0x120] sm:$0xff] -3.4028235e+38
        %990 = vst [vmem:[#allocation2 + $0x128] sm:$0xff] -3.4028235e+38
        %991 = vst [vmem:[#allocation2 + $0x130] sm:$0xf] -3.4028235e+38
        %992 = vst [vmem:[#allocation2 + $0x138] sm:$0xff] -3.4028235e+38
        %993 = vst [vmem:[#allocation2 + $0x140] sm:$0xff] -3.4028235e+38
        %994 = vst [vmem:[#allocation2 + $0x148] sm:$0xf] -3.4028235e+38
        %995 = vst [vmem:[#allocation2 + $0x150] sm:$0xff] -3.4028235e+38
        %996 = vst [vmem:[#allocation2 + $0x158] sm:$0xff] -3.4028235e+38
        %997 = vst [vmem:[#allocation2 + $0x160] sm:$0xf] -3.4028235e+38
        %998 = vst [vmem:[#allocation2 + $0x168] sm:$0xff] -3.4028235e+38
        %999 = vst [vmem:[#allocation2 + $0x170] sm:$0xff] -3.4028235e+38
        %1000 = vst [vmem:[#allocation2 + $0x178] sm:$0xf] -3.4028235e+38
        %1001 = vst [vmem:[#allocation2 + $0x180] sm:$0xff] -3.4028235e+38
        %1002 = vst [vmem:[#allocation2 + $0x188] sm:$0xff] -3.4028235e+38
        %1003 = vst [vmem:[#allocation2 + $0x190] sm:$0xf] -3.4028235e+38
        %1004 = vst [vmem:[#allocation2 + $0x198] sm:$0xff] -3.4028235e+38
        %1005 = vst [vmem:[#allocation2 + $0x1a0] sm:$0xff] -3.4028235e+38
        %1006 = vst [vmem:[#allocation2 + $0x1a8] sm:$0xf] -3.4028235e+38
        %1007 = vst [vmem:[#allocation2 + $0x1b0] sm:$0xff] -3.4028235e+38
        %1008 = vst [vmem:[#allocation2 + $0x1b8] sm:$0xff] -3.4028235e+38
        %1009 = vst [vmem:[#allocation2 + $0x1c0] sm:$0xf] -3.4028235e+38
        %1010 = vst [vmem:[#allocation2 + $0x1c8] sm:$0xff] -3.4028235e+38
        %1011 = vst [vmem:[#allocation2 + $0x1d0] sm:$0xff] -3.4028235e+38
        %1012 = vst [vmem:[#allocation2 + $0x1d8] sm:$0xf] -3.4028235e+38
        %s1013 = scalar_lea.vmem [#allocation2], 48
        %1014 = vst [vmem:[%s1013 + $0x2] sm:$0xff] %v921
        %1015 = vst [vmem:[%s1013 + $0xa] sm:$0xff] %v922
        %1016 = vst [vmem:[%s1013 + $0x1a] sm:$0xff] %v923
        %1017 = vst [vmem:[%s1013 + $0x22] sm:$0xff] %v924
        %1018 = vst [vmem:[%s1013 + $0x32] sm:$0xff] %v925
        %1019 = vst [vmem:[%s1013 + $0x3a] sm:$0xff] %v926
        %1020 = vst [vmem:[%s1013 + $0x4a] sm:$0xff] %v927
        %1021 = vst [vmem:[%s1013 + $0x52] sm:$0xff] %v928
        %1022 = vst [vmem:[%s1013 + $0x62] sm:$0xff] %v929
        %1023 = vst [vmem:[%s1013 + $0x6a] sm:$0xff] %v930
        %1024 = vst [vmem:[%s1013 + $0x7a] sm:$0xff] %v931
        %1025 = vst [vmem:[%s1013 + $0x82] sm:$0xff] %v932
        %1026 = vst [vmem:[%s1013 + $0x92] sm:$0xff] %v933
        %1027 = vst [vmem:[%s1013 + $0x9a] sm:$0xff] %v934
        %1028 = vst [vmem:[%s1013 + $0xaa] sm:$0xff] %v935
        %1029 = vst [vmem:[%s1013 + $0xb2] sm:$0xff] %v936
        %1030 = vst [vmem:[%s1013 + $0xc2] sm:$0xff] %v937
        %1031 = vst [vmem:[%s1013 + $0xca] sm:$0xff] %v938
        %1032 = vst [vmem:[%s1013 + $0xda] sm:$0xff] %v939
        %1033 = vst [vmem:[%s1013 + $0xe2] sm:$0xff] %v940
        %1034 = vst [vmem:[%s1013 + $0xf2] sm:$0xff] %v941
        %1035 = vst [vmem:[%s1013 + $0xfa] sm:$0xff] %v942
        %1036 = vst [vmem:[%s1013 + $0x10a] sm:$0xff] %v943
        %1037 = vst [vmem:[%s1013 + $0x112] sm:$0xff] %v944
        %1038 = vst [vmem:[%s1013 + $0x122] sm:$0xff] %v945
        %1039 = vst [vmem:[%s1013 + $0x12a] sm:$0xff] %v946
        %1040 = vst [vmem:[%s1013 + $0x13a] sm:$0xff] %v947
        %1041 = vst [vmem:[%s1013 + $0x142] sm:$0xff] %v948
        %1042 = vst [vmem:[%s1013 + $0x152] sm:$0xff] %v949
        %1043 = vst [vmem:[%s1013 + $0x15a] sm:$0xff] %v950
        %1044 = vst [vmem:[%s1013 + $0x16a] sm:$0xff] %v951
        %1045 = vst [vmem:[%s1013 + $0x172] sm:$0xff] %v952
        %v1046 = vld [vmem:[#allocation2] sm:$0xff]
        %v1047 = vld [vmem:[#allocation2 + $0x8] sm:$0xff]
        %v1048 = vld [vmem:[#allocation2 + $0x18] sm:$0xff]
        %v1049 = vld [vmem:[#allocation2 + $0x20] sm:$0xff]
        %v1050 = vld [vmem:[#allocation2 + $0x30] sm:$0xff]
        %v1051 = vld [vmem:[#allocation2 + $0x38] sm:$0xff]
        %v1052 = vld [vmem:[#allocation2 + $0x48] sm:$0xff]
        %v1053 = vld [vmem:[#allocation2 + $0x50] sm:$0xff]
        %v1054 = vld [vmem:[#allocation2 + $0x60] sm:$0xff]
        %v1055 = vld [vmem:[#allocation2 + $0x68] sm:$0xff]
        %v1056 = vld [vmem:[#allocation2 + $0x78] sm:$0xff]
        %v1057 = vld [vmem:[#allocation2 + $0x80] sm:$0xff]
        %v1058 = vld [vmem:[#allocation2 + $0x90] sm:$0xff]
        %v1059 = vld [vmem:[#allocation2 + $0x98] sm:$0xff]
        %v1060 = vld [vmem:[#allocation2 + $0xa8] sm:$0xff]
        %v1061 = vld [vmem:[#allocation2 + $0xb0] sm:$0xff]
        %v1062 = vld [vmem:[#allocation2 + $0xc0] sm:$0xff]
        %v1063 = vld [vmem:[#allocation2 + $0xc8] sm:$0xff]
        %v1064 = vld [vmem:[#allocation2 + $0xd8] sm:$0xff]
        %v1065 = vld [vmem:[#allocation2 + $0xe0] sm:$0xff]
        %v1066 = vld [vmem:[#allocation2 + $0xf0] sm:$0xff]
        %v1067 = vld [vmem:[#allocation2 + $0xf8] sm:$0xff]
        %v1068 = vld [vmem:[#allocation2 + $0x108] sm:$0xff]
        %v1069 = vld [vmem:[#allocation2 + $0x110] sm:$0xff]
        %v1070 = vld [vmem:[#allocation2 + $0x120] sm:$0xff]
        %v1071 = vld [vmem:[#allocation2 + $0x128] sm:$0xff]
        %v1072 = vld [vmem:[#allocation2 + $0x138] sm:$0xff]
        %v1073 = vld [vmem:[#allocation2 + $0x140] sm:$0xff]
        %v1074 = vld [vmem:[#allocation2 + $0x150] sm:$0xff]
        %v1075 = vld [vmem:[#allocation2 + $0x158] sm:$0xff]
        %v1076 = vld [vmem:[#allocation2 + $0x168] sm:$0xff]
        %v1077 = vld [vmem:[#allocation2 + $0x170] sm:$0xff]
        %v1078 = vld [vmem:[#allocation2 + $0x180] sm:$0xff]
        %v1079 = vld [vmem:[#allocation2 + $0x188] sm:$0xff]
        %v1080 = vld [vmem:[#allocation2 + $0x198] sm:$0xff]
        %v1081 = vld [vmem:[#allocation2 + $0x1a0] sm:$0xff]
        %v1082 = vld [vmem:[#allocation2 + $0x1b0] sm:$0xff]
        %v1083 = vld [vmem:[#allocation2 + $0x1b8] sm:$0xff]
        %v1084 = vld [vmem:[#allocation2 + $0x1c8] sm:$0xff]
        %v1085 = vld [vmem:[#allocation2 + $0x1d0] sm:$0xff]
        %v1086 = vld [vmem:[#allocation2 + $0x1] sm:$0xff]
        %v1087 = vld [vmem:[#allocation2 + $0x9] sm:$0xff]
        %v1088 = vld [vmem:[#allocation2 + $0x19] sm:$0xff]
        %v1089 = vld [vmem:[#allocation2 + $0x21] sm:$0xff]
        %v1090 = vld [vmem:[#allocation2 + $0x31] sm:$0xff]
        %v1091 = vld [vmem:[#allocation2 + $0x39] sm:$0xff]
        %v1092 = vld [vmem:[#allocation2 + $0x49] sm:$0xff]
        %v1093 = vld [vmem:[#allocation2 + $0x51] sm:$0xff]
        %v1094 = vld [vmem:[#allocation2 + $0x61] sm:$0xff]
        %v1095 = vld [vmem:[#allocation2 + $0x69] sm:$0xff]
        %v1096 = vld [vmem:[#allocation2 + $0x79] sm:$0xff]
        %v1097 = vld [vmem:[#allocation2 + $0x81] sm:$0xff]
        %v1098 = vld [vmem:[#allocation2 + $0x91] sm:$0xff]
        %v1099 = vld [vmem:[#allocation2 + $0x99] sm:$0xff]
        %v1100 = vld [vmem:[#allocation2 + $0xa9] sm:$0xff]
        %v1101 = vld [vmem:[#allocation2 + $0xb1] sm:$0xff]
        %v1102 = vld [vmem:[#allocation2 + $0xc1] sm:$0xff]
        %v1103 = vld [vmem:[#allocation2 + $0xc9] sm:$0xff]
        %v1104 = vld [vmem:[#allocation2 + $0xd9] sm:$0xff]
        %v1105 = vld [vmem:[#allocation2 + $0xe1] sm:$0xff]
        %v1106 = vld [vmem:[#allocation2 + $0xf1] sm:$0xff]
        %v1107 = vld [vmem:[#allocation2 + $0xf9] sm:$0xff]
        %v1108 = vld [vmem:[#allocation2 + $0x109] sm:$0xff]
        %v1109 = vld [vmem:[#allocation2 + $0x111] sm:$0xff]
        %v1110 = vld [vmem:[#allocation2 + $0x121] sm:$0xff]
        %v1111 = vld [vmem:[#allocation2 + $0x129] sm:$0xff]
        %v1112 = vld [vmem:[#allocation2 + $0x139] sm:$0xff]
        %v1113 = vld [vmem:[#allocation2 + $0x141] sm:$0xff]
        %v1114 = vld [vmem:[#allocation2 + $0x151] sm:$0xff]
        %v1115 = vld [vmem:[#allocation2 + $0x159] sm:$0xff]
        %v1116 = vld [vmem:[#allocation2 + $0x169] sm:$0xff]
        %v1117 = vld [vmem:[#allocation2 + $0x171] sm:$0xff]
        %v1118 = vld [vmem:[#allocation2 + $0x181] sm:$0xff]
        %v1119 = vld [vmem:[#allocation2 + $0x189] sm:$0xff]
        %v1120 = vld [vmem:[#allocation2 + $0x199] sm:$0xff]
        %v1121 = vld [vmem:[#allocation2 + $0x1a1] sm:$0xff]
        %v1122 = vld [vmem:[#allocation2 + $0x1b1] sm:$0xff]
        %v1123 = vld [vmem:[#allocation2 + $0x1b9] sm:$0xff]
        %v1124 = vld [vmem:[#allocation2 + $0x1c9] sm:$0xff]
        %v1125 = vld [vmem:[#allocation2 + $0x1d1] sm:$0xff]
        %v1126 = vmax.f32 %v1046, %v1086
        %v1127 = vmax.f32 %v1047, %v1087
        %v1128 = vmax.f32 %v1048, %v1088
        %v1129 = vmax.f32 %v1049, %v1089
        %v1130 = vmax.f32 %v1050, %v1090
        %v1131 = vmax.f32 %v1051, %v1091
        %v1132 = vmax.f32 %v1052, %v1092
        %v1133 = vmax.f32 %v1053, %v1093
        %v1134 = vmax.f32 %v1054, %v1094
        %v1135 = vmax.f32 %v1055, %v1095
        %v1136 = vmax.f32 %v1056, %v1096
        %v1137 = vmax.f32 %v1057, %v1097
        %v1138 = vmax.f32 %v1058, %v1098
        %v1139 = vmax.f32 %v1059, %v1099
        %v1140 = vmax.f32 %v1060, %v1100
        %v1141 = vmax.f32 %v1061, %v1101
        %v1142 = vmax.f32 %v1062, %v1102
        %v1143 = vmax.f32 %v1063, %v1103
        %v1144 = vmax.f32 %v1064, %v1104
        %v1145 = vmax.f32 %v1065, %v1105
        %v1146 = vmax.f32 %v1066, %v1106
        %v1147 = vmax.f32 %v1067, %v1107
        %v1148 = vmax.f32 %v1068, %v1108
        %v1149 = vmax.f32 %v1069, %v1109
        %v1150 = vmax.f32 %v1070, %v1110
        %v1151 = vmax.f32 %v1071, %v1111
        %v1152 = vmax.f32 %v1072, %v1112
        %v1153 = vmax.f32 %v1073, %v1113
        %v1154 = vmax.f32 %v1074, %v1114
        %v1155 = vmax.f32 %v1075, %v1115
        %v1156 = vmax.f32 %v1076, %v1116
        %v1157 = vmax.f32 %v1077, %v1117
        %v1158 = vmax.f32 %v1078, %v1118
        %v1159 = vmax.f32 %v1079, %v1119
        %v1160 = vmax.f32 %v1080, %v1120
        %v1161 = vmax.f32 %v1081, %v1121
        %v1162 = vmax.f32 %v1082, %v1122
        %v1163 = vmax.f32 %v1083, %v1123
        %v1164 = vmax.f32 %v1084, %v1124
        %v1165 = vmax.f32 %v1085, %v1125
        %v1166 = vld [vmem:[#allocation2 + $0x2] sm:$0xff]
        %v1167 = vld [vmem:[#allocation2 + $0xa] sm:$0xff]
        %v1168 = vld [vmem:[#allocation2 + $0x1a] sm:$0xff]
        %v1169 = vld [vmem:[#allocation2 + $0x22] sm:$0xff]
        %v1170 = vld [vmem:[#allocation2 + $0x32] sm:$0xff]
        %v1171 = vld [vmem:[#allocation2 + $0x3a] sm:$0xff]
        %v1172 = vld [vmem:[#allocation2 + $0x4a] sm:$0xff]
        %v1173 = vld [vmem:[#allocation2 + $0x52] sm:$0xff]
        %v1174 = vld [vmem:[#allocation2 + $0x62] sm:$0xff]
        %v1175 = vld [vmem:[#allocation2 + $0x6a] sm:$0xff]
        %v1176 = vld [vmem:[#allocation2 + $0x7a] sm:$0xff]
        %v1177 = vld [vmem:[#allocation2 + $0x82] sm:$0xff]
        %v1178 = vld [vmem:[#allocation2 + $0x92] sm:$0xff]
        %v1179 = vld [vmem:[#allocation2 + $0x9a] sm:$0xff]
        %v1180 = vld [vmem:[#allocation2 + $0xaa] sm:$0xff]
        %v1181 = vld [vmem:[#allocation2 + $0xb2] sm:$0xff]
        %v1182 = vld [vmem:[#allocation2 + $0xc2] sm:$0xff]
        %v1183 = vld [vmem:[#allocation2 + $0xca] sm:$0xff]
        %v1184 = vld [vmem:[#allocation2 + $0xda] sm:$0xff]
        %v1185 = vld [vmem:[#allocation2 + $0xe2] sm:$0xff]
        %v1186 = vld [vmem:[#allocation2 + $0xf2] sm:$0xff]
        %v1187 = vld [vmem:[#allocation2 + $0xfa] sm:$0xff]
        %v1188 = vld [vmem:[#allocation2 + $0x10a] sm:$0xff]
        %v1189 = vld [vmem:[#allocation2 + $0x112] sm:$0xff]
        %v1190 = vld [vmem:[#allocation2 + $0x122] sm:$0xff]
        %v1191 = vld [vmem:[#allocation2 + $0x12a] sm:$0xff]
        %v1192 = vld [vmem:[#allocation2 + $0x13a] sm:$0xff]
        %v1193 = vld [vmem:[#allocation2 + $0x142] sm:$0xff]
        %v1194 = vld [vmem:[#allocation2 + $0x152] sm:$0xff]
        %v1195 = vld [vmem:[#allocation2 + $0x15a] sm:$0xff]
        %v1196 = vld [vmem:[#allocation2 + $0x16a] sm:$0xff]
        %v1197 = vld [vmem:[#allocation2 + $0x172] sm:$0xff]
        %v1198 = vld [vmem:[#allocation2 + $0x182] sm:$0xff]
        %v1199 = vld [vmem:[#allocation2 + $0x18a] sm:$0xff]
        %v1200 = vld [vmem:[#allocation2 + $0x19a] sm:$0xff]
        %v1201 = vld [vmem:[#allocation2 + $0x1a2] sm:$0xff]
        %v1202 = vld [vmem:[#allocation2 + $0x1b2] sm:$0xff]
        %v1203 = vld [vmem:[#allocation2 + $0x1ba] sm:$0xff]
        %v1204 = vld [vmem:[#allocation2 + $0x1ca] sm:$0xff]
        %v1205 = vld [vmem:[#allocation2 + $0x1d2] sm:$0xff]
        %v1206 = vmax.f32 %v1126, %v1166
        %v1207 = vmax.f32 %v1127, %v1167
        %v1208 = vmax.f32 %v1128, %v1168
        %v1209 = vmax.f32 %v1129, %v1169
        %v1210 = vmax.f32 %v1130, %v1170
        %v1211 = vmax.f32 %v1131, %v1171
        %v1212 = vmax.f32 %v1132, %v1172
        %v1213 = vmax.f32 %v1133, %v1173
        %v1214 = vmax.f32 %v1134, %v1174
        %v1215 = vmax.f32 %v1135, %v1175
        %v1216 = vmax.f32 %v1136, %v1176
        %v1217 = vmax.f32 %v1137, %v1177
        %v1218 = vmax.f32 %v1138, %v1178
        %v1219 = vmax.f32 %v1139, %v1179
        %v1220 = vmax.f32 %v1140, %v1180
        %v1221 = vmax.f32 %v1141, %v1181
        %v1222 = vmax.f32 %v1142, %v1182
        %v1223 = vmax.f32 %v1143, %v1183
        %v1224 = vmax.f32 %v1144, %v1184
        %v1225 = vmax.f32 %v1145, %v1185
        %v1226 = vmax.f32 %v1146, %v1186
        %v1227 = vmax.f32 %v1147, %v1187
        %v1228 = vmax.f32 %v1148, %v1188
        %v1229 = vmax.f32 %v1149, %v1189
        %v1230 = vmax.f32 %v1150, %v1190
        %v1231 = vmax.f32 %v1151, %v1191
        %v1232 = vmax.f32 %v1152, %v1192
        %v1233 = vmax.f32 %v1153, %v1193
        %v1234 = vmax.f32 %v1154, %v1194
        %v1235 = vmax.f32 %v1155, %v1195
        %v1236 = vmax.f32 %v1156, %v1196
        %v1237 = vmax.f32 %v1157, %v1197
        %v1238 = vmax.f32 %v1158, %v1198
        %v1239 = vmax.f32 %v1159, %v1199
        %v1240 = vmax.f32 %v1160, %v1200
        %v1241 = vmax.f32 %v1161, %v1201
        %v1242 = vmax.f32 %v1162, %v1202
        %v1243 = vmax.f32 %v1163, %v1203
        %v1244 = vmax.f32 %v1164, %v1204
        %v1245 = vmax.f32 %v1165, %v1205
        %v1246 = vld [vmem:[#allocation2 + $0x3] sm:$0xff]
        %v1247 = vld [vmem:[#allocation2 + $0xb] sm:$0xff]
        %v1248 = vld [vmem:[#allocation2 + $0x1b] sm:$0xff]
        %v1249 = vld [vmem:[#allocation2 + $0x23] sm:$0xff]
        %v1250 = vld [vmem:[#allocation2 + $0x33] sm:$0xff]
        %v1251 = vld [vmem:[#allocation2 + $0x3b] sm:$0xff]
        %v1252 = vld [vmem:[#allocation2 + $0x4b] sm:$0xff]
        %v1253 = vld [vmem:[#allocation2 + $0x53] sm:$0xff]
        %v1254 = vld [vmem:[#allocation2 + $0x63] sm:$0xff]
        %v1255 = vld [vmem:[#allocation2 + $0x6b] sm:$0xff]
        %v1256 = vld [vmem:[#allocation2 + $0x7b] sm:$0xff]
        %v1257 = vld [vmem:[#allocation2 + $0x83] sm:$0xff]
        %v1258 = vld [vmem:[#allocation2 + $0x93] sm:$0xff]
        %v1259 = vld [vmem:[#allocation2 + $0x9b] sm:$0xff]
        %v1260 = vld [vmem:[#allocation2 + $0xab] sm:$0xff]
        %v1261 = vld [vmem:[#allocation2 + $0xb3] sm:$0xff]
        %v1262 = vld [vmem:[#allocation2 + $0xc3] sm:$0xff]
        %v1263 = vld [vmem:[#allocation2 + $0xcb] sm:$0xff]
        %v1264 = vld [vmem:[#allocation2 + $0xdb] sm:$0xff]
        %v1265 = vld [vmem:[#allocation2 + $0xe3] sm:$0xff]
        %v1266 = vld [vmem:[#allocation2 + $0xf3] sm:$0xff]
        %v1267 = vld [vmem:[#allocation2 + $0xfb] sm:$0xff]
        %v1268 = vld [vmem:[#allocation2 + $0x10b] sm:$0xff]
        %v1269 = vld [vmem:[#allocation2 + $0x113] sm:$0xff]
        %v1270 = vld [vmem:[#allocation2 + $0x123] sm:$0xff]
        %v1271 = vld [vmem:[#allocation2 + $0x12b] sm:$0xff]
        %v1272 = vld [vmem:[#allocation2 + $0x13b] sm:$0xff]
        %v1273 = vld [vmem:[#allocation2 + $0x143] sm:$0xff]
        %v1274 = vld [vmem:[#allocation2 + $0x153] sm:$0xff]
        %v1275 = vld [vmem:[#allocation2 + $0x15b] sm:$0xff]
        %v1276 = vld [vmem:[#allocation2 + $0x16b] sm:$0xff]
        %v1277 = vld [vmem:[#allocation2 + $0x173] sm:$0xff]
        %v1278 = vld [vmem:[#allocation2 + $0x183] sm:$0xff]
        %v1279 = vld [vmem:[#allocation2 + $0x18b] sm:$0xff]
        %v1280 = vld [vmem:[#allocation2 + $0x19b] sm:$0xff]
        %v1281 = vld [vmem:[#allocation2 + $0x1a3] sm:$0xff]
        %v1282 = vld [vmem:[#allocation2 + $0x1b3] sm:$0xff]
        %v1283 = vld [vmem:[#allocation2 + $0x1bb] sm:$0xff]
        %v1284 = vld [vmem:[#allocation2 + $0x1cb] sm:$0xff]
        %v1285 = vld [vmem:[#allocation2 + $0x1d3] sm:$0xff]
        %v1286 = vmax.f32 %v1206, %v1246
        %v1287 = vmax.f32 %v1207, %v1247
        %v1288 = vmax.f32 %v1208, %v1248
        %v1289 = vmax.f32 %v1209, %v1249
        %v1290 = vmax.f32 %v1210, %v1250
        %v1291 = vmax.f32 %v1211, %v1251
        %v1292 = vmax.f32 %v1212, %v1252
        %v1293 = vmax.f32 %v1213, %v1253
        %v1294 = vmax.f32 %v1214, %v1254
        %v1295 = vmax.f32 %v1215, %v1255
        %v1296 = vmax.f32 %v1216, %v1256
        %v1297 = vmax.f32 %v1217, %v1257
        %v1298 = vmax.f32 %v1218, %v1258
        %v1299 = vmax.f32 %v1219, %v1259
        %v1300 = vmax.f32 %v1220, %v1260
        %v1301 = vmax.f32 %v1221, %v1261
        %v1302 = vmax.f32 %v1222, %v1262
        %v1303 = vmax.f32 %v1223, %v1263
        %v1304 = vmax.f32 %v1224, %v1264
        %v1305 = vmax.f32 %v1225, %v1265
        %v1306 = vmax.f32 %v1226, %v1266
        %v1307 = vmax.f32 %v1227, %v1267
        %v1308 = vmax.f32 %v1228, %v1268
        %v1309 = vmax.f32 %v1229, %v1269
        %v1310 = vmax.f32 %v1230, %v1270
        %v1311 = vmax.f32 %v1231, %v1271
        %v1312 = vmax.f32 %v1232, %v1272
        %v1313 = vmax.f32 %v1233, %v1273
        %v1314 = vmax.f32 %v1234, %v1274
        %v1315 = vmax.f32 %v1235, %v1275
        %v1316 = vmax.f32 %v1236, %v1276
        %v1317 = vmax.f32 %v1237, %v1277
        %v1318 = vmax.f32 %v1238, %v1278
        %v1319 = vmax.f32 %v1239, %v1279
        %v1320 = vmax.f32 %v1240, %v1280
        %v1321 = vmax.f32 %v1241, %v1281
        %v1322 = vmax.f32 %v1242, %v1282
        %v1323 = vmax.f32 %v1243, %v1283
        %v1324 = vmax.f32 %v1244, %v1284
        %v1325 = vmax.f32 %v1245, %v1285
        %v1326 = vld [vmem:[#allocation2 + $0x4] sm:$0xff]
        %v1327 = vld [vmem:[#allocation2 + $0xc] sm:$0xff]
        %v1328 = vld [vmem:[#allocation2 + $0x1c] sm:$0xff]
        %v1329 = vld [vmem:[#allocation2 + $0x24] sm:$0xff]
        %v1330 = vld [vmem:[#allocation2 + $0x34] sm:$0xff]
        %v1331 = vld [vmem:[#allocation2 + $0x3c] sm:$0xff]
        %v1332 = vld [vmem:[#allocation2 + $0x4c] sm:$0xff]
        %v1333 = vld [vmem:[#allocation2 + $0x54] sm:$0xff]
        %v1334 = vld [vmem:[#allocation2 + $0x64] sm:$0xff]
        %v1335 = vld [vmem:[#allocation2 + $0x6c] sm:$0xff]
        %v1336 = vld [vmem:[#allocation2 + $0x7c] sm:$0xff]
        %v1337 = vld [vmem:[#allocation2 + $0x84] sm:$0xff]
        %v1338 = vld [vmem:[#allocation2 + $0x94] sm:$0xff]
        %v1339 = vld [vmem:[#allocation2 + $0x9c] sm:$0xff]
        %v1340 = vld [vmem:[#allocation2 + $0xac] sm:$0xff]
        %v1341 = vld [vmem:[#allocation2 + $0xb4] sm:$0xff]
        %v1342 = vld [vmem:[#allocation2 + $0xc4] sm:$0xff]
        %v1343 = vld [vmem:[#allocation2 + $0xcc] sm:$0xff]
        %v1344 = vld [vmem:[#allocation2 + $0xdc] sm:$0xff]
        %v1345 = vld [vmem:[#allocation2 + $0xe4] sm:$0xff]
        %v1346 = vld [vmem:[#allocation2 + $0xf4] sm:$0xff]
        %v1347 = vld [vmem:[#allocation2 + $0xfc] sm:$0xff]
        %v1348 = vld [vmem:[#allocation2 + $0x10c] sm:$0xff]
        %v1349 = vld [vmem:[#allocation2 + $0x114] sm:$0xff]
        %v1350 = vld [vmem:[#allocation2 + $0x124] sm:$0xff]
        %v1351 = vld [vmem:[#allocation2 + $0x12c] sm:$0xff]
        %v1352 = vld [vmem:[#allocation2 + $0x13c] sm:$0xff]
        %v1353 = vld [vmem:[#allocation2 + $0x144] sm:$0xff]
        %v1354 = vld [vmem:[#allocation2 + $0x154] sm:$0xff]
        %v1355 = vld [vmem:[#allocation2 + $0x15c] sm:$0xff]
        %v1356 = vld [vmem:[#allocation2 + $0x16c] sm:$0xff]
        %v1357 = vld [vmem:[#allocation2 + $0x174] sm:$0xff]
        %v1358 = vld [vmem:[#allocation2 + $0x184] sm:$0xff]
        %v1359 = vld [vmem:[#allocation2 + $0x18c] sm:$0xff]
        %v1360 = vld [vmem:[#allocation2 + $0x19c] sm:$0xff]
        %v1361 = vld [vmem:[#allocation2 + $0x1a4] sm:$0xff]
        %v1362 = vld [vmem:[#allocation2 + $0x1b4] sm:$0xff]
        %v1363 = vld [vmem:[#allocation2 + $0x1bc] sm:$0xff]
        %v1364 = vld [vmem:[#allocation2 + $0x1cc] sm:$0xff]
        %v1365 = vld [vmem:[#allocation2 + $0x1d4] sm:$0xff]
        %v1366 = vmax.f32 %v1286, %v1326
        %v1367 = vmax.f32 %v1287, %v1327
        %v1368 = vmax.f32 %v1288, %v1328
        %v1369 = vmax.f32 %v1289, %v1329
        %v1370 = vmax.f32 %v1290, %v1330
        %v1371 = vmax.f32 %v1291, %v1331
        %v1372 = vmax.f32 %v1292, %v1332
        %v1373 = vmax.f32 %v1293, %v1333
        %v1374 = vmax.f32 %v1294, %v1334
        %v1375 = vmax.f32 %v1295, %v1335
        %v1376 = vmax.f32 %v1296, %v1336
        %v1377 = vmax.f32 %v1297, %v1337
        %v1378 = vmax.f32 %v1298, %v1338
        %v1379 = vmax.f32 %v1299, %v1339
        %v1380 = vmax.f32 %v1300, %v1340
        %v1381 = vmax.f32 %v1301, %v1341
        %v1382 = vmax.f32 %v1302, %v1342
        %v1383 = vmax.f32 %v1303, %v1343
        %v1384 = vmax.f32 %v1304, %v1344
        %v1385 = vmax.f32 %v1305, %v1345
        %v1386 = vmax.f32 %v1306, %v1346
        %v1387 = vmax.f32 %v1307, %v1347
        %v1388 = vmax.f32 %v1308, %v1348
        %v1389 = vmax.f32 %v1309, %v1349
        %v1390 = vmax.f32 %v1310, %v1350
        %v1391 = vmax.f32 %v1311, %v1351
        %v1392 = vmax.f32 %v1312, %v1352
        %v1393 = vmax.f32 %v1313, %v1353
        %v1394 = vmax.f32 %v1314, %v1354
        %v1395 = vmax.f32 %v1315, %v1355
        %v1396 = vmax.f32 %v1316, %v1356
        %v1397 = vmax.f32 %v1317, %v1357
        %v1398 = vmax.f32 %v1318, %v1358
        %v1399 = vmax.f32 %v1319, %v1359
        %v1400 = vmax.f32 %v1320, %v1360
        %v1401 = vmax.f32 %v1321, %v1361
        %v1402 = vmax.f32 %v1322, %v1362
        %v1403 = vmax.f32 %v1323, %v1363
        %v1404 = vmax.f32 %v1324, %v1364
        %v1405 = vmax.f32 %v1325, %v1365
        %v1406 = vmax.f32 %v1366, %v1368
        %v1407 = vmax.f32 %v1367, %v1369
        %v1408 = vmax.f32 %v1368, %v1370
        %v1409 = vmax.f32 %v1369, %v1371
        %v1410 = vmax.f32 %v1370, %v1372
        %v1411 = vmax.f32 %v1371, %v1373
        %v1412 = vmax.f32 %v1372, %v1374
        %v1413 = vmax.f32 %v1373, %v1375
        %v1414 = vmax.f32 %v1374, %v1376
        %v1415 = vmax.f32 %v1375, %v1377
        %v1416 = vmax.f32 %v1376, %v1378
        %v1417 = vmax.f32 %v1377, %v1379
        %v1418 = vmax.f32 %v1378, %v1380
        %v1419 = vmax.f32 %v1379, %v1381
        %v1420 = vmax.f32 %v1380, %v1382
        %v1421 = vmax.f32 %v1381, %v1383
        %v1422 = vmax.f32 %v1382, %v1384
        %v1423 = vmax.f32 %v1383, %v1385
        %v1424 = vmax.f32 %v1384, %v1386
        %v1425 = vmax.f32 %v1385, %v1387
        %v1426 = vmax.f32 %v1386, %v1388
        %v1427 = vmax.f32 %v1387, %v1389
        %v1428 = vmax.f32 %v1388, %v1390
        %v1429 = vmax.f32 %v1389, %v1391
        %v1430 = vmax.f32 %v1390, %v1392
        %v1431 = vmax.f32 %v1391, %v1393
        %v1432 = vmax.f32 %v1392, %v1394
        %v1433 = vmax.f32 %v1393, %v1395
        %v1434 = vmax.f32 %v1394, %v1396
        %v1435 = vmax.f32 %v1395, %v1397
        %v1436 = vmax.f32 %v1396, %v1398
        %v1437 = vmax.f32 %v1397, %v1399
        %v1438 = vmax.f32 %v1406, %v1370
        %v1439 = vmax.f32 %v1407, %v1371
        %v1440 = vmax.f32 %v1408, %v1372
        %v1441 = vmax.f32 %v1409, %v1373
        %v1442 = vmax.f32 %v1410, %v1374
        %v1443 = vmax.f32 %v1411, %v1375
        %v1444 = vmax.f32 %v1412, %v1376
        %v1445 = vmax.f32 %v1413, %v1377
        %v1446 = vmax.f32 %v1414, %v1378
        %v1447 = vmax.f32 %v1415, %v1379
        %v1448 = vmax.f32 %v1416, %v1380
        %v1449 = vmax.f32 %v1417, %v1381
        %v1450 = vmax.f32 %v1418, %v1382
        %v1451 = vmax.f32 %v1419, %v1383
        %v1452 = vmax.f32 %v1420, %v1384
        %v1453 = vmax.f32 %v1421, %v1385
        %v1454 = vmax.f32 %v1422, %v1386
        %v1455 = vmax.f32 %v1423, %v1387
        %v1456 = vmax.f32 %v1424, %v1388
        %v1457 = vmax.f32 %v1425, %v1389
        %v1458 = vmax.f32 %v1426, %v1390
        %v1459 = vmax.f32 %v1427, %v1391
        %v1460 = vmax.f32 %v1428, %v1392
        %v1461 = vmax.f32 %v1429, %v1393
        %v1462 = vmax.f32 %v1430, %v1394
        %v1463 = vmax.f32 %v1431, %v1395
        %v1464 = vmax.f32 %v1432, %v1396
        %v1465 = vmax.f32 %v1433, %v1397
        %v1466 = vmax.f32 %v1434, %v1398
        %v1467 = vmax.f32 %v1435, %v1399
        %v1468 = vmax.f32 %v1436, %v1400
        %v1469 = vmax.f32 %v1437, %v1401
        %v1470 = vmax.f32 %v1438, %v1372
        %v1471 = vmax.f32 %v1439, %v1373
        %v1472 = vmax.f32 %v1440, %v1374
        %v1473 = vmax.f32 %v1441, %v1375
        %v1474 = vmax.f32 %v1442, %v1376
        %v1475 = vmax.f32 %v1443, %v1377
        %v1476 = vmax.f32 %v1444, %v1378
        %v1477 = vmax.f32 %v1445, %v1379
        %v1478 = vmax.f32 %v1446, %v1380
        %v1479 = vmax.f32 %v1447, %v1381
        %v1480 = vmax.f32 %v1448, %v1382
        %v1481 = vmax.f32 %v1449, %v1383
        %v1482 = vmax.f32 %v1450, %v1384
        %v1483 = vmax.f32 %v1451, %v1385
        %v1484 = vmax.f32 %v1452, %v1386
        %v1485 = vmax.f32 %v1453, %v1387
        %v1486 = vmax.f32 %v1454, %v1388
        %v1487 = vmax.f32 %v1455, %v1389
        %v1488 = vmax.f32 %v1456, %v1390
        %v1489 = vmax.f32 %v1457, %v1391
        %v1490 = vmax.f32 %v1458, %v1392
        %v1491 = vmax.f32 %v1459, %v1393
        %v1492 = vmax.f32 %v1460, %v1394
        %v1493 = vmax.f32 %v1461, %v1395
        %v1494 = vmax.f32 %v1462, %v1396
        %v1495 = vmax.f32 %v1463, %v1397
        %v1496 = vmax.f32 %v1464, %v1398
        %v1497 = vmax.f32 %v1465, %v1399
        %v1498 = vmax.f32 %v1466, %v1400
        %v1499 = vmax.f32 %v1467, %v1401
        %v1500 = vmax.f32 %v1468, %v1402
        %v1501 = vmax.f32 %v1469, %v1403
        %v1502 = vmax.f32 %v1470, %v1374
        %v1503 = vmax.f32 %v1471, %v1375
        %v1504 = vmax.f32 %v1472, %v1376
        %v1505 = vmax.f32 %v1473, %v1377
        %v1506 = vmax.f32 %v1474, %v1378
        %v1507 = vmax.f32 %v1475, %v1379
        %v1508 = vmax.f32 %v1476, %v1380
        %v1509 = vmax.f32 %v1477, %v1381
        %v1510 = vmax.f32 %v1478, %v1382
        %v1511 = vmax.f32 %v1479, %v1383
        %v1512 = vmax.f32 %v1480, %v1384
        %v1513 = vmax.f32 %v1481, %v1385
        %v1514 = vmax.f32 %v1482, %v1386
        %v1515 = vmax.f32 %v1483, %v1387
        %v1516 = vmax.f32 %v1484, %v1388
        %v1517 = vmax.f32 %v1485, %v1389
        %v1518 = vmax.f32 %v1486, %v1390
        %v1519 = vmax.f32 %v1487, %v1391
        %v1520 = vmax.f32 %v1488, %v1392
        %v1521 = vmax.f32 %v1489, %v1393
        %v1522 = vmax.f32 %v1490, %v1394
        %v1523 = vmax.f32 %v1491, %v1395
        %v1524 = vmax.f32 %v1492, %v1396
        %v1525 = vmax.f32 %v1493, %v1397
        %v1526 = vmax.f32 %v1494, %v1398
        %v1527 = vmax.f32 %v1495, %v1399
        %v1528 = vmax.f32 %v1496, %v1400
        %v1529 = vmax.f32 %v1497, %v1401
        %v1530 = vmax.f32 %v1498, %v1402
        %v1531 = vmax.f32 %v1499, %v1403
        %v1532 = vmax.f32 %v1500, %v1404
        %v1533 = vmax.f32 %v1501, %v1405
        %1534 = vst [vmem:[%s1013 + $0x2] sm:$0xff] %v1502
        %1535 = vst [vmem:[%s1013 + $0xa] sm:$0xff] %v1503
        %1536 = vst [vmem:[%s1013 + $0x1a] sm:$0xff] %v1504
        %1537 = vst [vmem:[%s1013 + $0x22] sm:$0xff] %v1505
        %1538 = vst [vmem:[%s1013 + $0x32] sm:$0xff] %v1506
        %1539 = vst [vmem:[%s1013 + $0x3a] sm:$0xff] %v1507
        %1540 = vst [vmem:[%s1013 + $0x4a] sm:$0xff] %v1508
        %1541 = vst [vmem:[%s1013 + $0x52] sm:$0xff] %v1509
        %1542 = vst [vmem:[%s1013 + $0x62] sm:$0xff] %v1510
        %1543 = vst [vmem:[%s1013 + $0x6a] sm:$0xff] %v1511
        %1544 = vst [vmem:[%s1013 + $0x7a] sm:$0xff] %v1512
        %1545 = vst [vmem:[%s1013 + $0x82] sm:$0xff] %v1513
        %1546 = vst [vmem:[%s1013 + $0x92] sm:$0xff] %v1514
        %1547 = vst [vmem:[%s1013 + $0x9a] sm:$0xff] %v1515
        %1548 = vst [vmem:[%s1013 + $0xaa] sm:$0xff] %v1516
        %1549 = vst [vmem:[%s1013 + $0xb2] sm:$0xff] %v1517
        %1550 = vst [vmem:[%s1013 + $0xc2] sm:$0xff] %v1518
        %1551 = vst [vmem:[%s1013 + $0xca] sm:$0xff] %v1519
        %1552 = vst [vmem:[%s1013 + $0xda] sm:$0xff] %v1520
        %1553 = vst [vmem:[%s1013 + $0xe2] sm:$0xff] %v1521
        %1554 = vst [vmem:[%s1013 + $0xf2] sm:$0xff] %v1522
        %1555 = vst [vmem:[%s1013 + $0xfa] sm:$0xff] %v1523
        %1556 = vst [vmem:[%s1013 + $0x10a] sm:$0xff] %v1524
        %1557 = vst [vmem:[%s1013 + $0x112] sm:$0xff] %v1525
        %1558 = vst [vmem:[%s1013 + $0x122] sm:$0xff] %v1526
        %1559 = vst [vmem:[%s1013 + $0x12a] sm:$0xff] %v1527
        %1560 = vst [vmem:[%s1013 + $0x13a] sm:$0xff] %v1528
        %1561 = vst [vmem:[%s1013 + $0x142] sm:$0xff] %v1529
        %1562 = vst [vmem:[%s1013 + $0x152] sm:$0xff] %v1530
        %1563 = vst [vmem:[%s1013 + $0x15a] sm:$0xff] %v1531
        %1564 = vst [vmem:[%s1013 + $0x16a] sm:$0xff] %v1532
        %1565 = vst [vmem:[%s1013 + $0x172] sm:$0xff] %v1533
        %v1566 = vld [vmem:[#allocation2] sm:$0xff]
        %v1567 = vld [vmem:[#allocation2 + $0x8] sm:$0xff]
        %v1568 = vld [vmem:[#allocation2 + $0x18] sm:$0xff]
        %v1569 = vld [vmem:[#allocation2 + $0x20] sm:$0xff]
        %v1570 = vld [vmem:[#allocation2 + $0x30] sm:$0xff]
        %v1571 = vld [vmem:[#allocation2 + $0x38] sm:$0xff]
        %v1572 = vld [vmem:[#allocation2 + $0x48] sm:$0xff]
        %v1573 = vld [vmem:[#allocation2 + $0x50] sm:$0xff]
        %v1574 = vld [vmem:[#allocation2 + $0x60] sm:$0xff]
        %v1575 = vld [vmem:[#allocation2 + $0x68] sm:$0xff]
        %v1576 = vld [vmem:[#allocation2 + $0x78] sm:$0xff]
        %v1577 = vld [vmem:[#allocation2 + $0x80] sm:$0xff]
        %v1578 = vld [vmem:[#allocation2 + $0x90] sm:$0xff]
        %v1579 = vld [vmem:[#allocation2 + $0x98] sm:$0xff]
        %v1580 = vld [vmem:[#allocation2 + $0xa8] sm:$0xff]
        %v1581 = vld [vmem:[#allocation2 + $0xb0] sm:$0xff]
        %v1582 = vld [vmem:[#allocation2 + $0xc0] sm:$0xff]
        %v1583 = vld [vmem:[#allocation2 + $0xc8] sm:$0xff]
        %v1584 = vld [vmem:[#allocation2 + $0xd8] sm:$0xff]
        %v1585 = vld [vmem:[#allocation2 + $0xe0] sm:$0xff]
        %v1586 = vld [vmem:[#allocation2 + $0xf0] sm:$0xff]
        %v1587 = vld [vmem:[#allocation2 + $0xf8] sm:$0xff]
        %v1588 = vld [vmem:[#allocation2 + $0x108] sm:$0xff]
        %v1589 = vld [vmem:[#allocation2 + $0x110] sm:$0xff]
        %v1590 = vld [vmem:[#allocation2 + $0x120] sm:$0xff]
        %v1591 = vld [vmem:[#allocation2 + $0x128] sm:$0xff]
        %v1592 = vld [vmem:[#allocation2 + $0x138] sm:$0xff]
        %v1593 = vld [vmem:[#allocation2 + $0x140] sm:$0xff]
        %v1594 = vld [vmem:[#allocation2 + $0x150] sm:$0xff]
        %v1595 = vld [vmem:[#allocation2 + $0x158] sm:$0xff]
        %v1596 = vld [vmem:[#allocation2 + $0x168] sm:$0xff]
        %v1597 = vld [vmem:[#allocation2 + $0x170] sm:$0xff]
        %v1598 = vld [vmem:[#allocation2 + $0x180] sm:$0xff]
        %v1599 = vld [vmem:[#allocation2 + $0x188] sm:$0xff]
        %v1600 = vld [vmem:[#allocation2 + $0x198] sm:$0xff]
        %v1601 = vld [vmem:[#allocation2 + $0x1a0] sm:$0xff]
        %v1602 = vld [vmem:[#allocation2 + $0x1b0] sm:$0xff]
        %v1603 = vld [vmem:[#allocation2 + $0x1b8] sm:$0xff]
        %v1604 = vld [vmem:[#allocation2 + $0x1c8] sm:$0xff]
        %v1605 = vld [vmem:[#allocation2 + $0x1d0] sm:$0xff]
        %v1606 = vld [vmem:[#allocation2 + $0x1] sm:$0xff]
        %v1607 = vld [vmem:[#allocation2 + $0x9] sm:$0xff]
        %v1608 = vld [vmem:[#allocation2 + $0x19] sm:$0xff]
        %v1609 = vld [vmem:[#allocation2 + $0x21] sm:$0xff]
        %v1610 = vld [vmem:[#allocation2 + $0x31] sm:$0xff]
        %v1611 = vld [vmem:[#allocation2 + $0x39] sm:$0xff]
        %v1612 = vld [vmem:[#allocation2 + $0x49] sm:$0xff]
        %v1613 = vld [vmem:[#allocation2 + $0x51] sm:$0xff]
        %v1614 = vld [vmem:[#allocation2 + $0x61] sm:$0xff]
        %v1615 = vld [vmem:[#allocation2 + $0x69] sm:$0xff]
        %v1616 = vld [vmem:[#allocation2 + $0x79] sm:$0xff]
        %v1617 = vld [vmem:[#allocation2 + $0x81] sm:$0xff]
        %v1618 = vld [vmem:[#allocation2 + $0x91] sm:$0xff]
        %v1619 = vld [vmem:[#allocation2 + $0x99] sm:$0xff]
        %v1620 = vld [vmem:[#allocation2 + $0xa9] sm:$0xff]
        %v1621 = vld [vmem:[#allocation2 + $0xb1] sm:$0xff]
        %v1622 = vld [vmem:[#allocation2 + $0xc1] sm:$0xff]
        %v1623 = vld [vmem:[#allocation2 + $0xc9] sm:$0xff]
        %v1624 = vld [vmem:[#allocation2 + $0xd9] sm:$0xff]
        %v1625 = vld [vmem:[#allocation2 + $0xe1] sm:$0xff]
        %v1626 = vld [vmem:[#allocation2 + $0xf1] sm:$0xff]
        %v1627 = vld [vmem:[#allocation2 + $0xf9] sm:$0xff]
        %v1628 = vld [vmem:[#allocation2 + $0x109] sm:$0xff]
        %v1629 = vld [vmem:[#allocation2 + $0x111] sm:$0xff]
        %v1630 = vld [vmem:[#allocation2 + $0x121] sm:$0xff]
        %v1631 = vld [vmem:[#allocation2 + $0x129] sm:$0xff]
        %v1632 = vld [vmem:[#allocation2 + $0x139] sm:$0xff]
        %v1633 = vld [vmem:[#allocation2 + $0x141] sm:$0xff]
        %v1634 = vld [vmem:[#allocation2 + $0x151] sm:$0xff]
        %v1635 = vld [vmem:[#allocation2 + $0x159] sm:$0xff]
        %v1636 = vld [vmem:[#allocation2 + $0x169] sm:$0xff]
        %v1637 = vld [vmem:[#allocation2 + $0x171] sm:$0xff]
        %v1638 = vld [vmem:[#allocation2 + $0x181] sm:$0xff]
        %v1639 = vld [vmem:[#allocation2 + $0x189] sm:$0xff]
        %v1640 = vld [vmem:[#allocation2 + $0x199] sm:$0xff]
        %v1641 = vld [vmem:[#allocation2 + $0x1a1] sm:$0xff]
        %v1642 = vld [vmem:[#allocation2 + $0x1b1] sm:$0xff]
        %v1643 = vld [vmem:[#allocation2 + $0x1b9] sm:$0xff]
        %v1644 = vld [vmem:[#allocation2 + $0x1c9] sm:$0xff]
        %v1645 = vld [vmem:[#allocation2 + $0x1d1] sm:$0xff]
        %v1646 = vmax.f32 %v1566, %v1606
        %v1647 = vmax.f32 %v1567, %v1607
        %v1648 = vmax.f32 %v1568, %v1608
        %v1649 = vmax.f32 %v1569, %v1609
        %v1650 = vmax.f32 %v1570, %v1610
        %v1651 = vmax.f32 %v1571, %v1611
        %v1652 = vmax.f32 %v1572, %v1612
        %v1653 = vmax.f32 %v1573, %v1613
        %v1654 = vmax.f32 %v1574, %v1614
        %v1655 = vmax.f32 %v1575, %v1615
        %v1656 = vmax.f32 %v1576, %v1616
        %v1657 = vmax.f32 %v1577, %v1617
        %v1658 = vmax.f32 %v1578, %v1618
        %v1659 = vmax.f32 %v1579, %v1619
        %v1660 = vmax.f32 %v1580, %v1620
        %v1661 = vmax.f32 %v1581, %v1621
        %v1662 = vmax.f32 %v1582, %v1622
        %v1663 = vmax.f32 %v1583, %v1623
        %v1664 = vmax.f32 %v1584, %v1624
        %v1665 = vmax.f32 %v1585, %v1625
        %v1666 = vmax.f32 %v1586, %v1626
        %v1667 = vmax.f32 %v1587, %v1627
        %v1668 = vmax.f32 %v1588, %v1628
        %v1669 = vmax.f32 %v1589, %v1629
        %v1670 = vmax.f32 %v1590, %v1630
        %v1671 = vmax.f32 %v1591, %v1631
        %v1672 = vmax.f32 %v1592, %v1632
        %v1673 = vmax.f32 %v1593, %v1633
        %v1674 = vmax.f32 %v1594, %v1634
        %v1675 = vmax.f32 %v1595, %v1635
        %v1676 = vmax.f32 %v1596, %v1636
        %v1677 = vmax.f32 %v1597, %v1637
        %v1678 = vmax.f32 %v1598, %v1638
        %v1679 = vmax.f32 %v1599, %v1639
        %v1680 = vmax.f32 %v1600, %v1640
        %v1681 = vmax.f32 %v1601, %v1641
        %v1682 = vmax.f32 %v1602, %v1642
        %v1683 = vmax.f32 %v1603, %v1643
        %v1684 = vmax.f32 %v1604, %v1644
        %v1685 = vmax.f32 %v1605, %v1645
        %v1686 = vld [vmem:[#allocation2 + $0x2] sm:$0xff]
        %v1687 = vld [vmem:[#allocation2 + $0xa] sm:$0xff]
        %v1688 = vld [vmem:[#allocation2 + $0x1a] sm:$0xff]
        %v1689 = vld [vmem:[#allocation2 + $0x22] sm:$0xff]
        %v1690 = vld [vmem:[#allocation2 + $0x32] sm:$0xff]
        %v1691 = vld [vmem:[#allocation2 + $0x3a] sm:$0xff]
        %v1692 = vld [vmem:[#allocation2 + $0x4a] sm:$0xff]
        %v1693 = vld [vmem:[#allocation2 + $0x52] sm:$0xff]
        %v1694 = vld [vmem:[#allocation2 + $0x62] sm:$0xff]
        %v1695 = vld [vmem:[#allocation2 + $0x6a] sm:$0xff]
        %v1696 = vld [vmem:[#allocation2 + $0x7a] sm:$0xff]
        %v1697 = vld [vmem:[#allocation2 + $0x82] sm:$0xff]
        %v1698 = vld [vmem:[#allocation2 + $0x92] sm:$0xff]
        %v1699 = vld [vmem:[#allocation2 + $0x9a] sm:$0xff]
        %v1700 = vld [vmem:[#allocation2 + $0xaa] sm:$0xff]
        %v1701 = vld [vmem:[#allocation2 + $0xb2] sm:$0xff]
        %v1702 = vld [vmem:[#allocation2 + $0xc2] sm:$0xff]
        %v1703 = vld [vmem:[#allocation2 + $0xca] sm:$0xff]
        %v1704 = vld [vmem:[#allocation2 + $0xda] sm:$0xff]
        %v1705 = vld [vmem:[#allocation2 + $0xe2] sm:$0xff]
        %v1706 = vld [vmem:[#allocation2 + $0xf2] sm:$0xff]
        %v1707 = vld [vmem:[#allocation2 + $0xfa] sm:$0xff]
        %v1708 = vld [vmem:[#allocation2 + $0x10a] sm:$0xff]
        %v1709 = vld [vmem:[#allocation2 + $0x112] sm:$0xff]
        %v1710 = vld [vmem:[#allocation2 + $0x122] sm:$0xff]
        %v1711 = vld [vmem:[#allocation2 + $0x12a] sm:$0xff]
        %v1712 = vld [vmem:[#allocation2 + $0x13a] sm:$0xff]
        %v1713 = vld [vmem:[#allocation2 + $0x142] sm:$0xff]
        %v1714 = vld [vmem:[#allocation2 + $0x152] sm:$0xff]
        %v1715 = vld [vmem:[#allocation2 + $0x15a] sm:$0xff]
        %v1716 = vld [vmem:[#allocation2 + $0x16a] sm:$0xff]
        %v1717 = vld [vmem:[#allocation2 + $0x172] sm:$0xff]
        %v1718 = vld [vmem:[#allocation2 + $0x182] sm:$0xff]
        %v1719 = vld [vmem:[#allocation2 + $0x18a] sm:$0xff]
        %v1720 = vld [vmem:[#allocation2 + $0x19a] sm:$0xff]
        %v1721 = vld [vmem:[#allocation2 + $0x1a2] sm:$0xff]
        %v1722 = vld [vmem:[#allocation2 + $0x1b2] sm:$0xff]
        %v1723 = vld [vmem:[#allocation2 + $0x1ba] sm:$0xff]
        %v1724 = vld [vmem:[#allocation2 + $0x1ca] sm:$0xff]
        %v1725 = vld [vmem:[#allocation2 + $0x1d2] sm:$0xff]
        %v1726 = vmax.f32 %v1646, %v1686
        %v1727 = vmax.f32 %v1647, %v1687
        %v1728 = vmax.f32 %v1648, %v1688
        %v1729 = vmax.f32 %v1649, %v1689
        %v1730 = vmax.f32 %v1650, %v1690
        %v1731 = vmax.f32 %v1651, %v1691
        %v1732 = vmax.f32 %v1652, %v1692
        %v1733 = vmax.f32 %v1653, %v1693
        %v1734 = vmax.f32 %v1654, %v1694
        %v1735 = vmax.f32 %v1655, %v1695
        %v1736 = vmax.f32 %v1656, %v1696
        %v1737 = vmax.f32 %v1657, %v1697
        %v1738 = vmax.f32 %v1658, %v1698
        %v1739 = vmax.f32 %v1659, %v1699
        %v1740 = vmax.f32 %v1660, %v1700
        %v1741 = vmax.f32 %v1661, %v1701
        %v1742 = vmax.f32 %v1662, %v1702
        %v1743 = vmax.f32 %v1663, %v1703
        %v1744 = vmax.f32 %v1664, %v1704
        %v1745 = vmax.f32 %v1665, %v1705
        %v1746 = vmax.f32 %v1666, %v1706
        %v1747 = vmax.f32 %v1667, %v1707
        %v1748 = vmax.f32 %v1668, %v1708
        %v1749 = vmax.f32 %v1669, %v1709
        %v1750 = vmax.f32 %v1670, %v1710
        %v1751 = vmax.f32 %v1671, %v1711
        %v1752 = vmax.f32 %v1672, %v1712
        %v1753 = vmax.f32 %v1673, %v1713
        %v1754 = vmax.f32 %v1674, %v1714
        %v1755 = vmax.f32 %v1675, %v1715
        %v1756 = vmax.f32 %v1676, %v1716
        %v1757 = vmax.f32 %v1677, %v1717
        %v1758 = vmax.f32 %v1678, %v1718
        %v1759 = vmax.f32 %v1679, %v1719
        %v1760 = vmax.f32 %v1680, %v1720
        %v1761 = vmax.f32 %v1681, %v1721
        %v1762 = vmax.f32 %v1682, %v1722
        %v1763 = vmax.f32 %v1683, %v1723
        %v1764 = vmax.f32 %v1684, %v1724
        %v1765 = vmax.f32 %v1685, %v1725
        %v1766 = vld [vmem:[#allocation2 + $0x3] sm:$0xff]
        %v1767 = vld [vmem:[#allocation2 + $0xb] sm:$0xff]
        %v1768 = vld [vmem:[#allocation2 + $0x1b] sm:$0xff]
        %v1769 = vld [vmem:[#allocation2 + $0x23] sm:$0xff]
        %v1770 = vld [vmem:[#allocation2 + $0x33] sm:$0xff]
        %v1771 = vld [vmem:[#allocation2 + $0x3b] sm:$0xff]
        %v1772 = vld [vmem:[#allocation2 + $0x4b] sm:$0xff]
        %v1773 = vld [vmem:[#allocation2 + $0x53] sm:$0xff]
        %v1774 = vld [vmem:[#allocation2 + $0x63] sm:$0xff]
        %v1775 = vld [vmem:[#allocation2 + $0x6b] sm:$0xff]
        %v1776 = vld [vmem:[#allocation2 + $0x7b] sm:$0xff]
        %v1777 = vld [vmem:[#allocation2 + $0x83] sm:$0xff]
        %v1778 = vld [vmem:[#allocation2 + $0x93] sm:$0xff]
        %v1779 = vld [vmem:[#allocation2 + $0x9b] sm:$0xff]
        %v1780 = vld [vmem:[#allocation2 + $0xab] sm:$0xff]
        %v1781 = vld [vmem:[#allocation2 + $0xb3] sm:$0xff]
        %v1782 = vld [vmem:[#allocation2 + $0xc3] sm:$0xff]
        %v1783 = vld [vmem:[#allocation2 + $0xcb] sm:$0xff]
        %v1784 = vld [vmem:[#allocation2 + $0xdb] sm:$0xff]
        %v1785 = vld [vmem:[#allocation2 + $0xe3] sm:$0xff]
        %v1786 = vld [vmem:[#allocation2 + $0xf3] sm:$0xff]
        %v1787 = vld [vmem:[#allocation2 + $0xfb] sm:$0xff]
        %v1788 = vld [vmem:[#allocation2 + $0x10b] sm:$0xff]
        %v1789 = vld [vmem:[#allocation2 + $0x113] sm:$0xff]
        %v1790 = vld [vmem:[#allocation2 + $0x123] sm:$0xff]
        %v1791 = vld [vmem:[#allocation2 + $0x12b] sm:$0xff]
        %v1792 = vld [vmem:[#allocation2 + $0x13b] sm:$0xff]
        %v1793 = vld [vmem:[#allocation2 + $0x143] sm:$0xff]
        %v1794 = vld [vmem:[#allocation2 + $0x153] sm:$0xff]
        %v1795 = vld [vmem:[#allocation2 + $0x15b] sm:$0xff]
        %v1796 = vld [vmem:[#allocation2 + $0x16b] sm:$0xff]
        %v1797 = vld [vmem:[#allocation2 + $0x173] sm:$0xff]
        %v1798 = vld [vmem:[#allocation2 + $0x183] sm:$0xff]
        %v1799 = vld [vmem:[#allocation2 + $0x18b] sm:$0xff]
        %v1800 = vld [vmem:[#allocation2 + $0x19b] sm:$0xff]
        %v1801 = vld [vmem:[#allocation2 + $0x1a3] sm:$0xff]
        %v1802 = vld [vmem:[#allocation2 + $0x1b3] sm:$0xff]
        %v1803 = vld [vmem:[#allocation2 + $0x1bb] sm:$0xff]
        %v1804 = vld [vmem:[#allocation2 + $0x1cb] sm:$0xff]
        %v1805 = vld [vmem:[#allocation2 + $0x1d3] sm:$0xff]
        %v1806 = vmax.f32 %v1726, %v1766
        %v1807 = vmax.f32 %v1727, %v1767
        %v1808 = vmax.f32 %v1728, %v1768
        %v1809 = vmax.f32 %v1729, %v1769
        %v1810 = vmax.f32 %v1730, %v1770
        %v1811 = vmax.f32 %v1731, %v1771
        %v1812 = vmax.f32 %v1732, %v1772
        %v1813 = vmax.f32 %v1733, %v1773
        %v1814 = vmax.f32 %v1734, %v1774
        %v1815 = vmax.f32 %v1735, %v1775
        %v1816 = vmax.f32 %v1736, %v1776
        %v1817 = vmax.f32 %v1737, %v1777
        %v1818 = vmax.f32 %v1738, %v1778
        %v1819 = vmax.f32 %v1739, %v1779
        %v1820 = vmax.f32 %v1740, %v1780
        %v1821 = vmax.f32 %v1741, %v1781
        %v1822 = vmax.f32 %v1742, %v1782
        %v1823 = vmax.f32 %v1743, %v1783
        %v1824 = vmax.f32 %v1744, %v1784
        %v1825 = vmax.f32 %v1745, %v1785
        %v1826 = vmax.f32 %v1746, %v1786
        %v1827 = vmax.f32 %v1747, %v1787
        %v1828 = vmax.f32 %v1748, %v1788
        %v1829 = vmax.f32 %v1749, %v1789
        %v1830 = vmax.f32 %v1750, %v1790
        %v1831 = vmax.f32 %v1751, %v1791
        %v1832 = vmax.f32 %v1752, %v1792
        %v1833 = vmax.f32 %v1753, %v1793
        %v1834 = vmax.f32 %v1754, %v1794
        %v1835 = vmax.f32 %v1755, %v1795
        %v1836 = vmax.f32 %v1756, %v1796
        %v1837 = vmax.f32 %v1757, %v1797
        %v1838 = vmax.f32 %v1758, %v1798
        %v1839 = vmax.f32 %v1759, %v1799
        %v1840 = vmax.f32 %v1760, %v1800
        %v1841 = vmax.f32 %v1761, %v1801
        %v1842 = vmax.f32 %v1762, %v1802
        %v1843 = vmax.f32 %v1763, %v1803
        %v1844 = vmax.f32 %v1764, %v1804
        %v1845 = vmax.f32 %v1765, %v1805
        %v1846 = vld [vmem:[#allocation2 + $0x4] sm:$0xff]
        %v1847 = vld [vmem:[#allocation2 + $0xc] sm:$0xff]
        %v1848 = vld [vmem:[#allocation2 + $0x1c] sm:$0xff]
        %v1849 = vld [vmem:[#allocation2 + $0x24] sm:$0xff]
        %v1850 = vld [vmem:[#allocation2 + $0x34] sm:$0xff]
        %v1851 = vld [vmem:[#allocation2 + $0x3c] sm:$0xff]
        %v1852 = vld [vmem:[#allocation2 + $0x4c] sm:$0xff]
        %v1853 = vld [vmem:[#allocation2 + $0x54] sm:$0xff]
        %v1854 = vld [vmem:[#allocation2 + $0x64] sm:$0xff]
        %v1855 = vld [vmem:[#allocation2 + $0x6c] sm:$0xff]
        %v1856 = vld [vmem:[#allocation2 + $0x7c] sm:$0xff]
        %v1857 = vld [vmem:[#allocation2 + $0x84] sm:$0xff]
        %v1858 = vld [vmem:[#allocation2 + $0x94] sm:$0xff]
        %v1859 = vld [vmem:[#allocation2 + $0x9c] sm:$0xff]
        %v1860 = vld [vmem:[#allocation2 + $0xac] sm:$0xff]
        %v1861 = vld [vmem:[#allocation2 + $0xb4] sm:$0xff]
        %v1862 = vld [vmem:[#allocation2 + $0xc4] sm:$0xff]
        %v1863 = vld [vmem:[#allocation2 + $0xcc] sm:$0xff]
        %v1864 = vld [vmem:[#allocation2 + $0xdc] sm:$0xff]
        %v1865 = vld [vmem:[#allocation2 + $0xe4] sm:$0xff]
        %v1866 = vld [vmem:[#allocation2 + $0xf4] sm:$0xff]
        %v1867 = vld [vmem:[#allocation2 + $0xfc] sm:$0xff]
        %v1868 = vld [vmem:[#allocation2 + $0x10c] sm:$0xff]
        %v1869 = vld [vmem:[#allocation2 + $0x114] sm:$0xff]
        %v1870 = vld [vmem:[#allocation2 + $0x124] sm:$0xff]
        %v1871 = vld [vmem:[#allocation2 + $0x12c] sm:$0xff]
        %v1872 = vld [vmem:[#allocation2 + $0x13c] sm:$0xff]
        %v1873 = vld [vmem:[#allocation2 + $0x144] sm:$0xff]
        %v1874 = vld [vmem:[#allocation2 + $0x154] sm:$0xff]
        %v1875 = vld [vmem:[#allocation2 + $0x15c] sm:$0xff]
        %v1876 = vld [vmem:[#allocation2 + $0x16c] sm:$0xff]
        %v1877 = vld [vmem:[#allocation2 + $0x174] sm:$0xff]
        %v1878 = vld [vmem:[#allocation2 + $0x184] sm:$0xff]
        %v1879 = vld [vmem:[#allocation2 + $0x18c] sm:$0xff]
        %v1880 = vld [vmem:[#allocation2 + $0x19c] sm:$0xff]
        %v1881 = vld [vmem:[#allocation2 + $0x1a4] sm:$0xff]
        %v1882 = vld [vmem:[#allocation2 + $0x1b4] sm:$0xff]
        %v1883 = vld [vmem:[#allocation2 + $0x1bc] sm:$0xff]
        %v1884 = vld [vmem:[#allocation2 + $0x1cc] sm:$0xff]
        %v1885 = vld [vmem:[#allocation2 + $0x1d4] sm:$0xff]
        %v1886 = vmax.f32 %v1806, %v1846
        %v1887 = vmax.f32 %v1807, %v1847
        %v1888 = vmax.f32 %v1808, %v1848
        %v1889 = vmax.f32 %v1809, %v1849
        %v1890 = vmax.f32 %v1810, %v1850
        %v1891 = vmax.f32 %v1811, %v1851
        %v1892 = vmax.f32 %v1812, %v1852
        %v1893 = vmax.f32 %v1813, %v1853
        %v1894 = vmax.f32 %v1814, %v1854
        %v1895 = vmax.f32 %v1815, %v1855
        %v1896 = vmax.f32 %v1816, %v1856
        %v1897 = vmax.f32 %v1817, %v1857
        %v1898 = vmax.f32 %v1818, %v1858
        %v1899 = vmax.f32 %v1819, %v1859
        %v1900 = vmax.f32 %v1820, %v1860
        %v1901 = vmax.f32 %v1821, %v1861
        %v1902 = vmax.f32 %v1822, %v1862
        %v1903 = vmax.f32 %v1823, %v1863
        %v1904 = vmax.f32 %v1824, %v1864
        %v1905 = vmax.f32 %v1825, %v1865
        %v1906 = vmax.f32 %v1826, %v1866
        %v1907 = vmax.f32 %v1827, %v1867
        %v1908 = vmax.f32 %v1828, %v1868
        %v1909 = vmax.f32 %v1829, %v1869
        %v1910 = vmax.f32 %v1830, %v1870
        %v1911 = vmax.f32 %v1831, %v1871
        %v1912 = vmax.f32 %v1832, %v1872
        %v1913 = vmax.f32 %v1833, %v1873
        %v1914 = vmax.f32 %v1834, %v1874
        %v1915 = vmax.f32 %v1835, %v1875
        %v1916 = vmax.f32 %v1836, %v1876
        %v1917 = vmax.f32 %v1837, %v1877
        %v1918 = vmax.f32 %v1838, %v1878
        %v1919 = vmax.f32 %v1839, %v1879
        %v1920 = vmax.f32 %v1840, %v1880
        %v1921 = vmax.f32 %v1841, %v1881
        %v1922 = vmax.f32 %v1842, %v1882
        %v1923 = vmax.f32 %v1843, %v1883
        %v1924 = vmax.f32 %v1844, %v1884
        %v1925 = vmax.f32 %v1845, %v1885
        %v1926 = vmax.f32 %v1886, %v1888
        %v1927 = vmax.f32 %v1887, %v1889
        %v1928 = vmax.f32 %v1888, %v1890
        %v1929 = vmax.f32 %v1889, %v1891
        %v1930 = vmax.f32 %v1890, %v1892
        %v1931 = vmax.f32 %v1891, %v1893
        %v1932 = vmax.f32 %v1892, %v1894
        %v1933 = vmax.f32 %v1893, %v1895
        %v1934 = vmax.f32 %v1894, %v1896
        %v1935 = vmax.f32 %v1895, %v1897
        %v1936 = vmax.f32 %v1896, %v1898
        %v1937 = vmax.f32 %v1897, %v1899
        %v1938 = vmax.f32 %v1898, %v1900
        %v1939 = vmax.f32 %v1899, %v1901
        %v1940 = vmax.f32 %v1900, %v1902
        %v1941 = vmax.f32 %v1901, %v1903
        %v1942 = vmax.f32 %v1902, %v1904
        %v1943 = vmax.f32 %v1903, %v1905
        %v1944 = vmax.f32 %v1904, %v1906
        %v1945 = vmax.f32 %v1905, %v1907
        %v1946 = vmax.f32 %v1906, %v1908
        %v1947 = vmax.f32 %v1907, %v1909
        %v1948 = vmax.f32 %v1908, %v1910
        %v1949 = vmax.f32 %v1909, %v1911
        %v1950 = vmax.f32 %v1910, %v1912
        %v1951 = vmax.f32 %v1911, %v1913
        %v1952 = vmax.f32 %v1912, %v1914
        %v1953 = vmax.f32 %v1913, %v1915
        %v1954 = vmax.f32 %v1914, %v1916
        %v1955 = vmax.f32 %v1915, %v1917
        %v1956 = vmax.f32 %v1916, %v1918
        %v1957 = vmax.f32 %v1917, %v1919
        %v1958 = vmax.f32 %v1926, %v1890
        %v1959 = vmax.f32 %v1927, %v1891
        %v1960 = vmax.f32 %v1928, %v1892
        %v1961 = vmax.f32 %v1929, %v1893
        %v1962 = vmax.f32 %v1930, %v1894
        %v1963 = vmax.f32 %v1931, %v1895
        %v1964 = vmax.f32 %v1932, %v1896
        %v1965 = vmax.f32 %v1933, %v1897
        %v1966 = vmax.f32 %v1934, %v1898
        %v1967 = vmax.f32 %v1935, %v1899
        %v1968 = vmax.f32 %v1936, %v1900
        %v1969 = vmax.f32 %v1937, %v1901
        %v1970 = vmax.f32 %v1938, %v1902
        %v1971 = vmax.f32 %v1939, %v1903
        %v1972 = vmax.f32 %v1940, %v1904
        %v1973 = vmax.f32 %v1941, %v1905
        %v1974 = vmax.f32 %v1942, %v1906
        %v1975 = vmax.f32 %v1943, %v1907
        %v1976 = vmax.f32 %v1944, %v1908
        %v1977 = vmax.f32 %v1945, %v1909
        %v1978 = vmax.f32 %v1946, %v1910
        %v1979 = vmax.f32 %v1947, %v1911
        %v1980 = vmax.f32 %v1948, %v1912
        %v1981 = vmax.f32 %v1949, %v1913
        %v1982 = vmax.f32 %v1950, %v1914
        %v1983 = vmax.f32 %v1951, %v1915
        %v1984 = vmax.f32 %v1952, %v1916
        %v1985 = vmax.f32 %v1953, %v1917
        %v1986 = vmax.f32 %v1954, %v1918
        %v1987 = vmax.f32 %v1955, %v1919
        %v1988 = vmax.f32 %v1956, %v1920
        %v1989 = vmax.f32 %v1957, %v1921
        %v1990 = vmax.f32 %v1958, %v1892
        %v1991 = vmax.f32 %v1959, %v1893
        %v1992 = vmax.f32 %v1960, %v1894
        %v1993 = vmax.f32 %v1961, %v1895
        %v1994 = vmax.f32 %v1962, %v1896
        %v1995 = vmax.f32 %v1963, %v1897
        %v1996 = vmax.f32 %v1964, %v1898
        %v1997 = vmax.f32 %v1965, %v1899
        %v1998 = vmax.f32 %v1966, %v1900
        %v1999 = vmax.f32 %v1967, %v1901
        %v2000 = vmax.f32 %v1968, %v1902
        %v2001 = vmax.f32 %v1969, %v1903
        %v2002 = vmax.f32 %v1970, %v1904
        %v2003 = vmax.f32 %v1971, %v1905
        %v2004 = vmax.f32 %v1972, %v1906
        %v2005 = vmax.f32 %v1973, %v1907
        %v2006 = vmax.f32 %v1974, %v1908
        %v2007 = vmax.f32 %v1975, %v1909
        %v2008 = vmax.f32 %v1976, %v1910
        %v2009 = vmax.f32 %v1977, %v1911
        %v2010 = vmax.f32 %v1978, %v1912
        %v2011 = vmax.f32 %v1979, %v1913
        %v2012 = vmax.f32 %v1980, %v1914
        %v2013 = vmax.f32 %v1981, %v1915
        %v2014 = vmax.f32 %v1982, %v1916
        %v2015 = vmax.f32 %v1983, %v1917
        %v2016 = vmax.f32 %v1984, %v1918
        %v2017 = vmax.f32 %v1985, %v1919
        %v2018 = vmax.f32 %v1986, %v1920
        %v2019 = vmax.f32 %v1987, %v1921
        %v2020 = vmax.f32 %v1988, %v1922
        %v2021 = vmax.f32 %v1989, %v1923
        %v2022 = vmax.f32 %v1990, %v1894
        %v2023 = vmax.f32 %v1991, %v1895
        %v2024 = vmax.f32 %v1992, %v1896
        %v2025 = vmax.f32 %v1993, %v1897
        %v2026 = vmax.f32 %v1994, %v1898
        %v2027 = vmax.f32 %v1995, %v1899
        %v2028 = vmax.f32 %v1996, %v1900
        %v2029 = vmax.f32 %v1997, %v1901
        %v2030 = vmax.f32 %v1998, %v1902
        %v2031 = vmax.f32 %v1999, %v1903
        %v2032 = vmax.f32 %v2000, %v1904
        %v2033 = vmax.f32 %v2001, %v1905
        %v2034 = vmax.f32 %v2002, %v1906
        %v2035 = vmax.f32 %v2003, %v1907
        %v2036 = vmax.f32 %v2004, %v1908
        %v2037 = vmax.f32 %v2005, %v1909
        %v2038 = vmax.f32 %v2006, %v1910
        %v2039 = vmax.f32 %v2007, %v1911
        %v2040 = vmax.f32 %v2008, %v1912
        %v2041 = vmax.f32 %v2009, %v1913
        %v2042 = vmax.f32 %v2010, %v1914
        %v2043 = vmax.f32 %v2011, %v1915
        %v2044 = vmax.f32 %v2012, %v1916
        %v2045 = vmax.f32 %v2013, %v1917
        %v2046 = vmax.f32 %v2014, %v1918
        %v2047 = vmax.f32 %v2015, %v1919
        %v2048 = vmax.f32 %v2016, %v1920
        %v2049 = vmax.f32 %v2017, %v1921
        %v2050 = vmax.f32 %v2018, %v1922
        %v2051 = vmax.f32 %v2019, %v1923
        %v2052 = vmax.f32 %v2020, %v1924
        %v2053 = vmax.f32 %v2021, %v1925
        %2054 = vst [vmem:[%s1013 + $0x2] sm:$0xff] %v2022
        %2055 = vst [vmem:[%s1013 + $0xa] sm:$0xff] %v2023
        %2056 = vst [vmem:[%s1013 + $0x1a] sm:$0xff] %v2024
        %2057 = vst [vmem:[%s1013 + $0x22] sm:$0xff] %v2025
        %2058 = vst [vmem:[%s1013 + $0x32] sm:$0xff] %v2026
        %2059 = vst [vmem:[%s1013 + $0x3a] sm:$0xff] %v2027
        %2060 = vst [vmem:[%s1013 + $0x4a] sm:$0xff] %v2028
        %2061 = vst [vmem:[%s1013 + $0x52] sm:$0xff] %v2029
        %2062 = vst [vmem:[%s1013 + $0x62] sm:$0xff] %v2030
        %2063 = vst [vmem:[%s1013 + $0x6a] sm:$0xff] %v2031
        %2064 = vst [vmem:[%s1013 + $0x7a] sm:$0xff] %v2032
        %2065 = vst [vmem:[%s1013 + $0x82] sm:$0xff] %v2033
        %2066 = vst [vmem:[%s1013 + $0x92] sm:$0xff] %v2034
        %2067 = vst [vmem:[%s1013 + $0x9a] sm:$0xff] %v2035
        %2068 = vst [vmem:[%s1013 + $0xaa] sm:$0xff] %v2036
        %2069 = vst [vmem:[%s1013 + $0xb2] sm:$0xff] %v2037
        %2070 = vst [vmem:[%s1013 + $0xc2] sm:$0xff] %v2038
        %2071 = vst [vmem:[%s1013 + $0xca] sm:$0xff] %v2039
        %2072 = vst [vmem:[%s1013 + $0xda] sm:$0xff] %v2040
        %2073 = vst [vmem:[%s1013 + $0xe2] sm:$0xff] %v2041
        %2074 = vst [vmem:[%s1013 + $0xf2] sm:$0xff] %v2042
        %2075 = vst [vmem:[%s1013 + $0xfa] sm:$0xff] %v2043
        %2076 = vst [vmem:[%s1013 + $0x10a] sm:$0xff] %v2044
        %2077 = vst [vmem:[%s1013 + $0x112] sm:$0xff] %v2045
        %2078 = vst [vmem:[%s1013 + $0x122] sm:$0xff] %v2046
        %2079 = vst [vmem:[%s1013 + $0x12a] sm:$0xff] %v2047
        %2080 = vst [vmem:[%s1013 + $0x13a] sm:$0xff] %v2048
        %2081 = vst [vmem:[%s1013 + $0x142] sm:$0xff] %v2049
        %2082 = vst [vmem:[%s1013 + $0x152] sm:$0xff] %v2050
        %2083 = vst [vmem:[%s1013 + $0x15a] sm:$0xff] %v2051
        %2084 = vst [vmem:[%s1013 + $0x16a] sm:$0xff] %v2052
        %2085 = vst [vmem:[%s1013 + $0x172] sm:$0xff] %v2053
        %v2086 = vld [vmem:[#allocation2] sm:$0xff]
        %v2087 = vld [vmem:[#allocation2 + $0x8] sm:$0xff]
        %v2088 = vld [vmem:[#allocation2 + $0x18] sm:$0xff]
        %v2089 = vld [vmem:[#allocation2 + $0x20] sm:$0xff]
        %v2090 = vld [vmem:[#allocation2 + $0x30] sm:$0xff]
        %v2091 = vld [vmem:[#allocation2 + $0x38] sm:$0xff]
        %v2092 = vld [vmem:[#allocation2 + $0x48] sm:$0xff]
        %v2093 = vld [vmem:[#allocation2 + $0x50] sm:$0xff]
        %v2094 = vld [vmem:[#allocation2 + $0x60] sm:$0xff]
        %v2095 = vld [vmem:[#allocation2 + $0x68] sm:$0xff]
        %v2096 = vld [vmem:[#allocation2 + $0x78] sm:$0xff]
        %v2097 = vld [vmem:[#allocation2 + $0x80] sm:$0xff]
        %v2098 = vld [vmem:[#allocation2 + $0x90] sm:$0xff]
        %v2099 = vld [vmem:[#allocation2 + $0x98] sm:$0xff]
        %v2100 = vld [vmem:[#allocation2 + $0xa8] sm:$0xff]
        %v2101 = vld [vmem:[#allocation2 + $0xb0] sm:$0xff]
        %v2102 = vld [vmem:[#allocation2 + $0xc0] sm:$0xff]
        %v2103 = vld [vmem:[#allocation2 + $0xc8] sm:$0xff]
        %v2104 = vld [vmem:[#allocation2 + $0xd8] sm:$0xff]
        %v2105 = vld [vmem:[#allocation2 + $0xe0] sm:$0xff]
        %v2106 = vld [vmem:[#allocation2 + $0xf0] sm:$0xff]
        %v2107 = vld [vmem:[#allocation2 + $0xf8] sm:$0xff]
        %v2108 = vld [vmem:[#allocation2 + $0x108] sm:$0xff]
        %v2109 = vld [vmem:[#allocation2 + $0x110] sm:$0xff]
        %v2110 = vld [vmem:[#allocation2 + $0x120] sm:$0xff]
        %v2111 = vld [vmem:[#allocation2 + $0x128] sm:$0xff]
        %v2112 = vld [vmem:[#allocation2 + $0x138] sm:$0xff]
        %v2113 = vld [vmem:[#allocation2 + $0x140] sm:$0xff]
        %v2114 = vld [vmem:[#allocation2 + $0x150] sm:$0xff]
        %v2115 = vld [vmem:[#allocation2 + $0x158] sm:$0xff]
        %v2116 = vld [vmem:[#allocation2 + $0x168] sm:$0xff]
        %v2117 = vld [vmem:[#allocation2 + $0x170] sm:$0xff]
        %v2118 = vld [vmem:[#allocation2 + $0x180] sm:$0xff]
        %v2119 = vld [vmem:[#allocation2 + $0x188] sm:$0xff]
        %v2120 = vld [vmem:[#allocation2 + $0x198] sm:$0xff]
        %v2121 = vld [vmem:[#allocation2 + $0x1a0] sm:$0xff]
        %v2122 = vld [vmem:[#allocation2 + $0x1b0] sm:$0xff]
        %v2123 = vld [vmem:[#allocation2 + $0x1b8] sm:$0xff]
        %v2124 = vld [vmem:[#allocation2 + $0x1c8] sm:$0xff]
        %v2125 = vld [vmem:[#allocation2 + $0x1d0] sm:$0xff]
        %v2126 = vld [vmem:[#allocation2 + $0x1] sm:$0xff]
        %v2127 = vld [vmem:[#allocation2 + $0x9] sm:$0xff]
        %v2128 = vld [vmem:[#allocation2 + $0x19] sm:$0xff]
        %v2129 = vld [vmem:[#allocation2 + $0x21] sm:$0xff]
        %v2130 = vld [vmem:[#allocation2 + $0x31] sm:$0xff]
        %v2131 = vld [vmem:[#allocation2 + $0x39] sm:$0xff]
        %v2132 = vld [vmem:[#allocation2 + $0x49] sm:$0xff]
        %v2133 = vld [vmem:[#allocation2 + $0x51] sm:$0xff]
        %v2134 = vld [vmem:[#allocation2 + $0x61] sm:$0xff]
        %v2135 = vld [vmem:[#allocation2 + $0x69] sm:$0xff]
        %v2136 = vld [vmem:[#allocation2 + $0x79] sm:$0xff]
        %v2137 = vld [vmem:[#allocation2 + $0x81] sm:$0xff]
        %v2138 = vld [vmem:[#allocation2 + $0x91] sm:$0xff]
        %v2139 = vld [vmem:[#allocation2 + $0x99] sm:$0xff]
        %v2140 = vld [vmem:[#allocation2 + $0xa9] sm:$0xff]
        %v2141 = vld [vmem:[#allocation2 + $0xb1] sm:$0xff]
        %v2142 = vld [vmem:[#allocation2 + $0xc1] sm:$0xff]
        %v2143 = vld [vmem:[#allocation2 + $0xc9] sm:$0xff]
        %v2144 = vld [vmem:[#allocation2 + $0xd9] sm:$0xff]
        %v2145 = vld [vmem:[#allocation2 + $0xe1] sm:$0xff]
        %v2146 = vld [vmem:[#allocation2 + $0xf1] sm:$0xff]
        %v2147 = vld [vmem:[#allocation2 + $0xf9] sm:$0xff]
        %v2148 = vld [vmem:[#allocation2 + $0x109] sm:$0xff]
        %v2149 = vld [vmem:[#allocation2 + $0x111] sm:$0xff]
        %v2150 = vld [vmem:[#allocation2 + $0x121] sm:$0xff]
        %v2151 = vld [vmem:[#allocation2 + $0x129] sm:$0xff]
        %v2152 = vld [vmem:[#allocation2 + $0x139] sm:$0xff]
        %v2153 = vld [vmem:[#allocation2 + $0x141] sm:$0xff]
        %v2154 = vld [vmem:[#allocation2 + $0x151] sm:$0xff]
        %v2155 = vld [vmem:[#allocation2 + $0x159] sm:$0xff]
        %v2156 = vld [vmem:[#allocation2 + $0x169] sm:$0xff]
        %v2157 = vld [vmem:[#allocation2 + $0x171] sm:$0xff]
        %v2158 = vld [vmem:[#allocation2 + $0x181] sm:$0xff]
        %v2159 = vld [vmem:[#allocation2 + $0x189] sm:$0xff]
        %v2160 = vld [vmem:[#allocation2 + $0x199] sm:$0xff]
        %v2161 = vld [vmem:[#allocation2 + $0x1a1] sm:$0xff]
        %v2162 = vld [vmem:[#allocation2 + $0x1b1] sm:$0xff]
        %v2163 = vld [vmem:[#allocation2 + $0x1b9] sm:$0xff]
        %v2164 = vld [vmem:[#allocation2 + $0x1c9] sm:$0xff]
        %v2165 = vld [vmem:[#allocation2 + $0x1d1] sm:$0xff]
        %v2166 = vmax.f32 %v2086, %v2126
        %v2167 = vmax.f32 %v2087, %v2127
        %v2168 = vmax.f32 %v2088, %v2128
        %v2169 = vmax.f32 %v2089, %v2129
        %v2170 = vmax.f32 %v2090, %v2130
        %v2171 = vmax.f32 %v2091, %v2131
        %v2172 = vmax.f32 %v2092, %v2132
        %v2173 = vmax.f32 %v2093, %v2133
        %v2174 = vmax.f32 %v2094, %v2134
        %v2175 = vmax.f32 %v2095, %v2135
        %v2176 = vmax.f32 %v2096, %v2136
        %v2177 = vmax.f32 %v2097, %v2137
        %v2178 = vmax.f32 %v2098, %v2138
        %v2179 = vmax.f32 %v2099, %v2139
        %v2180 = vmax.f32 %v2100, %v2140
        %v2181 = vmax.f32 %v2101, %v2141
        %v2182 = vmax.f32 %v2102, %v2142
        %v2183 = vmax.f32 %v2103, %v2143
        %v2184 = vmax.f32 %v2104, %v2144
        %v2185 = vmax.f32 %v2105, %v2145
        %v2186 = vmax.f32 %v2106, %v2146
        %v2187 = vmax.f32 %v2107, %v2147
        %v2188 = vmax.f32 %v2108, %v2148
        %v2189 = vmax.f32 %v2109, %v2149
        %v2190 = vmax.f32 %v2110, %v2150
        %v2191 = vmax.f32 %v2111, %v2151
        %v2192 = vmax.f32 %v2112, %v2152
        %v2193 = vmax.f32 %v2113, %v2153
        %v2194 = vmax.f32 %v2114, %v2154
        %v2195 = vmax.f32 %v2115, %v2155
        %v2196 = vmax.f32 %v2116, %v2156
        %v2197 = vmax.f32 %v2117, %v2157
        %v2198 = vmax.f32 %v2118, %v2158
        %v2199 = vmax.f32 %v2119, %v2159
        %v2200 = vmax.f32 %v2120, %v2160
        %v2201 = vmax.f32 %v2121, %v2161
        %v2202 = vmax.f32 %v2122, %v2162
        %v2203 = vmax.f32 %v2123, %v2163
        %v2204 = vmax.f32 %v2124, %v2164
        %v2205 = vmax.f32 %v2125, %v2165
        %v2206 = vld [vmem:[#allocation2 + $0x2] sm:$0xff]
        %v2207 = vld [vmem:[#allocation2 + $0xa] sm:$0xff]
        %v2208 = vld [vmem:[#allocation2 + $0x1a] sm:$0xff]
        %v2209 = vld [vmem:[#allocation2 + $0x22] sm:$0xff]
        %v2210 = vld [vmem:[#allocation2 + $0x32] sm:$0xff]
        %v2211 = vld [vmem:[#allocation2 + $0x3a] sm:$0xff]
        %v2212 = vld [vmem:[#allocation2 + $0x4a] sm:$0xff]
        %v2213 = vld [vmem:[#allocation2 + $0x52] sm:$0xff]
        %v2214 = vld [vmem:[#allocation2 + $0x62] sm:$0xff]
        %v2215 = vld [vmem:[#allocation2 + $0x6a] sm:$0xff]
        %v2216 = vld [vmem:[#allocation2 + $0x7a] sm:$0xff]
        %v2217 = vld [vmem:[#allocation2 + $0x82] sm:$0xff]
        %v2218 = vld [vmem:[#allocation2 + $0x92] sm:$0xff]
        %v2219 = vld [vmem:[#allocation2 + $0x9a] sm:$0xff]
        %v2220 = vld [vmem:[#allocation2 + $0xaa] sm:$0xff]
        %v2221 = vld [vmem:[#allocation2 + $0xb2] sm:$0xff]
        %v2222 = vld [vmem:[#allocation2 + $0xc2] sm:$0xff]
        %v2223 = vld [vmem:[#allocation2 + $0xca] sm:$0xff]
        %v2224 = vld [vmem:[#allocation2 + $0xda] sm:$0xff]
        %v2225 = vld [vmem:[#allocation2 + $0xe2] sm:$0xff]
        %v2226 = vld [vmem:[#allocation2 + $0xf2] sm:$0xff]
        %v2227 = vld [vmem:[#allocation2 + $0xfa] sm:$0xff]
        %v2228 = vld [vmem:[#allocation2 + $0x10a] sm:$0xff]
        %v2229 = vld [vmem:[#allocation2 + $0x112] sm:$0xff]
        %v2230 = vld [vmem:[#allocation2 + $0x122] sm:$0xff]
        %v2231 = vld [vmem:[#allocation2 + $0x12a] sm:$0xff]
        %v2232 = vld [vmem:[#allocation2 + $0x13a] sm:$0xff]
        %v2233 = vld [vmem:[#allocation2 + $0x142] sm:$0xff]
        %v2234 = vld [vmem:[#allocation2 + $0x152] sm:$0xff]
        %v2235 = vld [vmem:[#allocation2 + $0x15a] sm:$0xff]
        %v2236 = vld [vmem:[#allocation2 + $0x16a] sm:$0xff]
        %v2237 = vld [vmem:[#allocation2 + $0x172] sm:$0xff]
        %v2238 = vld [vmem:[#allocation2 + $0x182] sm:$0xff]
        %v2239 = vld [vmem:[#allocation2 + $0x18a] sm:$0xff]
        %v2240 = vld [vmem:[#allocation2 + $0x19a] sm:$0xff]
        %v2241 = vld [vmem:[#allocation2 + $0x1a2] sm:$0xff]
        %v2242 = vld [vmem:[#allocation2 + $0x1b2] sm:$0xff]
        %v2243 = vld [vmem:[#allocation2 + $0x1ba] sm:$0xff]
        %v2244 = vld [vmem:[#allocation2 + $0x1ca] sm:$0xff]
        %v2245 = vld [vmem:[#allocation2 + $0x1d2] sm:$0xff]
        %v2246 = vmax.f32 %v2166, %v2206
        %v2247 = vmax.f32 %v2167, %v2207
        %v2248 = vmax.f32 %v2168, %v2208
        %v2249 = vmax.f32 %v2169, %v2209
        %v2250 = vmax.f32 %v2170, %v2210
        %v2251 = vmax.f32 %v2171, %v2211
        %v2252 = vmax.f32 %v2172, %v2212
        %v2253 = vmax.f32 %v2173, %v2213
        %v2254 = vmax.f32 %v2174, %v2214
        %v2255 = vmax.f32 %v2175, %v2215
        %v2256 = vmax.f32 %v2176, %v2216
        %v2257 = vmax.f32 %v2177, %v2217
        %v2258 = vmax.f32 %v2178, %v2218
        %v2259 = vmax.f32 %v2179, %v2219
        %v2260 = vmax.f32 %v2180, %v2220
        %v2261 = vmax.f32 %v2181, %v2221
        %v2262 = vmax.f32 %v2182, %v2222
        %v2263 = vmax.f32 %v2183, %v2223
        %v2264 = vmax.f32 %v2184, %v2224
        %v2265 = vmax.f32 %v2185, %v2225
        %v2266 = vmax.f32 %v2186, %v2226
        %v2267 = vmax.f32 %v2187, %v2227
        %v2268 = vmax.f32 %v2188, %v2228
        %v2269 = vmax.f32 %v2189, %v2229
        %v2270 = vmax.f32 %v2190, %v2230
        %v2271 = vmax.f32 %v2191, %v2231
        %v2272 = vmax.f32 %v2192, %v2232
        %v2273 = vmax.f32 %v2193, %v2233
        %v2274 = vmax.f32 %v2194, %v2234
        %v2275 = vmax.f32 %v2195, %v2235
        %v2276 = vmax.f32 %v2196, %v2236
        %v2277 = vmax.f32 %v2197, %v2237
        %v2278 = vmax.f32 %v2198, %v2238
        %v2279 = vmax.f32 %v2199, %v2239
        %v2280 = vmax.f32 %v2200, %v2240
        %v2281 = vmax.f32 %v2201, %v2241
        %v2282 = vmax.f32 %v2202, %v2242
        %v2283 = vmax.f32 %v2203, %v2243
        %v2284 = vmax.f32 %v2204, %v2244
        %v2285 = vmax.f32 %v2205, %v2245
        %v2286 = vld [vmem:[#allocation2 + $0x3] sm:$0xff]
        %v2287 = vld [vmem:[#allocation2 + $0xb] sm:$0xff]
        %v2288 = vld [vmem:[#allocation2 + $0x1b] sm:$0xff]
        %v2289 = vld [vmem:[#allocation2 + $0x23] sm:$0xff]
        %v2290 = vld [vmem:[#allocation2 + $0x33] sm:$0xff]
        %v2291 = vld [vmem:[#allocation2 + $0x3b] sm:$0xff]
        %v2292 = vld [vmem:[#allocation2 + $0x4b] sm:$0xff]
        %v2293 = vld [vmem:[#allocation2 + $0x53] sm:$0xff]
        %v2294 = vld [vmem:[#allocation2 + $0x63] sm:$0xff]
        %v2295 = vld [vmem:[#allocation2 + $0x6b] sm:$0xff]
        %v2296 = vld [vmem:[#allocation2 + $0x7b] sm:$0xff]
        %v2297 = vld [vmem:[#allocation2 + $0x83] sm:$0xff]
        %v2298 = vld [vmem:[#allocation2 + $0x93] sm:$0xff]
        %v2299 = vld [vmem:[#allocation2 + $0x9b] sm:$0xff]
        %v2300 = vld [vmem:[#allocation2 + $0xab] sm:$0xff]
        %v2301 = vld [vmem:[#allocation2 + $0xb3] sm:$0xff]
        %v2302 = vld [vmem:[#allocation2 + $0xc3] sm:$0xff]
        %v2303 = vld [vmem:[#allocation2 + $0xcb] sm:$0xff]
        %v2304 = vld [vmem:[#allocation2 + $0xdb] sm:$0xff]
        %v2305 = vld [vmem:[#allocation2 + $0xe3] sm:$0xff]
        %v2306 = vld [vmem:[#allocation2 + $0xf3] sm:$0xff]
        %v2307 = vld [vmem:[#allocation2 + $0xfb] sm:$0xff]
        %v2308 = vld [vmem:[#allocation2 + $0x10b] sm:$0xff]
        %v2309 = vld [vmem:[#allocation2 + $0x113] sm:$0xff]
        %v2310 = vld [vmem:[#allocation2 + $0x123] sm:$0xff]
        %v2311 = vld [vmem:[#allocation2 + $0x12b] sm:$0xff]
        %v2312 = vld [vmem:[#allocation2 + $0x13b] sm:$0xff]
        %v2313 = vld [vmem:[#allocation2 + $0x143] sm:$0xff]
        %v2314 = vld [vmem:[#allocation2 + $0x153] sm:$0xff]
        %v2315 = vld [vmem:[#allocation2 + $0x15b] sm:$0xff]
        %v2316 = vld [vmem:[#allocation2 + $0x16b] sm:$0xff]
        %v2317 = vld [vmem:[#allocation2 + $0x173] sm:$0xff]
        %v2318 = vld [vmem:[#allocation2 + $0x183] sm:$0xff]
        %v2319 = vld [vmem:[#allocation2 + $0x18b] sm:$0xff]
        %v2320 = vld [vmem:[#allocation2 + $0x19b] sm:$0xff]
        %v2321 = vld [vmem:[#allocation2 + $0x1a3] sm:$0xff]
        %v2322 = vld [vmem:[#allocation2 + $0x1b3] sm:$0xff]
        %v2323 = vld [vmem:[#allocation2 + $0x1bb] sm:$0xff]
        %v2324 = vld [vmem:[#allocation2 + $0x1cb] sm:$0xff]
        %v2325 = vld [vmem:[#allocation2 + $0x1d3] sm:$0xff]
        %v2326 = vmax.f32 %v2246, %v2286
        %v2327 = vmax.f32 %v2247, %v2287
        %v2328 = vmax.f32 %v2248, %v2288
        %v2329 = vmax.f32 %v2249, %v2289
        %v2330 = vmax.f32 %v2250, %v2290
        %v2331 = vmax.f32 %v2251, %v2291
        %v2332 = vmax.f32 %v2252, %v2292
        %v2333 = vmax.f32 %v2253, %v2293
        %v2334 = vmax.f32 %v2254, %v2294
        %v2335 = vmax.f32 %v2255, %v2295
        %v2336 = vmax.f32 %v2256, %v2296
        %v2337 = vmax.f32 %v2257, %v2297
        %v2338 = vmax.f32 %v2258, %v2298
        %v2339 = vmax.f32 %v2259, %v2299
        %v2340 = vmax.f32 %v2260, %v2300
        %v2341 = vmax.f32 %v2261, %v2301
        %v2342 = vmax.f32 %v2262, %v2302
        %v2343 = vmax.f32 %v2263, %v2303
        %v2344 = vmax.f32 %v2264, %v2304
        %v2345 = vmax.f32 %v2265, %v2305
        %v2346 = vmax.f32 %v2266, %v2306
        %v2347 = vmax.f32 %v2267, %v2307
        %v2348 = vmax.f32 %v2268, %v2308
        %v2349 = vmax.f32 %v2269, %v2309
        %v2350 = vmax.f32 %v2270, %v2310
        %v2351 = vmax.f32 %v2271, %v2311
        %v2352 = vmax.f32 %v2272, %v2312
        %v2353 = vmax.f32 %v2273, %v2313
        %v2354 = vmax.f32 %v2274, %v2314
        %v2355 = vmax.f32 %v2275, %v2315
        %v2356 = vmax.f32 %v2276, %v2316
        %v2357 = vmax.f32 %v2277, %v2317
        %v2358 = vmax.f32 %v2278, %v2318
        %v2359 = vmax.f32 %v2279, %v2319
        %v2360 = vmax.f32 %v2280, %v2320
        %v2361 = vmax.f32 %v2281, %v2321
        %v2362 = vmax.f32 %v2282, %v2322
        %v2363 = vmax.f32 %v2283, %v2323
        %v2364 = vmax.f32 %v2284, %v2324
        %v2365 = vmax.f32 %v2285, %v2325
        %v2366 = vld [vmem:[#allocation2 + $0x4] sm:$0xff]
        %v2367 = vld [vmem:[#allocation2 + $0xc] sm:$0xff]
        %v2368 = vld [vmem:[#allocation2 + $0x1c] sm:$0xff]
        %v2369 = vld [vmem:[#allocation2 + $0x24] sm:$0xff]
        %v2370 = vld [vmem:[#allocation2 + $0x34] sm:$0xff]
        %v2371 = vld [vmem:[#allocation2 + $0x3c] sm:$0xff]
        %v2372 = vld [vmem:[#allocation2 + $0x4c] sm:$0xff]
        %v2373 = vld [vmem:[#allocation2 + $0x54] sm:$0xff]
        %v2374 = vld [vmem:[#allocation2 + $0x64] sm:$0xff]
        %v2375 = vld [vmem:[#allocation2 + $0x6c] sm:$0xff]
        %v2376 = vld [vmem:[#allocation2 + $0x7c] sm:$0xff]
        %v2377 = vld [vmem:[#allocation2 + $0x84] sm:$0xff]
        %v2378 = vld [vmem:[#allocation2 + $0x94] sm:$0xff]
        %v2379 = vld [vmem:[#allocation2 + $0x9c] sm:$0xff]
        %v2380 = vld [vmem:[#allocation2 + $0xac] sm:$0xff]
        %v2381 = vld [vmem:[#allocation2 + $0xb4] sm:$0xff]
        %v2382 = vld [vmem:[#allocation2 + $0xc4] sm:$0xff]
        %v2383 = vld [vmem:[#allocation2 + $0xcc] sm:$0xff]
        %v2384 = vld [vmem:[#allocation2 + $0xdc] sm:$0xff]
        %v2385 = vld [vmem:[#allocation2 + $0xe4] sm:$0xff]
        %v2386 = vld [vmem:[#allocation2 + $0xf4] sm:$0xff]
        %v2387 = vld [vmem:[#allocation2 + $0xfc] sm:$0xff]
        %v2388 = vld [vmem:[#allocation2 + $0x10c] sm:$0xff]
        %v2389 = vld [vmem:[#allocation2 + $0x114] sm:$0xff]
        %v2390 = vld [vmem:[#allocation2 + $0x124] sm:$0xff]
        %v2391 = vld [vmem:[#allocation2 + $0x12c] sm:$0xff]
        %v2392 = vld [vmem:[#allocation2 + $0x13c] sm:$0xff]
        %v2393 = vld [vmem:[#allocation2 + $0x144] sm:$0xff]
        %v2394 = vld [vmem:[#allocation2 + $0x154] sm:$0xff]
        %v2395 = vld [vmem:[#allocation2 + $0x15c] sm:$0xff]
        %v2396 = vld [vmem:[#allocation2 + $0x16c] sm:$0xff]
        %v2397 = vld [vmem:[#allocation2 + $0x174] sm:$0xff]
        %v2398 = vld [vmem:[#allocation2 + $0x184] sm:$0xff]
        %v2399 = vld [vmem:[#allocation2 + $0x18c] sm:$0xff]
        %v2400 = vld [vmem:[#allocation2 + $0x19c] sm:$0xff]
        %v2401 = vld [vmem:[#allocation2 + $0x1a4] sm:$0xff]
        %v2402 = vld [vmem:[#allocation2 + $0x1b4] sm:$0xff]
        %v2403 = vld [vmem:[#allocation2 + $0x1bc] sm:$0xff]
        %v2404 = vld [vmem:[#allocation2 + $0x1cc] sm:$0xff]
        %v2405 = vld [vmem:[#allocation2 + $0x1d4] sm:$0xff]
        %v2406 = vmax.f32 %v2326, %v2366
        %v2407 = vmax.f32 %v2327, %v2367
        %v2408 = vmax.f32 %v2328, %v2368
        %v2409 = vmax.f32 %v2329, %v2369
        %v2410 = vmax.f32 %v2330, %v2370
        %v2411 = vmax.f32 %v2331, %v2371
        %v2412 = vmax.f32 %v2332, %v2372
        %v2413 = vmax.f32 %v2333, %v2373
        %v2414 = vmax.f32 %v2334, %v2374
        %v2415 = vmax.f32 %v2335, %v2375
        %v2416 = vmax.f32 %v2336, %v2376
        %v2417 = vmax.f32 %v2337, %v2377
        %v2418 = vmax.f32 %v2338, %v2378
        %v2419 = vmax.f32 %v2339, %v2379
        %v2420 = vmax.f32 %v2340, %v2380
        %v2421 = vmax.f32 %v2341, %v2381
        %v2422 = vmax.f32 %v2342, %v2382
        %v2423 = vmax.f32 %v2343, %v2383
        %v2424 = vmax.f32 %v2344, %v2384
        %v2425 = vmax.f32 %v2345, %v2385
        %v2426 = vmax.f32 %v2346, %v2386
        %v2427 = vmax.f32 %v2347, %v2387
        %v2428 = vmax.f32 %v2348, %v2388
        %v2429 = vmax.f32 %v2349, %v2389
        %v2430 = vmax.f32 %v2350, %v2390
        %v2431 = vmax.f32 %v2351, %v2391
        %v2432 = vmax.f32 %v2352, %v2392
        %v2433 = vmax.f32 %v2353, %v2393
        %v2434 = vmax.f32 %v2354, %v2394
        %v2435 = vmax.f32 %v2355, %v2395
        %v2436 = vmax.f32 %v2356, %v2396
        %v2437 = vmax.f32 %v2357, %v2397
        %v2438 = vmax.f32 %v2358, %v2398
        %v2439 = vmax.f32 %v2359, %v2399
        %v2440 = vmax.f32 %v2360, %v2400
        %v2441 = vmax.f32 %v2361, %v2401
        %v2442 = vmax.f32 %v2362, %v2402
        %v2443 = vmax.f32 %v2363, %v2403
        %v2444 = vmax.f32 %v2364, %v2404
        %v2445 = vmax.f32 %v2365, %v2405
        %v2446 = vmax.f32 %v2406, %v2408
        %v2447 = vmax.f32 %v2407, %v2409
        %v2448 = vmax.f32 %v2408, %v2410
        %v2449 = vmax.f32 %v2409, %v2411
        %v2450 = vmax.f32 %v2410, %v2412
        %v2451 = vmax.f32 %v2411, %v2413
        %v2452 = vmax.f32 %v2412, %v2414
        %v2453 = vmax.f32 %v2413, %v2415
        %v2454 = vmax.f32 %v2414, %v2416
        %v2455 = vmax.f32 %v2415, %v2417
        %v2456 = vmax.f32 %v2416, %v2418
        %v2457 = vmax.f32 %v2417, %v2419
        %v2458 = vmax.f32 %v2418, %v2420
        %v2459 = vmax.f32 %v2419, %v2421
        %v2460 = vmax.f32 %v2420, %v2422
        %v2461 = vmax.f32 %v2421, %v2423
        %v2462 = vmax.f32 %v2422, %v2424
        %v2463 = vmax.f32 %v2423, %v2425
        %v2464 = vmax.f32 %v2424, %v2426
        %v2465 = vmax.f32 %v2425, %v2427
        %v2466 = vmax.f32 %v2426, %v2428
        %v2467 = vmax.f32 %v2427, %v2429
        %v2468 = vmax.f32 %v2428, %v2430
        %v2469 = vmax.f32 %v2429, %v2431
        %v2470 = vmax.f32 %v2430, %v2432
        %v2471 = vmax.f32 %v2431, %v2433
        %v2472 = vmax.f32 %v2432, %v2434
        %v2473 = vmax.f32 %v2433, %v2435
        %v2474 = vmax.f32 %v2434, %v2436
        %v2475 = vmax.f32 %v2435, %v2437
        %v2476 = vmax.f32 %v2436, %v2438
        %v2477 = vmax.f32 %v2437, %v2439
        %v2478 = vmax.f32 %v2446, %v2410
        %v2479 = vmax.f32 %v2447, %v2411
        %v2480 = vmax.f32 %v2448, %v2412
        %v2481 = vmax.f32 %v2449, %v2413
        %v2482 = vmax.f32 %v2450, %v2414
        %v2483 = vmax.f32 %v2451, %v2415
        %v2484 = vmax.f32 %v2452, %v2416
        %v2485 = vmax.f32 %v2453, %v2417
        %v2486 = vmax.f32 %v2454, %v2418
        %v2487 = vmax.f32 %v2455, %v2419
        %v2488 = vmax.f32 %v2456, %v2420
        %v2489 = vmax.f32 %v2457, %v2421
        %v2490 = vmax.f32 %v2458, %v2422
        %v2491 = vmax.f32 %v2459, %v2423
        %v2492 = vmax.f32 %v2460, %v2424
        %v2493 = vmax.f32 %v2461, %v2425
        %v2494 = vmax.f32 %v2462, %v2426
        %v2495 = vmax.f32 %v2463, %v2427
        %v2496 = vmax.f32 %v2464, %v2428
        %v2497 = vmax.f32 %v2465, %v2429
        %v2498 = vmax.f32 %v2466, %v2430
        %v2499 = vmax.f32 %v2467, %v2431
        %v2500 = vmax.f32 %v2468, %v2432
        %v2501 = vmax.f32 %v2469, %v2433
        %v2502 = vmax.f32 %v2470, %v2434
        %v2503 = vmax.f32 %v2471, %v2435
        %v2504 = vmax.f32 %v2472, %v2436
        %v2505 = vmax.f32 %v2473, %v2437
        %v2506 = vmax.f32 %v2474, %v2438
        %v2507 = vmax.f32 %v2475, %v2439
        %v2508 = vmax.f32 %v2476, %v2440
        %v2509 = vmax.f32 %v2477, %v2441
        %v2510 = vmax.f32 %v2478, %v2412
        %v2511 = vmax.f32 %v2479, %v2413
        %v2512 = vmax.f32 %v2480, %v2414
        %v2513 = vmax.f32 %v2481, %v2415
        %v2514 = vmax.f32 %v2482, %v2416
        %v2515 = vmax.f32 %v2483, %v2417
        %v2516 = vmax.f32 %v2484, %v2418
        %v2517 = vmax.f32 %v2485, %v2419
        %v2518 = vmax.f32 %v2486, %v2420
        %v2519 = vmax.f32 %v2487, %v2421
        %v2520 = vmax.f32 %v2488, %v2422
        %v2521 = vmax.f32 %v2489, %v2423
        %v2522 = vmax.f32 %v2490, %v2424
        %v2523 = vmax.f32 %v2491, %v2425
        %v2524 = vmax.f32 %v2492, %v2426
        %v2525 = vmax.f32 %v2493, %v2427
        %v2526 = vmax.f32 %v2494, %v2428
        %v2527 = vmax.f32 %v2495, %v2429
        %v2528 = vmax.f32 %v2496, %v2430
        %v2529 = vmax.f32 %v2497, %v2431
        %v2530 = vmax.f32 %v2498, %v2432
        %v2531 = vmax.f32 %v2499, %v2433
        %v2532 = vmax.f32 %v2500, %v2434
        %v2533 = vmax.f32 %v2501, %v2435
        %v2534 = vmax.f32 %v2502, %v2436
        %v2535 = vmax.f32 %v2503, %v2437
        %v2536 = vmax.f32 %v2504, %v2438
        %v2537 = vmax.f32 %v2505, %v2439
        %v2538 = vmax.f32 %v2506, %v2440
        %v2539 = vmax.f32 %v2507, %v2441
        %v2540 = vmax.f32 %v2508, %v2442
        %v2541 = vmax.f32 %v2509, %v2443
        %v2542 = vmax.f32 %v2510, %v2414
        %v2543 = vmax.f32 %v2511, %v2415
        %v2544 = vmax.f32 %v2512, %v2416
        %v2545 = vmax.f32 %v2513, %v2417
        %v2546 = vmax.f32 %v2514, %v2418
        %v2547 = vmax.f32 %v2515, %v2419
        %v2548 = vmax.f32 %v2516, %v2420
        %v2549 = vmax.f32 %v2517, %v2421
        %v2550 = vmax.f32 %v2518, %v2422
        %v2551 = vmax.f32 %v2519, %v2423
        %v2552 = vmax.f32 %v2520, %v2424
        %v2553 = vmax.f32 %v2521, %v2425
        %v2554 = vmax.f32 %v2522, %v2426
        %v2555 = vmax.f32 %v2523, %v2427
        %v2556 = vmax.f32 %v2524, %v2428
        %v2557 = vmax.f32 %v2525, %v2429
        %v2558 = vmax.f32 %v2526, %v2430
        %v2559 = vmax.f32 %v2527, %v2431
        %v2560 = vmax.f32 %v2528, %v2432
        %v2561 = vmax.f32 %v2529, %v2433
        %v2562 = vmax.f32 %v2530, %v2434
        %v2563 = vmax.f32 %v2531, %v2435
        %v2564 = vmax.f32 %v2532, %v2436
        %v2565 = vmax.f32 %v2533, %v2437
        %v2566 = vmax.f32 %v2534, %v2438
        %v2567 = vmax.f32 %v2535, %v2439
        %v2568 = vmax.f32 %v2536, %v2440
        %v2569 = vmax.f32 %v2537, %v2441
        %v2570 = vmax.f32 %v2538, %v2442
        %v2571 = vmax.f32 %v2539, %v2443
        %v2572 = vmax.f32 %v2540, %v2444
        %v2573 = vmax.f32 %v2541, %v2445
        %v2574 = vpack.c.bf16 %v922, %v921
        %v2575 = vpack.c.bf16 %v924, %v923
        %v2576 = vpack.c.bf16 %v926, %v925
        %v2577 = vpack.c.bf16 %v928, %v927
        %v2578 = vpack.c.bf16 %v930, %v929
        %v2579 = vpack.c.bf16 %v932, %v931
        %v2580 = vpack.c.bf16 %v934, %v933
        %v2581 = vpack.c.bf16 %v936, %v935
        %v2582 = vpack.c.bf16 %v938, %v937
        %v2583 = vpack.c.bf16 %v940, %v939
        %v2584 = vpack.c.bf16 %v942, %v941
        %v2585 = vpack.c.bf16 %v944, %v943
        %v2586 = vpack.c.bf16 %v946, %v945
        %v2587 = vpack.c.bf16 %v948, %v947
        %v2588 = vpack.c.bf16 %v950, %v949
        %v2589 = vpack.c.bf16 %v952, %v951
        %v2590 = vpack.c.bf16 %v1503, %v1502
        %v2591 = vpack.c.bf16 %v1505, %v1504
        %v2592 = vpack.c.bf16 %v1507, %v1506
        %v2593 = vpack.c.bf16 %v1509, %v1508
        %v2594 = vpack.c.bf16 %v1511, %v1510
        %v2595 = vpack.c.bf16 %v1513, %v1512
        %v2596 = vpack.c.bf16 %v1515, %v1514
        %v2597 = vpack.c.bf16 %v1517, %v1516
        %v2598 = vpack.c.bf16 %v1519, %v1518
        %v2599 = vpack.c.bf16 %v1521, %v1520
        %v2600 = vpack.c.bf16 %v1523, %v1522
        %v2601 = vpack.c.bf16 %v1525, %v1524
        %v2602 = vpack.c.bf16 %v1527, %v1526
        %v2603 = vpack.c.bf16 %v1529, %v1528
        %v2604 = vpack.c.bf16 %v1531, %v1530
        %v2605 = vpack.c.bf16 %v1533, %v1532
        %v2606 = vpack.c.bf16 %v2023, %v2022
        %v2607 = vpack.c.bf16 %v2025, %v2024
        %v2608 = vpack.c.bf16 %v2027, %v2026
        %v2609 = vpack.c.bf16 %v2029, %v2028
        %v2610 = vpack.c.bf16 %v2031, %v2030
        %v2611 = vpack.c.bf16 %v2033, %v2032
        %v2612 = vpack.c.bf16 %v2035, %v2034
        %v2613 = vpack.c.bf16 %v2037, %v2036
        %v2614 = vpack.c.bf16 %v2039, %v2038
        %v2615 = vpack.c.bf16 %v2041, %v2040
        %v2616 = vpack.c.bf16 %v2043, %v2042
        %v2617 = vpack.c.bf16 %v2045, %v2044
        %v2618 = vpack.c.bf16 %v2047, %v2046
        %v2619 = vpack.c.bf16 %v2049, %v2048
        %v2620 = vpack.c.bf16 %v2051, %v2050
        %v2621 = vpack.c.bf16 %v2053, %v2052
        %v2622 = vpack.c.bf16 %v2543, %v2542
        %v2623 = vpack.c.bf16 %v2545, %v2544
        %v2624 = vpack.c.bf16 %v2547, %v2546
        %v2625 = vpack.c.bf16 %v2549, %v2548
        %v2626 = vpack.c.bf16 %v2551, %v2550
        %v2627 = vpack.c.bf16 %v2553, %v2552
        %v2628 = vpack.c.bf16 %v2555, %v2554
        %v2629 = vpack.c.bf16 %v2557, %v2556
        %v2630 = vpack.c.bf16 %v2559, %v2558
        %v2631 = vpack.c.bf16 %v2561, %v2560
        %v2632 = vpack.c.bf16 %v2563, %v2562
        %v2633 = vpack.c.bf16 %v2565, %v2564
        %v2634 = vpack.c.bf16 %v2567, %v2566
        %v2635 = vpack.c.bf16 %v2569, %v2568
        %v2636 = vpack.c.bf16 %v2571, %v2570
        %v2637 = vpack.c.bf16 %v2573, %v2572
        %v2638 = vld [vmem:[#allocation8] sm:$0xff]
        %v2639 = vld [vmem:[#allocation8 + $0x8] sm:$0xff]
        %v2640 = vld [vmem:[#allocation8 + $0x10] sm:$0xff]
        %v2641 = vld [vmem:[#allocation8 + $0x18] sm:$0xff]
        %v2642 = vld [vmem:[#allocation8 + $0x20] sm:$0xff]
        %v2643 = vld [vmem:[#allocation8 + $0x28] sm:$0xff]
        %v2644 = vld [vmem:[#allocation8 + $0x30] sm:$0xff]
        %v2645 = vld [vmem:[#allocation8 + $0x38] sm:$0xff]
        %v2646 = vld [vmem:[#allocation8 + $0x40] sm:$0xff]
        %v2647 = vld [vmem:[#allocation8 + $0x48] sm:$0xff]
        %v2648 = vld [vmem:[#allocation8 + $0x50] sm:$0xff]
        %v2649 = vld [vmem:[#allocation8 + $0x58] sm:$0xff]
        %v2650 = vld [vmem:[#allocation8 + $0x60] sm:$0xff]
        %v2651 = vld [vmem:[#allocation8 + $0x68] sm:$0xff]
        %v2652 = vld [vmem:[#allocation8 + $0x70] sm:$0xff]
        %v2653 = vld [vmem:[#allocation8 + $0x78] sm:$0xff]
        %v2654 = vld [vmem:[#allocation8 + $0x80] sm:$0xff]
        %v2655 = vld [vmem:[#allocation8 + $0x88] sm:$0xff]
        %v2656 = vld [vmem:[#allocation8 + $0x90] sm:$0xff]
        %v2657 = vld [vmem:[#allocation8 + $0x98] sm:$0xff]
        %v2658 = vld [vmem:[#allocation8 + $0xa0] sm:$0xff]
        %v2659 = vld [vmem:[#allocation8 + $0xa8] sm:$0xff]
        %v2660 = vld [vmem:[#allocation8 + $0xb0] sm:$0xff]
        %v2661 = vld [vmem:[#allocation8 + $0xb8] sm:$0xff]
        %v2662 = vld [vmem:[#allocation8 + $0xc0] sm:$0xff]
        %v2663 = vld [vmem:[#allocation8 + $0xc8] sm:$0xff]
        %v2664 = vld [vmem:[#allocation8 + $0xd0] sm:$0xff]
        %v2665 = vld [vmem:[#allocation8 + $0xd8] sm:$0xff]
        %v2666 = vld [vmem:[#allocation8 + $0xe0] sm:$0xff]
        %v2667 = vld [vmem:[#allocation8 + $0xe8] sm:$0xff]
        %v2668 = vld [vmem:[#allocation8 + $0xf0] sm:$0xff]
        %v2669 = vld [vmem:[#allocation8 + $0xf8] sm:$0xff]
        %v2670 = vld [vmem:[#allocation8 + $0x100] sm:$0xff]
        %v2671 = vld [vmem:[#allocation8 + $0x108] sm:$0xff]
        %v2672 = vld [vmem:[#allocation8 + $0x110] sm:$0xff]
        %v2673 = vld [vmem:[#allocation8 + $0x118] sm:$0xff]
        %v2674 = vld [vmem:[#allocation8 + $0x120] sm:$0xff]
        %v2675 = vld [vmem:[#allocation8 + $0x128] sm:$0xff]
        %v2676 = vld [vmem:[#allocation8 + $0x130] sm:$0xff]
        %v2677 = vld [vmem:[#allocation8 + $0x138] sm:$0xff]
        %v2678 = vld [vmem:[#allocation8 + $0x140] sm:$0xff]
        %v2679 = vld [vmem:[#allocation8 + $0x148] sm:$0xff]
        %v2680 = vld [vmem:[#allocation8 + $0x150] sm:$0xff]
        %v2681 = vld [vmem:[#allocation8 + $0x158] sm:$0xff]
        %v2682 = vld [vmem:[#allocation8 + $0x160] sm:$0xff]
        %v2683 = vld [vmem:[#allocation8 + $0x168] sm:$0xff]
        %v2684 = vld [vmem:[#allocation8 + $0x170] sm:$0xff]
        %v2685 = vld [vmem:[#allocation8 + $0x178] sm:$0xff]
        %v2686 = vld [vmem:[#allocation8 + $0x180] sm:$0xff]
        %v2687 = vld [vmem:[#allocation8 + $0x188] sm:$0xff]
        %v2688 = vld [vmem:[#allocation8 + $0x190] sm:$0xff]
        %v2689 = vld [vmem:[#allocation8 + $0x198] sm:$0xff]
        %v2690 = vld [vmem:[#allocation8 + $0x1a0] sm:$0xff]
        %v2691 = vld [vmem:[#allocation8 + $0x1a8] sm:$0xff]
        %v2692 = vld [vmem:[#allocation8 + $0x1b0] sm:$0xff]
        %v2693 = vld [vmem:[#allocation8 + $0x1b8] sm:$0xff]
        %v2694 = vld [vmem:[#allocation8 + $0x1c0] sm:$0xff]
        %v2695 = vld [vmem:[#allocation8 + $0x1c8] sm:$0xff]
        %v2696 = vld [vmem:[#allocation8 + $0x1d0] sm:$0xff]
        %v2697 = vld [vmem:[#allocation8 + $0x1d8] sm:$0xff]
        %v2698 = vld [vmem:[#allocation8 + $0x1e0] sm:$0xff]
        %v2699 = vld [vmem:[#allocation8 + $0x1e8] sm:$0xff]
        %v2700 = vld [vmem:[#allocation8 + $0x1f0] sm:$0xff]
        %v2701 = vld [vmem:[#allocation8 + $0x1f8] sm:$0xff]
        %v2702 = vld [vmem:[%s4] sm:$0x3]
        %v2704 = vlaneseq
        %v2705 = vshrl.u32 %v2704, 7
        %v2706 = vsub.s32 0, %v2705
        %v2707 = vrot.slane %v2702, %v2706
        %v2708 = vlaneseq
        %v2709 = vshrl.u32 %v2708, 7
        %v2710 = vsub.s32 1, %v2709
        %v2711 = vrot.slane %v2702, %v2710
        %v2778 = vunpack.c.l.b16 %v2638
        %v2779 = vunpack.c.h.b16 %v2638
        %v2780 = vunpack.c.l.b16 %v2639
        %v2781 = vunpack.c.h.b16 %v2639
        %v2782 = vunpack.c.l.b16 %v2640
        %v2783 = vunpack.c.h.b16 %v2640
        %v2784 = vunpack.c.l.b16 %v2641
        %v2785 = vunpack.c.h.b16 %v2641
        %v2786 = vunpack.c.l.b16 %v2642
        %v2787 = vunpack.c.h.b16 %v2642
        %v2788 = vunpack.c.l.b16 %v2643
        %v2789 = vunpack.c.h.b16 %v2643
        %v2790 = vunpack.c.l.b16 %v2644
        %v2791 = vunpack.c.h.b16 %v2644
        %v2792 = vunpack.c.l.b16 %v2645
        %v2793 = vunpack.c.h.b16 %v2645
        %v2794 = vunpack.c.l.b16 %v2646
        %v2795 = vunpack.c.h.b16 %v2646
        %v2796 = vunpack.c.l.b16 %v2647
        %v2797 = vunpack.c.h.b16 %v2647
        %v2798 = vunpack.c.l.b16 %v2648
        %v2799 = vunpack.c.h.b16 %v2648
        %v2800 = vunpack.c.l.b16 %v2649
        %v2801 = vunpack.c.h.b16 %v2649
        %v2802 = vunpack.c.l.b16 %v2650
        %v2803 = vunpack.c.h.b16 %v2650
        %v2804 = vunpack.c.l.b16 %v2651
        %v2805 = vunpack.c.h.b16 %v2651
        %v2806 = vunpack.c.l.b16 %v2652
        %v2807 = vunpack.c.h.b16 %v2652
        %v2808 = vunpack.c.l.b16 %v2653
        %v2809 = vunpack.c.h.b16 %v2653
        %v2810 = vunpack.c.l.b16 %v2654
        %v2811 = vunpack.c.h.b16 %v2654
        %v2812 = vunpack.c.l.b16 %v2655
        %v2813 = vunpack.c.h.b16 %v2655
        %v2814 = vunpack.c.l.b16 %v2656
        %v2815 = vunpack.c.h.b16 %v2656
        %v2816 = vunpack.c.l.b16 %v2657
        %v2817 = vunpack.c.h.b16 %v2657
        %v2818 = vunpack.c.l.b16 %v2658
        %v2819 = vunpack.c.h.b16 %v2658
        %v2820 = vunpack.c.l.b16 %v2659
        %v2821 = vunpack.c.h.b16 %v2659
        %v2822 = vunpack.c.l.b16 %v2660
        %v2823 = vunpack.c.h.b16 %v2660
        %v2824 = vunpack.c.l.b16 %v2661
        %v2825 = vunpack.c.h.b16 %v2661
        %v2826 = vunpack.c.l.b16 %v2662
        %v2827 = vunpack.c.h.b16 %v2662
        %v2828 = vunpack.c.l.b16 %v2663
        %v2829 = vunpack.c.h.b16 %v2663
        %v2830 = vunpack.c.l.b16 %v2664
        %v2831 = vunpack.c.h.b16 %v2664
        %v2832 = vunpack.c.l.b16 %v2665
        %v2833 = vunpack.c.h.b16 %v2665
        %v2834 = vunpack.c.l.b16 %v2666
        %v2835 = vunpack.c.h.b16 %v2666
        %v2836 = vunpack.c.l.b16 %v2667
        %v2837 = vunpack.c.h.b16 %v2667
        %v2838 = vunpack.c.l.b16 %v2668
        %v2839 = vunpack.c.h.b16 %v2668
        %v2840 = vunpack.c.l.b16 %v2669
        %v2841 = vunpack.c.h.b16 %v2669
        %v2842 = vunpack.c.l.b16 %v2670
        %v2843 = vunpack.c.h.b16 %v2670
        %v2844 = vunpack.c.l.b16 %v2671
        %v2845 = vunpack.c.h.b16 %v2671
        %v2846 = vunpack.c.l.b16 %v2672
        %v2847 = vunpack.c.h.b16 %v2672
        %v2848 = vunpack.c.l.b16 %v2673
        %v2849 = vunpack.c.h.b16 %v2673
        %v2850 = vunpack.c.l.b16 %v2674
        %v2851 = vunpack.c.h.b16 %v2674
        %v2852 = vunpack.c.l.b16 %v2675
        %v2853 = vunpack.c.h.b16 %v2675
        %v2854 = vunpack.c.l.b16 %v2676
        %v2855 = vunpack.c.h.b16 %v2676
        %v2856 = vunpack.c.l.b16 %v2677
        %v2857 = vunpack.c.h.b16 %v2677
        %v2858 = vunpack.c.l.b16 %v2678
        %v2859 = vunpack.c.h.b16 %v2678
        %v2860 = vunpack.c.l.b16 %v2679
        %v2861 = vunpack.c.h.b16 %v2679
        %v2862 = vunpack.c.l.b16 %v2680
        %v2863 = vunpack.c.h.b16 %v2680
        %v2864 = vunpack.c.l.b16 %v2681
        %v2865 = vunpack.c.h.b16 %v2681
        %v2866 = vunpack.c.l.b16 %v2682
        %v2867 = vunpack.c.h.b16 %v2682
        %v2868 = vunpack.c.l.b16 %v2683
        %v2869 = vunpack.c.h.b16 %v2683
        %v2870 = vunpack.c.l.b16 %v2684
        %v2871 = vunpack.c.h.b16 %v2684
        %v2872 = vunpack.c.l.b16 %v2685
        %v2873 = vunpack.c.h.b16 %v2685
        %v2874 = vunpack.c.l.b16 %v2686
        %v2875 = vunpack.c.h.b16 %v2686
        %v2876 = vunpack.c.l.b16 %v2687
        %v2877 = vunpack.c.h.b16 %v2687
        %v2878 = vunpack.c.l.b16 %v2688
        %v2879 = vunpack.c.h.b16 %v2688
        %v2880 = vunpack.c.l.b16 %v2689
        %v2881 = vunpack.c.h.b16 %v2689
        %v2882 = vunpack.c.l.b16 %v2690
        %v2883 = vunpack.c.h.b16 %v2690
        %v2884 = vunpack.c.l.b16 %v2691
        %v2885 = vunpack.c.h.b16 %v2691
        %v2886 = vunpack.c.l.b16 %v2692
        %v2887 = vunpack.c.h.b16 %v2692
        %v2888 = vunpack.c.l.b16 %v2693
        %v2889 = vunpack.c.h.b16 %v2693
        %v2890 = vunpack.c.l.b16 %v2694
        %v2891 = vunpack.c.h.b16 %v2694
        %v2892 = vunpack.c.l.b16 %v2695
        %v2893 = vunpack.c.h.b16 %v2695
        %v2894 = vunpack.c.l.b16 %v2696
        %v2895 = vunpack.c.h.b16 %v2696
        %v2896 = vunpack.c.l.b16 %v2697
        %v2897 = vunpack.c.h.b16 %v2697
        %v2898 = vunpack.c.l.b16 %v2698
        %v2899 = vunpack.c.h.b16 %v2698
        %v2900 = vunpack.c.l.b16 %v2699
        %v2901 = vunpack.c.h.b16 %v2699
        %v2902 = vunpack.c.l.b16 %v2700
        %v2903 = vunpack.c.h.b16 %v2700
        %v2904 = vunpack.c.l.b16 %v2701
        %v2905 = vunpack.c.h.b16 %v2701
        %v2906 = vpack.c.b16 %v2780, %v2778
        %v2907 = vpack.c.b16 %v2781, %v2779
        %v2908 = vpack.c.b16 %v2784, %v2782
        %v2909 = vpack.c.b16 %v2785, %v2783
        %v2910 = vpack.c.b16 %v2788, %v2786
        %v2911 = vpack.c.b16 %v2789, %v2787
        %v2912 = vpack.c.b16 %v2792, %v2790
        %v2913 = vpack.c.b16 %v2793, %v2791
        %v2914 = vpack.c.b16 %v2796, %v2794
        %v2915 = vpack.c.b16 %v2797, %v2795
        %v2916 = vpack.c.b16 %v2800, %v2798
        %v2917 = vpack.c.b16 %v2801, %v2799
        %v2918 = vpack.c.b16 %v2804, %v2802
        %v2919 = vpack.c.b16 %v2805, %v2803
        %v2920 = vpack.c.b16 %v2808, %v2806
        %v2921 = vpack.c.b16 %v2809, %v2807
        %v2922 = vpack.c.b16 %v2812, %v2810
        %v2923 = vpack.c.b16 %v2813, %v2811
        %v2924 = vpack.c.b16 %v2816, %v2814
        %v2925 = vpack.c.b16 %v2817, %v2815
        %v2926 = vpack.c.b16 %v2820, %v2818
        %v2927 = vpack.c.b16 %v2821, %v2819
        %v2928 = vpack.c.b16 %v2824, %v2822
        %v2929 = vpack.c.b16 %v2825, %v2823
        %v2930 = vpack.c.b16 %v2828, %v2826
        %v2931 = vpack.c.b16 %v2829, %v2827
        %v2932 = vpack.c.b16 %v2832, %v2830
        %v2933 = vpack.c.b16 %v2833, %v2831
        %v2934 = vpack.c.b16 %v2836, %v2834
        %v2935 = vpack.c.b16 %v2837, %v2835
        %v2936 = vpack.c.b16 %v2840, %v2838
        %v2937 = vpack.c.b16 %v2841, %v2839
        %v2938 = vpack.c.b16 %v2844, %v2842
        %v2939 = vpack.c.b16 %v2845, %v2843
        %v2940 = vpack.c.b16 %v2848, %v2846
        %v2941 = vpack.c.b16 %v2849, %v2847
        %v2942 = vpack.c.b16 %v2852, %v2850
        %v2943 = vpack.c.b16 %v2853, %v2851
        %v2944 = vpack.c.b16 %v2856, %v2854
        %v2945 = vpack.c.b16 %v2857, %v2855
        %v2946 = vpack.c.b16 %v2860, %v2858
        %v2947 = vpack.c.b16 %v2861, %v2859
        %v2948 = vpack.c.b16 %v2864, %v2862
        %v2949 = vpack.c.b16 %v2865, %v2863
        %v2950 = vpack.c.b16 %v2868, %v2866
        %v2951 = vpack.c.b16 %v2869, %v2867
        %v2952 = vpack.c.b16 %v2872, %v2870
        %v2953 = vpack.c.b16 %v2873, %v2871
        %v2954 = vpack.c.b16 %v2876, %v2874
        %v2955 = vpack.c.b16 %v2877, %v2875
        %v2956 = vpack.c.b16 %v2880, %v2878
        %v2957 = vpack.c.b16 %v2881, %v2879
        %v2958 = vpack.c.b16 %v2884, %v2882
        %v2959 = vpack.c.b16 %v2885, %v2883
        %v2960 = vpack.c.b16 %v2888, %v2886
        %v2961 = vpack.c.b16 %v2889, %v2887
        %v2962 = vpack.c.b16 %v2892, %v2890
        %v2963 = vpack.c.b16 %v2893, %v2891
        %v2964 = vpack.c.b16 %v2896, %v2894
        %v2965 = vpack.c.b16 %v2897, %v2895
        %v2966 = vpack.c.b16 %v2900, %v2898
        %v2967 = vpack.c.b16 %v2901, %v2899
        %v2968 = vpack.c.b16 %v2904, %v2902
        %v2969 = vpack.c.b16 %v2905, %v2903
        %3034 = vmatprep.subr.bf16.mxu0 %v2921
        %3035 = vmatpush1.bf16.msra.mxu0 %v2920
        %3036 = vmatprep.subr.bf16.mxu0 %v2919
        %3037 = vmatpush1.bf16.msra.mxu0 %v2918
        %3038 = vmatprep.subr.bf16.mxu0 %v2917
        %3039 = vmatpush1.bf16.msra.mxu0 %v2916
        %3040 = vmatprep.subr.bf16.mxu0 %v2915
        %3041 = vmatpush1.bf16.msra.mxu0 %v2914
        %3042 = vmatprep.subr.bf16.mxu0 %v2913
        %3043 = vmatpush1.bf16.msra.mxu0 %v2912
        %3044 = vmatprep.subr.bf16.mxu0 %v2911
        %3045 = vmatpush1.bf16.msra.mxu0 %v2910
        %3046 = vmatprep.subr.bf16.mxu0 %v2909
        %3047 = vmatpush1.bf16.msra.mxu0 %v2908
        %3048 = vmatprep.subr.bf16.mxu0 %v2907
        %3049 = vmatpush1.bf16.msra.mxu0 %v2906
        %3050 = vmatprep.subr.bf16.mxu0 %v2937
        %3051 = vmatpush2.bf16.msra.mxu0 %v2936
        %3052 = vmatprep.subr.bf16.mxu0 %v2935
        %3053 = vmatpush2.bf16.msra.mxu0 %v2934
        %3054 = vmatprep.subr.bf16.mxu0 %v2933
        %3055 = vmatpush2.bf16.msra.mxu0 %v2932
        %3056 = vmatprep.subr.bf16.mxu0 %v2931
        %3057 = vmatpush2.bf16.msra.mxu0 %v2930
        %3058 = vmatprep.subr.bf16.mxu0 %v2929
        %3059 = vmatpush2.bf16.msra.mxu0 %v2928
        %3060 = vmatprep.subr.bf16.mxu0 %v2927
        %3061 = vmatpush2.bf16.msra.mxu0 %v2926
        %3062 = vmatprep.subr.bf16.mxu0 %v2925
        %3063 = vmatpush2.bf16.msra.mxu0 %v2924
        %3064 = vmatprep.subr.bf16.mxu0 %v2923
        %3065 = vmatpush2.bf16.msra.mxu0 %v2922
        %3066 = vmatprep.mubr.bf16.mxu0 %v2590
        %3067 = vmatmul.mubr.bf16.gmra.mxu0 %v2574
        %v3068 = vpop.f32.mrf.mxu0
        %v3069 = vadd.f32 %v2707, %v3068
        %v3070 = vpop.f32.mrf.mxu0
        %v3071 = vadd.f32 %v2711, %v3070
        %v3072 = vpop.f32.mrf.mxu0
        %v3073 = vadd.f32 %v2707, %v3072
        %v3074 = vpop.f32.mrf.mxu0
        %v3075 = vadd.f32 %v2711, %v3074
        %3076 = vmatprep.mubr.bf16.mxu0 %v2591
        %3077 = vmatmul.mubr.bf16.gmra.mxu0 %v2575
        %v3078 = vpop.f32.mrf.mxu0
        %v3079 = vadd.f32 %v2707, %v3078
        %v3080 = vpop.f32.mrf.mxu0
        %v3081 = vadd.f32 %v2711, %v3080
        %v3082 = vpop.f32.mrf.mxu0
        %v3083 = vadd.f32 %v2707, %v3082
        %v3084 = vpop.f32.mrf.mxu0
        %v3085 = vadd.f32 %v2711, %v3084
        %3086 = vmatprep.mubr.bf16.mxu0 %v2592
        %3087 = vmatmul.mubr.bf16.gmra.mxu0 %v2576
        %v3088 = vpop.f32.mrf.mxu0
        %v3089 = vadd.f32 %v2707, %v3088
        %v3090 = vpop.f32.mrf.mxu0
        %v3091 = vadd.f32 %v2711, %v3090
        %v3092 = vpop.f32.mrf.mxu0
        %v3093 = vadd.f32 %v2707, %v3092
        %v3094 = vpop.f32.mrf.mxu0
        %v3095 = vadd.f32 %v2711, %v3094
        %3096 = vmatprep.mubr.bf16.mxu0 %v2593
        %3097 = vmatmul.mubr.bf16.gmra.mxu0 %v2577
        %v3098 = vpop.f32.mrf.mxu0
        %v3099 = vadd.f32 %v2707, %v3098
        %v3100 = vpop.f32.mrf.mxu0
        %v3101 = vadd.f32 %v2711, %v3100
        %v3102 = vpop.f32.mrf.mxu0
        %v3103 = vadd.f32 %v2707, %v3102
        %v3104 = vpop.f32.mrf.mxu0
        %v3105 = vadd.f32 %v2711, %v3104
        %3106 = vmatprep.mubr.bf16.mxu0 %v2594
        %3107 = vmatmul.mubr.bf16.gmra.mxu0 %v2578
        %v3108 = vpop.f32.mrf.mxu0
        %v3109 = vadd.f32 %v2707, %v3108
        %v3110 = vpop.f32.mrf.mxu0
        %v3111 = vadd.f32 %v2711, %v3110
        %v3112 = vpop.f32.mrf.mxu0
        %v3113 = vadd.f32 %v2707, %v3112
        %v3114 = vpop.f32.mrf.mxu0
        %v3115 = vadd.f32 %v2711, %v3114
        %3116 = vmatprep.mubr.bf16.mxu0 %v2595
        %3117 = vmatmul.mubr.bf16.gmra.mxu0 %v2579
        %v3118 = vpop.f32.mrf.mxu0
        %v3119 = vadd.f32 %v2707, %v3118
        %v3120 = vpop.f32.mrf.mxu0
        %v3121 = vadd.f32 %v2711, %v3120
        %v3122 = vpop.f32.mrf.mxu0
        %v3123 = vadd.f32 %v2707, %v3122
        %v3124 = vpop.f32.mrf.mxu0
        %v3125 = vadd.f32 %v2711, %v3124
        %3126 = vmatprep.mubr.bf16.mxu0 %v2596
        %3127 = vmatmul.mubr.bf16.gmra.mxu0 %v2580
        %v3128 = vpop.f32.mrf.mxu0
        %v3129 = vadd.f32 %v2707, %v3128
        %v3130 = vpop.f32.mrf.mxu0
        %v3131 = vadd.f32 %v2711, %v3130
        %v3132 = vpop.f32.mrf.mxu0
        %v3133 = vadd.f32 %v2707, %v3132
        %v3134 = vpop.f32.mrf.mxu0
        %v3135 = vadd.f32 %v2711, %v3134
        %3136 = vmatprep.mubr.bf16.mxu0 %v2597
        %3137 = vmatmul.mubr.bf16.gmra.mxu0 %v2581
        %v3138 = vpop.f32.mrf.mxu0
        %v3139 = vadd.f32 %v2707, %v3138
        %v3140 = vpop.f32.mrf.mxu0
        %v3141 = vadd.f32 %v2711, %v3140
        %v3142 = vpop.f32.mrf.mxu0
        %v3143 = vadd.f32 %v2707, %v3142
        %v3144 = vpop.f32.mrf.mxu0
        %v3145 = vadd.f32 %v2711, %v3144
        %3146 = vmatprep.mubr.bf16.mxu0 %v2598
        %3147 = vmatmul.mubr.bf16.gmra.mxu0 %v2582
        %v3148 = vpop.f32.mrf.mxu0
        %v3149 = vadd.f32 %v2707, %v3148
        %v3150 = vpop.f32.mrf.mxu0
        %v3151 = vadd.f32 %v2711, %v3150
        %v3152 = vpop.f32.mrf.mxu0
        %v3153 = vadd.f32 %v2707, %v3152
        %v3154 = vpop.f32.mrf.mxu0
        %v3155 = vadd.f32 %v2711, %v3154
        %3156 = vmatprep.mubr.bf16.mxu0 %v2599
        %3157 = vmatmul.mubr.bf16.gmra.mxu0 %v2583
        %v3158 = vpop.f32.mrf.mxu0
        %v3159 = vadd.f32 %v2707, %v3158
        %v3160 = vpop.f32.mrf.mxu0
        %v3161 = vadd.f32 %v2711, %v3160
        %v3162 = vpop.f32.mrf.mxu0
        %v3163 = vadd.f32 %v2707, %v3162
        %v3164 = vpop.f32.mrf.mxu0
        %v3165 = vadd.f32 %v2711, %v3164
        %3166 = vmatprep.mubr.bf16.mxu0 %v2600
        %3167 = vmatmul.mubr.bf16.gmra.mxu0 %v2584
        %v3168 = vpop.f32.mrf.mxu0
        %v3169 = vadd.f32 %v2707, %v3168
        %v3170 = vpop.f32.mrf.mxu0
        %v3171 = vadd.f32 %v2711, %v3170
        %v3172 = vpop.f32.mrf.mxu0
        %v3173 = vadd.f32 %v2707, %v3172
        %v3174 = vpop.f32.mrf.mxu0
        %v3175 = vadd.f32 %v2711, %v3174
        %3176 = vmatprep.mubr.bf16.mxu0 %v2601
        %3177 = vmatmul.mubr.bf16.gmra.mxu0 %v2585
        %v3178 = vpop.f32.mrf.mxu0
        %v3179 = vadd.f32 %v2707, %v3178
        %v3180 = vpop.f32.mrf.mxu0
        %v3181 = vadd.f32 %v2711, %v3180
        %v3182 = vpop.f32.mrf.mxu0
        %v3183 = vadd.f32 %v2707, %v3182
        %v3184 = vpop.f32.mrf.mxu0
        %v3185 = vadd.f32 %v2711, %v3184
        %3186 = vmatprep.mubr.bf16.mxu0 %v2602
        %3187 = vmatmul.mubr.bf16.gmra.mxu0 %v2586
        %v3188 = vpop.f32.mrf.mxu0
        %v3189 = vadd.f32 %v2707, %v3188
        %v3190 = vpop.f32.mrf.mxu0
        %v3191 = vadd.f32 %v2711, %v3190
        %v3192 = vpop.f32.mrf.mxu0
        %v3193 = vadd.f32 %v2707, %v3192
        %v3194 = vpop.f32.mrf.mxu0
        %v3195 = vadd.f32 %v2711, %v3194
        %3196 = vmatprep.mubr.bf16.mxu0 %v2603
        %3197 = vmatmul.mubr.bf16.gmra.mxu0 %v2587
        %v3198 = vpop.f32.mrf.mxu0
        %v3199 = vadd.f32 %v2707, %v3198
        %v3200 = vpop.f32.mrf.mxu0
        %v3201 = vadd.f32 %v2711, %v3200
        %v3202 = vpop.f32.mrf.mxu0
        %v3203 = vadd.f32 %v2707, %v3202
        %v3204 = vpop.f32.mrf.mxu0
        %v3205 = vadd.f32 %v2711, %v3204
        %3206 = vmatprep.mubr.bf16.mxu0 %v2604
        %3207 = vmatmul.mubr.bf16.gmra.mxu0 %v2588
        %v3208 = vpop.f32.mrf.mxu0
        %v3209 = vadd.f32 %v2707, %v3208
        %v3210 = vpop.f32.mrf.mxu0
        %v3211 = vadd.f32 %v2711, %v3210
        %v3212 = vpop.f32.mrf.mxu0
        %v3213 = vadd.f32 %v2707, %v3212
        %v3214 = vpop.f32.mrf.mxu0
        %v3215 = vadd.f32 %v2711, %v3214
        %3216 = vmatprep.mubr.bf16.mxu0 %v2605
        %3217 = vmatmul.mubr.bf16.gmra.mxu0 %v2589
        %v3218 = vpop.f32.mrf.mxu0
        %v3219 = vadd.f32 %v2707, %v3218
        %v3220 = vpop.f32.mrf.mxu0
        %v3221 = vadd.f32 %v2711, %v3220
        %v3222 = vpop.f32.mrf.mxu0
        %v3223 = vadd.f32 %v2707, %v3222
        %v3224 = vpop.f32.mrf.mxu0
        %v3225 = vadd.f32 %v2711, %v3224
        %3226 = vdwg.mxu0
        %3227 = vmatprep.subr.bf16.mxu0 %v2953
        %3228 = vmatpush1.bf16.msra.mxu0 %v2952
        %3229 = vmatprep.subr.bf16.mxu0 %v2951
        %3230 = vmatpush1.bf16.msra.mxu0 %v2950
        %3231 = vmatprep.subr.bf16.mxu0 %v2949
        %3232 = vmatpush1.bf16.msra.mxu0 %v2948
        %3233 = vmatprep.subr.bf16.mxu0 %v2947
        %3234 = vmatpush1.bf16.msra.mxu0 %v2946
        %3235 = vmatprep.subr.bf16.mxu0 %v2945
        %3236 = vmatpush1.bf16.msra.mxu0 %v2944
        %3237 = vmatprep.subr.bf16.mxu0 %v2943
        %3238 = vmatpush1.bf16.msra.mxu0 %v2942
        %3239 = vmatprep.subr.bf16.mxu0 %v2941
        %3240 = vmatpush1.bf16.msra.mxu0 %v2940
        %3241 = vmatprep.subr.bf16.mxu0 %v2939
        %3242 = vmatpush1.bf16.msra.mxu0 %v2938
        %3243 = vmatprep.subr.bf16.mxu0 %v2969
        %3244 = vmatpush2.bf16.msra.mxu0 %v2968
        %3245 = vmatprep.subr.bf16.mxu0 %v2967
        %3246 = vmatpush2.bf16.msra.mxu0 %v2966
        %3247 = vmatprep.subr.bf16.mxu0 %v2965
        %3248 = vmatpush2.bf16.msra.mxu0 %v2964
        %3249 = vmatprep.subr.bf16.mxu0 %v2963
        %3250 = vmatpush2.bf16.msra.mxu0 %v2962
        %3251 = vmatprep.subr.bf16.mxu0 %v2961
        %3252 = vmatpush2.bf16.msra.mxu0 %v2960
        %3253 = vmatprep.subr.bf16.mxu0 %v2959
        %3254 = vmatpush2.bf16.msra.mxu0 %v2958
        %3255 = vmatprep.subr.bf16.mxu0 %v2957
        %3256 = vmatpush2.bf16.msra.mxu0 %v2956
        %3257 = vmatprep.subr.bf16.mxu0 %v2955
        %3258 = vmatpush2.bf16.msra.mxu0 %v2954
        %3259 = vmatprep.mubr.bf16.mxu0 %v2622
        %3260 = vmatmul.mubr.bf16.gmra.mxu0 %v2606
        %v3261 = vpop.f32.mrf.mxu0
        %v3262 = vadd.f32 %v3069, %v3261
        %v3263 = vpop.f32.mrf.mxu0
        %v3264 = vadd.f32 %v3071, %v3263
        %v3265 = vpop.f32.mrf.mxu0
        %v3266 = vadd.f32 %v3073, %v3265
        %v3267 = vpop.f32.mrf.mxu0
        %v3268 = vadd.f32 %v3075, %v3267
        %3269 = vmatprep.mubr.bf16.mxu0 %v2623
        %3270 = vmatmul.mubr.bf16.gmra.mxu0 %v2607
        %v3271 = vpop.f32.mrf.mxu0
        %v3272 = vadd.f32 %v3079, %v3271
        %v3273 = vpop.f32.mrf.mxu0
        %v3274 = vadd.f32 %v3081, %v3273
        %v3275 = vpop.f32.mrf.mxu0
        %v3276 = vadd.f32 %v3083, %v3275
        %v3277 = vpop.f32.mrf.mxu0
        %v3278 = vadd.f32 %v3085, %v3277
        %3279 = vmatprep.mubr.bf16.mxu0 %v2624
        %3280 = vmatmul.mubr.bf16.gmra.mxu0 %v2608
        %v3281 = vpop.f32.mrf.mxu0
        %v3282 = vadd.f32 %v3089, %v3281
        %v3283 = vpop.f32.mrf.mxu0
        %v3284 = vadd.f32 %v3091, %v3283
        %v3285 = vpop.f32.mrf.mxu0
        %v3286 = vadd.f32 %v3093, %v3285
        %v3287 = vpop.f32.mrf.mxu0
        %v3288 = vadd.f32 %v3095, %v3287
        %3289 = vmatprep.mubr.bf16.mxu0 %v2625
        %3290 = vmatmul.mubr.bf16.gmra.mxu0 %v2609
        %v3291 = vpop.f32.mrf.mxu0
        %v3292 = vadd.f32 %v3099, %v3291
        %v3293 = vpop.f32.mrf.mxu0
        %v3294 = vadd.f32 %v3101, %v3293
        %v3295 = vpop.f32.mrf.mxu0
        %v3296 = vadd.f32 %v3103, %v3295
        %v3297 = vpop.f32.mrf.mxu0
        %v3298 = vadd.f32 %v3105, %v3297
        %3299 = vmatprep.mubr.bf16.mxu0 %v2626
        %3300 = vmatmul.mubr.bf16.gmra.mxu0 %v2610
        %v3301 = vpop.f32.mrf.mxu0
        %v3302 = vadd.f32 %v3109, %v3301
        %v3303 = vpop.f32.mrf.mxu0
        %v3304 = vadd.f32 %v3111, %v3303
        %v3305 = vpop.f32.mrf.mxu0
        %v3306 = vadd.f32 %v3113, %v3305
        %v3307 = vpop.f32.mrf.mxu0
        %v3308 = vadd.f32 %v3115, %v3307
        %3309 = vmatprep.mubr.bf16.mxu0 %v2627
        %3310 = vmatmul.mubr.bf16.gmra.mxu0 %v2611
        %v3311 = vpop.f32.mrf.mxu0
        %v3312 = vadd.f32 %v3119, %v3311
        %v3313 = vpop.f32.mrf.mxu0
        %v3314 = vadd.f32 %v3121, %v3313
        %v3315 = vpop.f32.mrf.mxu0
        %v3316 = vadd.f32 %v3123, %v3315
        %v3317 = vpop.f32.mrf.mxu0
        %v3318 = vadd.f32 %v3125, %v3317
        %3319 = vmatprep.mubr.bf16.mxu0 %v2628
        %3320 = vmatmul.mubr.bf16.gmra.mxu0 %v2612
        %v3321 = vpop.f32.mrf.mxu0
        %v3322 = vadd.f32 %v3129, %v3321
        %v3323 = vpop.f32.mrf.mxu0
        %v3324 = vadd.f32 %v3131, %v3323
        %v3325 = vpop.f32.mrf.mxu0
        %v3326 = vadd.f32 %v3133, %v3325
        %v3327 = vpop.f32.mrf.mxu0
        %v3328 = vadd.f32 %v3135, %v3327
        %3329 = vmatprep.mubr.bf16.mxu0 %v2629
        %3330 = vmatmul.mubr.bf16.gmra.mxu0 %v2613
        %v3331 = vpop.f32.mrf.mxu0
        %v3332 = vadd.f32 %v3139, %v3331
        %v3333 = vpop.f32.mrf.mxu0
        %v3334 = vadd.f32 %v3141, %v3333
        %v3335 = vpop.f32.mrf.mxu0
        %v3336 = vadd.f32 %v3143, %v3335
        %v3337 = vpop.f32.mrf.mxu0
        %v3338 = vadd.f32 %v3145, %v3337
        %3339 = vmatprep.mubr.bf16.mxu0 %v2630
        %3340 = vmatmul.mubr.bf16.gmra.mxu0 %v2614
        %v3341 = vpop.f32.mrf.mxu0
        %v3342 = vadd.f32 %v3149, %v3341
        %v3343 = vpop.f32.mrf.mxu0
        %v3344 = vadd.f32 %v3151, %v3343
        %v3345 = vpop.f32.mrf.mxu0
        %v3346 = vadd.f32 %v3153, %v3345
        %v3347 = vpop.f32.mrf.mxu0
        %v3348 = vadd.f32 %v3155, %v3347
        %3349 = vmatprep.mubr.bf16.mxu0 %v2631
        %3350 = vmatmul.mubr.bf16.gmra.mxu0 %v2615
        %v3351 = vpop.f32.mrf.mxu0
        %v3352 = vadd.f32 %v3159, %v3351
        %v3353 = vpop.f32.mrf.mxu0
        %v3354 = vadd.f32 %v3161, %v3353
        %v3355 = vpop.f32.mrf.mxu0
        %v3356 = vadd.f32 %v3163, %v3355
        %v3357 = vpop.f32.mrf.mxu0
        %v3358 = vadd.f32 %v3165, %v3357
        %3359 = vmatprep.mubr.bf16.mxu0 %v2632
        %3360 = vmatmul.mubr.bf16.gmra.mxu0 %v2616
        %v3361 = vpop.f32.mrf.mxu0
        %v3362 = vadd.f32 %v3169, %v3361
        %v3363 = vpop.f32.mrf.mxu0
        %v3364 = vadd.f32 %v3171, %v3363
        %v3365 = vpop.f32.mrf.mxu0
        %v3366 = vadd.f32 %v3173, %v3365
        %v3367 = vpop.f32.mrf.mxu0
        %v3368 = vadd.f32 %v3175, %v3367
        %3369 = vmatprep.mubr.bf16.mxu0 %v2633
        %3370 = vmatmul.mubr.bf16.gmra.mxu0 %v2617
        %v3371 = vpop.f32.mrf.mxu0
        %v3372 = vadd.f32 %v3179, %v3371
        %v3373 = vpop.f32.mrf.mxu0
        %v3374 = vadd.f32 %v3181, %v3373
        %v3375 = vpop.f32.mrf.mxu0
        %v3376 = vadd.f32 %v3183, %v3375
        %v3377 = vpop.f32.mrf.mxu0
        %v3378 = vadd.f32 %v3185, %v3377
        %3379 = vmatprep.mubr.bf16.mxu0 %v2634
        %3380 = vmatmul.mubr.bf16.gmra.mxu0 %v2618
        %v3381 = vpop.f32.mrf.mxu0
        %v3382 = vadd.f32 %v3189, %v3381
        %v3383 = vpop.f32.mrf.mxu0
        %v3384 = vadd.f32 %v3191, %v3383
        %v3385 = vpop.f32.mrf.mxu0
        %v3386 = vadd.f32 %v3193, %v3385
        %v3387 = vpop.f32.mrf.mxu0
        %v3388 = vadd.f32 %v3195, %v3387
        %3389 = vmatprep.mubr.bf16.mxu0 %v2635
        %3390 = vmatmul.mubr.bf16.gmra.mxu0 %v2619
        %v3391 = vpop.f32.mrf.mxu0
        %v3392 = vadd.f32 %v3199, %v3391
        %v3393 = vpop.f32.mrf.mxu0
        %v3394 = vadd.f32 %v3201, %v3393
        %v3395 = vpop.f32.mrf.mxu0
        %v3396 = vadd.f32 %v3203, %v3395
        %v3397 = vpop.f32.mrf.mxu0
        %v3398 = vadd.f32 %v3205, %v3397
        %3399 = vmatprep.mubr.bf16.mxu0 %v2636
        %3400 = vmatmul.mubr.bf16.gmra.mxu0 %v2620
        %v3401 = vpop.f32.mrf.mxu0
        %v3402 = vadd.f32 %v3209, %v3401
        %v3403 = vpop.f32.mrf.mxu0
        %v3404 = vadd.f32 %v3211, %v3403
        %v3405 = vpop.f32.mrf.mxu0
        %v3406 = vadd.f32 %v3213, %v3405
        %v3407 = vpop.f32.mrf.mxu0
        %v3408 = vadd.f32 %v3215, %v3407
        %3409 = vmatprep.mubr.bf16.mxu0 %v2637
        %3410 = vmatmul.mubr.bf16.gmra.mxu0 %v2621
        %v3411 = vpop.f32.mrf.mxu0
        %v3412 = vadd.f32 %v3219, %v3411
        %v3413 = vpop.f32.mrf.mxu0
        %v3414 = vadd.f32 %v3221, %v3413
        %v3415 = vpop.f32.mrf.mxu0
        %v3416 = vadd.f32 %v3223, %v3415
        %v3417 = vpop.f32.mrf.mxu0
        %v3418 = vadd.f32 %v3225, %v3417
        %3419 = vdwg.mxu0
        %v3420 = vsub.f32 0.0, %v3262
        %v3421 = vsub.f32 0.0, %v3264
        %v3422 = vsub.f32 0.0, %v3266
        %v3423 = vsub.f32 0.0, %v3268
        %v3424 = vsub.f32 0.0, %v3272
        %v3425 = vsub.f32 0.0, %v3274
        %v3426 = vsub.f32 0.0, %v3276
        %v3427 = vsub.f32 0.0, %v3278
        %v3428 = vsub.f32 0.0, %v3282
        %v3429 = vsub.f32 0.0, %v3284
        %v3430 = vsub.f32 0.0, %v3286
        %v3431 = vsub.f32 0.0, %v3288
        %v3432 = vsub.f32 0.0, %v3292
        %v3433 = vsub.f32 0.0, %v3294
        %v3434 = vsub.f32 0.0, %v3296
        %v3435 = vsub.f32 0.0, %v3298
        %v3436 = vsub.f32 0.0, %v3302
        %v3437 = vsub.f32 0.0, %v3304
        %v3438 = vsub.f32 0.0, %v3306
        %v3439 = vsub.f32 0.0, %v3308
        %v3440 = vsub.f32 0.0, %v3312
        %v3441 = vsub.f32 0.0, %v3314
        %v3442 = vsub.f32 0.0, %v3316
        %v3443 = vsub.f32 0.0, %v3318
        %v3444 = vsub.f32 0.0, %v3322
        %v3445 = vsub.f32 0.0, %v3324
        %v3446 = vsub.f32 0.0, %v3326
        %v3447 = vsub.f32 0.0, %v3328
        %v3448 = vsub.f32 0.0, %v3332
        %v3449 = vsub.f32 0.0, %v3334
        %v3450 = vsub.f32 0.0, %v3336
        %v3451 = vsub.f32 0.0, %v3338
        %v3452 = vsub.f32 0.0, %v3342
        %v3453 = vsub.f32 0.0, %v3344
        %v3454 = vsub.f32 0.0, %v3346
        %v3455 = vsub.f32 0.0, %v3348
        %v3456 = vsub.f32 0.0, %v3352
        %v3457 = vsub.f32 0.0, %v3354
        %v3458 = vsub.f32 0.0, %v3356
        %v3459 = vsub.f32 0.0, %v3358
        %v3460 = vsub.f32 0.0, %v3362
        %v3461 = vsub.f32 0.0, %v3364
        %v3462 = vsub.f32 0.0, %v3366
        %v3463 = vsub.f32 0.0, %v3368
        %v3464 = vsub.f32 0.0, %v3372
        %v3465 = vsub.f32 0.0, %v3374
        %v3466 = vsub.f32 0.0, %v3376
        %v3467 = vsub.f32 0.0, %v3378
        %v3468 = vsub.f32 0.0, %v3382
        %v3469 = vsub.f32 0.0, %v3384
        %v3470 = vsub.f32 0.0, %v3386
        %v3471 = vsub.f32 0.0, %v3388
        %v3472 = vsub.f32 0.0, %v3392
        %v3473 = vsub.f32 0.0, %v3394
        %v3474 = vsub.f32 0.0, %v3396
        %v3475 = vsub.f32 0.0, %v3398
        %v3476 = vsub.f32 0.0, %v3402
        %v3477 = vsub.f32 0.0, %v3404
        %v3478 = vsub.f32 0.0, %v3406
        %v3479 = vsub.f32 0.0, %v3408
        %v3480 = vsub.f32 0.0, %v3412
        %v3481 = vsub.f32 0.0, %v3414
        %v3482 = vsub.f32 0.0, %v3416
        %v3483 = vsub.f32 0.0, %v3418
        %v3484 = vmul.f32 %v3420, 1.442695
        %v3485 = vpow.pop %v3484
        %v3486 = vmul.f32 %v3421, 1.442695
        %v3487 = vpow.pop %v3486
        %v3488 = vmul.f32 %v3422, 1.442695
        %v3489 = vpow.pop %v3488
        %v3490 = vmul.f32 %v3423, 1.442695
        %v3491 = vpow.pop %v3490
        %v3492 = vmul.f32 %v3424, 1.442695
        %v3493 = vpow.pop %v3492
        %v3494 = vmul.f32 %v3425, 1.442695
        %v3495 = vpow.pop %v3494
        %v3496 = vmul.f32 %v3426, 1.442695
        %v3497 = vpow.pop %v3496
        %v3498 = vmul.f32 %v3427, 1.442695
        %v3499 = vpow.pop %v3498
        %v3500 = vmul.f32 %v3428, 1.442695
        %v3501 = vpow.pop %v3500
        %v3502 = vmul.f32 %v3429, 1.442695
        %v3503 = vpow.pop %v3502
        %v3504 = vmul.f32 %v3430, 1.442695
        %v3505 = vpow.pop %v3504
        %v3506 = vmul.f32 %v3431, 1.442695
        %v3507 = vpow.pop %v3506
        %v3508 = vmul.f32 %v3432, 1.442695
        %v3509 = vpow.pop %v3508
        %v3510 = vmul.f32 %v3433, 1.442695
        %v3511 = vpow.pop %v3510
        %v3512 = vmul.f32 %v3434, 1.442695
        %v3513 = vpow.pop %v3512
        %v3514 = vmul.f32 %v3435, 1.442695
        %v3515 = vpow.pop %v3514
        %v3516 = vmul.f32 %v3436, 1.442695
        %v3517 = vpow.pop %v3516
        %v3518 = vmul.f32 %v3437, 1.442695
        %v3519 = vpow.pop %v3518
        %v3520 = vmul.f32 %v3438, 1.442695
        %v3521 = vpow.pop %v3520
        %v3522 = vmul.f32 %v3439, 1.442695
        %v3523 = vpow.pop %v3522
        %v3524 = vmul.f32 %v3440, 1.442695
        %v3525 = vpow.pop %v3524
        %v3526 = vmul.f32 %v3441, 1.442695
        %v3527 = vpow.pop %v3526
        %v3528 = vmul.f32 %v3442, 1.442695
        %v3529 = vpow.pop %v3528
        %v3530 = vmul.f32 %v3443, 1.442695
        %v3531 = vpow.pop %v3530
        %v3532 = vmul.f32 %v3444, 1.442695
        %v3533 = vpow.pop %v3532
        %v3534 = vmul.f32 %v3445, 1.442695
        %v3535 = vpow.pop %v3534
        %v3536 = vmul.f32 %v3446, 1.442695
        %v3537 = vpow.pop %v3536
        %v3538 = vmul.f32 %v3447, 1.442695
        %v3539 = vpow.pop %v3538
        %v3540 = vmul.f32 %v3448, 1.442695
        %v3541 = vpow.pop %v3540
        %v3542 = vmul.f32 %v3449, 1.442695
        %v3543 = vpow.pop %v3542
        %v3544 = vmul.f32 %v3450, 1.442695
        %v3545 = vpow.pop %v3544
        %v3546 = vmul.f32 %v3451, 1.442695
        %v3547 = vpow.pop %v3546
        %v3548 = vmul.f32 %v3452, 1.442695
        %v3549 = vpow.pop %v3548
        %v3550 = vmul.f32 %v3453, 1.442695
        %v3551 = vpow.pop %v3550
        %v3552 = vmul.f32 %v3454, 1.442695
        %v3553 = vpow.pop %v3552
        %v3554 = vmul.f32 %v3455, 1.442695
        %v3555 = vpow.pop %v3554
        %v3556 = vmul.f32 %v3456, 1.442695
        %v3557 = vpow.pop %v3556
        %v3558 = vmul.f32 %v3457, 1.442695
        %v3559 = vpow.pop %v3558
        %v3560 = vmul.f32 %v3458, 1.442695
        %v3561 = vpow.pop %v3560
        %v3562 = vmul.f32 %v3459, 1.442695
        %v3563 = vpow.pop %v3562
        %v3564 = vmul.f32 %v3460, 1.442695
        %v3565 = vpow.pop %v3564
        %v3566 = vmul.f32 %v3461, 1.442695
        %v3567 = vpow.pop %v3566
        %v3568 = vmul.f32 %v3462, 1.442695
        %v3569 = vpow.pop %v3568
        %v3570 = vmul.f32 %v3463, 1.442695
        %v3571 = vpow.pop %v3570
        %v3572 = vmul.f32 %v3464, 1.442695
        %v3573 = vpow.pop %v3572
        %v3574 = vmul.f32 %v3465, 1.442695
        %v3575 = vpow.pop %v3574
        %v3576 = vmul.f32 %v3466, 1.442695
        %v3577 = vpow.pop %v3576
        %v3578 = vmul.f32 %v3467, 1.442695
        %v3579 = vpow.pop %v3578
        %v3580 = vmul.f32 %v3468, 1.442695
        %v3581 = vpow.pop %v3580
        %v3582 = vmul.f32 %v3469, 1.442695
        %v3583 = vpow.pop %v3582
        %v3584 = vmul.f32 %v3470, 1.442695
        %v3585 = vpow.pop %v3584
        %v3586 = vmul.f32 %v3471, 1.442695
        %v3587 = vpow.pop %v3586
        %v3588 = vmul.f32 %v3472, 1.442695
        %v3589 = vpow.pop %v3588
        %v3590 = vmul.f32 %v3473, 1.442695
        %v3591 = vpow.pop %v3590
        %v3592 = vmul.f32 %v3474, 1.442695
        %v3593 = vpow.pop %v3592
        %v3594 = vmul.f32 %v3475, 1.442695
        %v3595 = vpow.pop %v3594
        %v3596 = vmul.f32 %v3476, 1.442695
        %v3597 = vpow.pop %v3596
        %v3598 = vmul.f32 %v3477, 1.442695
        %v3599 = vpow.pop %v3598
        %v3600 = vmul.f32 %v3478, 1.442695
        %v3601 = vpow.pop %v3600
        %v3602 = vmul.f32 %v3479, 1.442695
        %v3603 = vpow.pop %v3602
        %v3604 = vmul.f32 %v3480, 1.442695
        %v3605 = vpow.pop %v3604
        %v3606 = vmul.f32 %v3481, 1.442695
        %v3607 = vpow.pop %v3606
        %v3608 = vmul.f32 %v3482, 1.442695
        %v3609 = vpow.pop %v3608
        %v3610 = vmul.f32 %v3483, 1.442695
        %v3611 = vpow.pop %v3610
        %v3612 = vadd.f32 %v3485, 1.0
        %v3613 = vadd.f32 %v3487, 1.0
        %v3614 = vadd.f32 %v3489, 1.0
        %v3615 = vadd.f32 %v3491, 1.0
        %v3616 = vadd.f32 %v3493, 1.0
        %v3617 = vadd.f32 %v3495, 1.0
        %v3618 = vadd.f32 %v3497, 1.0
        %v3619 = vadd.f32 %v3499, 1.0
        %v3620 = vadd.f32 %v3501, 1.0
        %v3621 = vadd.f32 %v3503, 1.0
        %v3622 = vadd.f32 %v3505, 1.0
        %v3623 = vadd.f32 %v3507, 1.0
        %v3624 = vadd.f32 %v3509, 1.0
        %v3625 = vadd.f32 %v3511, 1.0
        %v3626 = vadd.f32 %v3513, 1.0
        %v3627 = vadd.f32 %v3515, 1.0
        %v3628 = vadd.f32 %v3517, 1.0
        %v3629 = vadd.f32 %v3519, 1.0
        %v3630 = vadd.f32 %v3521, 1.0
        %v3631 = vadd.f32 %v3523, 1.0
        %v3632 = vadd.f32 %v3525, 1.0
        %v3633 = vadd.f32 %v3527, 1.0
        %v3634 = vadd.f32 %v3529, 1.0
        %v3635 = vadd.f32 %v3531, 1.0
        %v3636 = vadd.f32 %v3533, 1.0
        %v3637 = vadd.f32 %v3535, 1.0
        %v3638 = vadd.f32 %v3537, 1.0
        %v3639 = vadd.f32 %v3539, 1.0
        %v3640 = vadd.f32 %v3541, 1.0
        %v3641 = vadd.f32 %v3543, 1.0
        %v3642 = vadd.f32 %v3545, 1.0
        %v3643 = vadd.f32 %v3547, 1.0
        %v3644 = vadd.f32 %v3549, 1.0
        %v3645 = vadd.f32 %v3551, 1.0
        %v3646 = vadd.f32 %v3553, 1.0
        %v3647 = vadd.f32 %v3555, 1.0
        %v3648 = vadd.f32 %v3557, 1.0
        %v3649 = vadd.f32 %v3559, 1.0
        %v3650 = vadd.f32 %v3561, 1.0
        %v3651 = vadd.f32 %v3563, 1.0
        %v3652 = vadd.f32 %v3565, 1.0
        %v3653 = vadd.f32 %v3567, 1.0
        %v3654 = vadd.f32 %v3569, 1.0
        %v3655 = vadd.f32 %v3571, 1.0
        %v3656 = vadd.f32 %v3573, 1.0
        %v3657 = vadd.f32 %v3575, 1.0
        %v3658 = vadd.f32 %v3577, 1.0
        %v3659 = vadd.f32 %v3579, 1.0
        %v3660 = vadd.f32 %v3581, 1.0
        %v3661 = vadd.f32 %v3583, 1.0
        %v3662 = vadd.f32 %v3585, 1.0
        %v3663 = vadd.f32 %v3587, 1.0
        %v3664 = vadd.f32 %v3589, 1.0
        %v3665 = vadd.f32 %v3591, 1.0
        %v3666 = vadd.f32 %v3593, 1.0
        %v3667 = vadd.f32 %v3595, 1.0
        %v3668 = vadd.f32 %v3597, 1.0
        %v3669 = vadd.f32 %v3599, 1.0
        %v3670 = vadd.f32 %v3601, 1.0
        %v3671 = vadd.f32 %v3603, 1.0
        %v3672 = vadd.f32 %v3605, 1.0
        %v3673 = vadd.f32 %v3607, 1.0
        %v3674 = vadd.f32 %v3609, 1.0
        %v3675 = vadd.f32 %v3611, 1.0
        %v3676 = vrcp.pop %v3612
        %v3677 = vrcp.pop %v3613
        %v3678 = vrcp.pop %v3614
        %v3679 = vrcp.pop %v3615
        %v3680 = vrcp.pop %v3616
        %v3681 = vrcp.pop %v3617
        %v3682 = vrcp.pop %v3618
        %v3683 = vrcp.pop %v3619
        %v3684 = vrcp.pop %v3620
        %v3685 = vrcp.pop %v3621
        %v3686 = vrcp.pop %v3622
        %v3687 = vrcp.pop %v3623
        %v3688 = vrcp.pop %v3624
        %v3689 = vrcp.pop %v3625
        %v3690 = vrcp.pop %v3626
        %v3691 = vrcp.pop %v3627
        %v3692 = vrcp.pop %v3628
        %v3693 = vrcp.pop %v3629
        %v3694 = vrcp.pop %v3630
        %v3695 = vrcp.pop %v3631
        %v3696 = vrcp.pop %v3632
        %v3697 = vrcp.pop %v3633
        %v3698 = vrcp.pop %v3634
        %v3699 = vrcp.pop %v3635
        %v3700 = vrcp.pop %v3636
        %v3701 = vrcp.pop %v3637
        %v3702 = vrcp.pop %v3638
        %v3703 = vrcp.pop %v3639
        %v3704 = vrcp.pop %v3640
        %v3705 = vrcp.pop %v3641
        %v3706 = vrcp.pop %v3642
        %v3707 = vrcp.pop %v3643
        %v3708 = vrcp.pop %v3644
        %v3709 = vrcp.pop %v3645
        %v3710 = vrcp.pop %v3646
        %v3711 = vrcp.pop %v3647
        %v3712 = vrcp.pop %v3648
        %v3713 = vrcp.pop %v3649
        %v3714 = vrcp.pop %v3650
        %v3715 = vrcp.pop %v3651
        %v3716 = vrcp.pop %v3652
        %v3717 = vrcp.pop %v3653
        %v3718 = vrcp.pop %v3654
        %v3719 = vrcp.pop %v3655
        %v3720 = vrcp.pop %v3656
        %v3721 = vrcp.pop %v3657
        %v3722 = vrcp.pop %v3658
        %v3723 = vrcp.pop %v3659
        %v3724 = vrcp.pop %v3660
        %v3725 = vrcp.pop %v3661
        %v3726 = vrcp.pop %v3662
        %v3727 = vrcp.pop %v3663
        %v3728 = vrcp.pop %v3664
        %v3729 = vrcp.pop %v3665
        %v3730 = vrcp.pop %v3666
        %v3731 = vrcp.pop %v3667
        %v3732 = vrcp.pop %v3668
        %v3733 = vrcp.pop %v3669
        %v3734 = vrcp.pop %v3670
        %v3735 = vrcp.pop %v3671
        %v3736 = vrcp.pop %v3672
        %v3737 = vrcp.pop %v3673
        %v3738 = vrcp.pop %v3674
        %v3739 = vrcp.pop %v3675
        %v3740 = vmul.f32 %v3262, %v3676
        %v3741 = vmul.f32 %v3264, %v3677
        %v3742 = vmul.f32 %v3266, %v3678
        %v3743 = vmul.f32 %v3268, %v3679
        %v3744 = vmul.f32 %v3272, %v3680
        %v3745 = vmul.f32 %v3274, %v3681
        %v3746 = vmul.f32 %v3276, %v3682
        %v3747 = vmul.f32 %v3278, %v3683
        %v3748 = vmul.f32 %v3282, %v3684
        %v3749 = vmul.f32 %v3284, %v3685
        %v3750 = vmul.f32 %v3286, %v3686
        %v3751 = vmul.f32 %v3288, %v3687
        %v3752 = vmul.f32 %v3292, %v3688
        %v3753 = vmul.f32 %v3294, %v3689
        %v3754 = vmul.f32 %v3296, %v3690
        %v3755 = vmul.f32 %v3298, %v3691
        %v3756 = vmul.f32 %v3302, %v3692
        %v3757 = vmul.f32 %v3304, %v3693
        %v3758 = vmul.f32 %v3306, %v3694
        %v3759 = vmul.f32 %v3308, %v3695
        %v3760 = vmul.f32 %v3312, %v3696
        %v3761 = vmul.f32 %v3314, %v3697
        %v3762 = vmul.f32 %v3316, %v3698
        %v3763 = vmul.f32 %v3318, %v3699
        %v3764 = vmul.f32 %v3322, %v3700
        %v3765 = vmul.f32 %v3324, %v3701
        %v3766 = vmul.f32 %v3326, %v3702
        %v3767 = vmul.f32 %v3328, %v3703
        %v3768 = vmul.f32 %v3332, %v3704
        %v3769 = vmul.f32 %v3334, %v3705
        %v3770 = vmul.f32 %v3336, %v3706
        %v3771 = vmul.f32 %v3338, %v3707
        %v3772 = vmul.f32 %v3342, %v3708
        %v3773 = vmul.f32 %v3344, %v3709
        %v3774 = vmul.f32 %v3346, %v3710
        %v3775 = vmul.f32 %v3348, %v3711
        %v3776 = vmul.f32 %v3352, %v3712
        %v3777 = vmul.f32 %v3354, %v3713
        %v3778 = vmul.f32 %v3356, %v3714
        %v3779 = vmul.f32 %v3358, %v3715
        %v3780 = vmul.f32 %v3362, %v3716
        %v3781 = vmul.f32 %v3364, %v3717
        %v3782 = vmul.f32 %v3366, %v3718
        %v3783 = vmul.f32 %v3368, %v3719
        %v3784 = vmul.f32 %v3372, %v3720
        %v3785 = vmul.f32 %v3374, %v3721
        %v3786 = vmul.f32 %v3376, %v3722
        %v3787 = vmul.f32 %v3378, %v3723
        %v3788 = vmul.f32 %v3382, %v3724
        %v3789 = vmul.f32 %v3384, %v3725
        %v3790 = vmul.f32 %v3386, %v3726
        %v3791 = vmul.f32 %v3388, %v3727
        %v3792 = vmul.f32 %v3392, %v3728
        %v3793 = vmul.f32 %v3394, %v3729
        %v3794 = vmul.f32 %v3396, %v3730
        %v3795 = vmul.f32 %v3398, %v3731
        %v3796 = vmul.f32 %v3402, %v3732
        %v3797 = vmul.f32 %v3404, %v3733
        %v3798 = vmul.f32 %v3406, %v3734
        %v3799 = vmul.f32 %v3408, %v3735
        %v3800 = vmul.f32 %v3412, %v3736
        %v3801 = vmul.f32 %v3414, %v3737
        %v3802 = vmul.f32 %v3416, %v3738
        %v3803 = vmul.f32 %v3418, %v3739
        %3804 = vst [vmem:[%s271] sm:$0xff] %v3740
        %3805 = vst [vmem:[%s271 + $0x8] sm:$0xff] %v3741
        %3806 = vst [vmem:[%s271 + $0x10] sm:$0xff] %v3742
        %3807 = vst [vmem:[%s271 + $0x18] sm:$0xff] %v3743
        %3808 = vst [vmem:[%s271 + $0x20] sm:$0xff] %v3744
        %3809 = vst [vmem:[%s271 + $0x28] sm:$0xff] %v3745
        %3810 = vst [vmem:[%s271 + $0x30] sm:$0xff] %v3746
        %3811 = vst [vmem:[%s271 + $0x38] sm:$0xff] %v3747
        %3812 = vst [vmem:[%s271 + $0x40] sm:$0xff] %v3748
        %3813 = vst [vmem:[%s271 + $0x48] sm:$0xff] %v3749
        %3814 = vst [vmem:[%s271 + $0x50] sm:$0xff] %v3750
        %3815 = vst [vmem:[%s271 + $0x58] sm:$0xff] %v3751
        %3816 = vst [vmem:[%s271 + $0x60] sm:$0xff] %v3752
        %3817 = vst [vmem:[%s271 + $0x68] sm:$0xff] %v3753
        %3818 = vst [vmem:[%s271 + $0x70] sm:$0xff] %v3754
        %3819 = vst [vmem:[%s271 + $0x78] sm:$0xff] %v3755
        %3820 = vst [vmem:[%s271 + $0x80] sm:$0xff] %v3756
        %3821 = vst [vmem:[%s271 + $0x88] sm:$0xff] %v3757
        %3822 = vst [vmem:[%s271 + $0x90] sm:$0xff] %v3758
        %3823 = vst [vmem:[%s271 + $0x98] sm:$0xff] %v3759
        %3824 = vst [vmem:[%s271 + $0xa0] sm:$0xff] %v3760
        %3825 = vst [vmem:[%s271 + $0xa8] sm:$0xff] %v3761
        %3826 = vst [vmem:[%s271 + $0xb0] sm:$0xff] %v3762
        %3827 = vst [vmem:[%s271 + $0xb8] sm:$0xff] %v3763
        %3828 = vst [vmem:[%s271 + $0xc0] sm:$0xff] %v3764
        %3829 = vst [vmem:[%s271 + $0xc8] sm:$0xff] %v3765
        %3830 = vst [vmem:[%s271 + $0xd0] sm:$0xff] %v3766
        %3831 = vst [vmem:[%s271 + $0xd8] sm:$0xff] %v3767
        %3832 = vst [vmem:[%s271 + $0xe0] sm:$0xff] %v3768
        %3833 = vst [vmem:[%s271 + $0xe8] sm:$0xff] %v3769
        %3834 = vst [vmem:[%s271 + $0xf0] sm:$0xff] %v3770
        %3835 = vst [vmem:[%s271 + $0xf8] sm:$0xff] %v3771
        %3836 = vst [vmem:[%s271 + $0x100] sm:$0xff] %v3772
        %3837 = vst [vmem:[%s271 + $0x108] sm:$0xff] %v3773
        %3838 = vst [vmem:[%s271 + $0x110] sm:$0xff] %v3774
        %3839 = vst [vmem:[%s271 + $0x118] sm:$0xff] %v3775
        %3840 = vst [vmem:[%s271 + $0x120] sm:$0xff] %v3776
        %3841 = vst [vmem:[%s271 + $0x128] sm:$0xff] %v3777
        %3842 = vst [vmem:[%s271 + $0x130] sm:$0xff] %v3778
        %3843 = vst [vmem:[%s271 + $0x138] sm:$0xff] %v3779
        %3844 = vst [vmem:[%s271 + $0x140] sm:$0xff] %v3780
        %3845 = vst [vmem:[%s271 + $0x148] sm:$0xff] %v3781
        %3846 = vst [vmem:[%s271 + $0x150] sm:$0xff] %v3782
        %3847 = vst [vmem:[%s271 + $0x158] sm:$0xff] %v3783
        %3848 = vst [vmem:[%s271 + $0x160] sm:$0xff] %v3784
        %3849 = vst [vmem:[%s271 + $0x168] sm:$0xff] %v3785
        %3850 = vst [vmem:[%s271 + $0x170] sm:$0xff] %v3786
        %3851 = vst [vmem:[%s271 + $0x178] sm:$0xff] %v3787
        %3852 = vst [vmem:[%s271 + $0x180] sm:$0xff] %v3788
        %3853 = vst [vmem:[%s271 + $0x188] sm:$0xff] %v3789
        %3854 = vst [vmem:[%s271 + $0x190] sm:$0xff] %v3790
        %3855 = vst [vmem:[%s271 + $0x198] sm:$0xff] %v3791
        %3856 = vst [vmem:[%s271 + $0x1a0] sm:$0xff] %v3792
        %3857 = vst [vmem:[%s271 + $0x1a8] sm:$0xff] %v3793
        %3858 = vst [vmem:[%s271 + $0x1b0] sm:$0xff] %v3794
        %3859 = vst [vmem:[%s271 + $0x1b8] sm:$0xff] %v3795
        %3860 = vst [vmem:[%s271 + $0x1c0] sm:$0xff] %v3796
        %3861 = vst [vmem:[%s271 + $0x1c8] sm:$0xff] %v3797
        %3862 = vst [vmem:[%s271 + $0x1d0] sm:$0xff] %v3798
        %3863 = vst [vmem:[%s271 + $0x1d8] sm:$0xff] %v3799
        %3864 = vst [vmem:[%s271 + $0x1e0] sm:$0xff] %v3800
        %3865 = vst [vmem:[%s271 + $0x1e8] sm:$0xff] %v3801
        %3866 = vst [vmem:[%s271 + $0x1f0] sm:$0xff] %v3802
        %3867 = vst [vmem:[%s271 + $0x1f8] sm:$0xff] %v3803
        %s3868 = sand.u32 %s141, 1
        %s3869 = scalar_lea.sflag [#allocation5], %s3868
        %s3870 = sand.u32 %s141, 1
        %s3871 = smul.addr %s3870, 512
        %s3872 = scalar_lea.vmem [#allocation9], %s3871
        // Predicated region
        $region53: #{tpu_custom_call.1} parent=39 // pred_check
          %p3873 = pneg %p151
        $region54: #{tpu_custom_call.1} parent=39 // pred_check_branch
          %3875 = sbr.rel (%p3873) target = $region56
        $region55: #{tpu_custom_call.1} parent=39 // pred_region
          %s3877 = ssub.s32 8192, 8192
          %3878 = vsyncadd %s3869, %s3877
          %s3879 = smul.addr %s23, 64
          %s3880 = smul.addr %s3879, 128
          %s3881 = scalar_lea.hbm %s5, %s3880
          %s3882 = sshll.u32 %s3872, 4
          %s3883 = int_to_ptr.vmem [resolvable:$true] %s3882
          %3888 = dma.vmem_to_hbm [thread:$0]  %s3883, 8192, %s3881, %s3869, 256, 256, 16
        $region56: #{tpu_custom_call.1} parent=39 // pred_fallthru
          _
      $region40: #{tpu_custom_call.1} parent=5 // pred_fallthru
        _
      %p3889 = scmp.le.s32.totalorder 2, %s18
      // Predicated region
      $region57: #{tpu_custom_call.1} parent=5 // pred_check
        %p3890 = pneg %p3889
      $region58: #{tpu_custom_call.1} parent=5 // pred_check_branch
        %3892 = sbr.rel (%p3890) target = $region60
      $region59: #{tpu_custom_call.1} parent=5 // pred_region
        %s3893 = ssub.s32 %s18, 2
        // Predicated region
        $region61: #{tpu_custom_call.1} parent=59 // pred_check
          %p3894 = pneg %p157
        $region62: #{tpu_custom_call.1} parent=59 // pred_check_branch
          %3896 = sbr.rel (%p3894) target = $region64
        $region63: #{tpu_custom_call.1} parent=59 // pred_region
          %s3897 = sand.u32 %s142, 1
          %s3898 = scalar_lea.sflag [#allocation5], %s3897
          %s3899 = sand.u32 %s142, 1
          %s3900 = smul.addr %s3899, 512
          %s3901 = scalar_lea.vmem [#allocation9], %s3900
          %3902 = dma.done %s3898, 8192
        $region64: #{tpu_custom_call.1} parent=59 // pred_fallthru
          _
      $region60: #{tpu_custom_call.1} parent=5 // pred_fallthru
        _
    $region6: #{tpu_custom_call.1} parent=1 // loop_footer
      %s22 = sadd.s32 1, %s18
    $region7: #{tpu_custom_call.1} parent=1 // loop_footer_branch
      %17 = sbr.rel target = $region3
    $region8: #{tpu_custom_call.1} parent=1 // loop_exit
      _
    %3903 = vsyncpa [#allocation4], 1
    %s3904 = scalar_lea.sflag [#allocation4], 1
    %3905 = vsyncpa %s3904, 1
    %3906 = vsyncpa [#allocation7], 1
    %3907 = vsyncpa [#allocation5], 1
    %s3908 = scalar_lea.sflag [#allocation5], 1
    %3909 = vsyncpa %s3908, 1

</llo_original>
